<compile_context>
chip_gen: v6e
topology: v6e:2x2x1
jax: 0.10.0
libtpu: 0.0.40
codegen_flags: <defaults>
</compile_context>

<pallas_src>
import jax
import jax.numpy as jnp
from jax.experimental import pallas as pl
from jax.experimental.pallas import tpu as pltpu


def _round_up(v, m):
    return -(-v // m) * m


# ------------------------------ Pallas kernel --------------------------------

def cur_matmul_kernel(p_ref, wc_ref, w2_ref, b_ref, o_ref):
    """Fused CUR conv tile: (patches @ Wc) @ (u @ Wr) + bias.

    p_ref : (TM, KD)    bf16 im2col patch tile (rows of N*H*W)
    wc_ref: (KD, COLS)  bf16 weight_c                 (VMEM-resident)
    w2_ref: (COLS, Fp)  f32  u @ weight_r, lane-padded (VMEM-resident)
    b_ref : (1, Fp)     f32  bias, lane-padded         (VMEM-resident)
    o_ref : (TM, Fp)    f32  output tile
    """
    mid = jnp.dot(p_ref[...], wc_ref[...], preferred_element_type=jnp.float32)
    y = jnp.dot(mid, w2_ref[...], preferred_element_type=jnp.float32)
    o_ref[...] = y + b_ref[...]


# ------------------------------- JAX glue -------------------------------------

def _unfold3x3(x_nchw):
    """nn.Unfold(3, dilation=1, padding=1, stride=1) then transpose+flatten.

    (N, C, H, W) -> (N*H*W, C*9); rows ordered (n, h, w), columns ordered
    (c, kh, kw) exactly like PyTorch's unfold + .transpose(1,2).view(-1, C*9).
    """
    N, C, H, W = x_nchw.shape
    xp = jnp.pad(x_nchw, ((0, 0), (0, 0), (1, 1), (1, 1)))
    taps = []
    for kh in range(3):
        for kw in range(3):
            taps.append(xp[:, :, kh:kh + H, kw:kw + W])    # (N, C, H, W)
    pat = jnp.stack(taps, axis=2)                          # (N, C, 9, H, W)
    pat = jnp.transpose(pat, (0, 3, 4, 1, 2))              # (N, H, W, C, 9)
    return pat.reshape(N * H * W, C * 9)


def cur_conv2d_forward(x_nchw, params):
    """Matches CurConv2d.forward (ksize=3, padding=1, stride=1)."""
    wc = params["weight_c"]                    # (KD, COLS)
    wr = params["weight_r"]                    # (ROWS, F)
    bias = params["bias"]                      # (F,)
    rows_idx = params["rows"]                  # (ROWS,) int
    cols_idx = params["cols"]                  # (COLS,) int

    N, C, H, W = x_nchw.shape
    KD, COLS = wc.shape
    F = wr.shape[1]

    # --- parameter-side work: pinverse (SVD) has no Pallas equivalent; tiny ---
    u = jnp.linalg.pinv((wc[rows_idx, :] + wr[:, cols_idx]) * 0.5)   # (COLS, ROWS)
    w2 = u @ wr                                                      # (COLS, F)

    # --- im2col in (c, kh, kw) order; cast to bf16 to halve HBM/DMA bytes ----
    patches = _unfold3x3(x_nchw).astype(jnp.bfloat16)                # (M, KD)

    M = N * H * W
    tm = min(512, _round_up(M, 16))            # rows per tile (mult of 16 for bf16)
    Mp = _round_up(M, tm)
    if Mp != M:
        patches = jnp.pad(patches, ((0, Mp - M), (0, 0)))

    Fp = _round_up(F, 128)                     # lane-dense output -> unmasked stores
    w2p = jnp.pad(w2, ((0, 0), (0, Fp - F))).astype(jnp.float32)
    bp = jnp.pad(bias, (0, Fp - F)).reshape(1, Fp).astype(jnp.float32)
    wcb = wc.astype(jnp.bfloat16)

    out = pl.pallas_call(
        cur_matmul_kernel,
        out_shape=jax.ShapeDtypeStruct((Mp, Fp), jnp.float32),
        grid_spec=pltpu.PrefetchScalarGridSpec(
            num_scalar_prefetch=0,
            grid=(Mp // tm,),
            in_specs=[
                pl.BlockSpec((tm, KD), lambda i: (i, 0)),     # patches: tiled over M
                pl.BlockSpec((KD, COLS), lambda i: (0, 0)),   # weight_c: resident
                pl.BlockSpec((COLS, Fp), lambda i: (0, 0)),   # u @ weight_r: resident
                pl.BlockSpec((1, Fp), lambda i: (0, 0)),      # bias: resident
            ],
            out_specs=pl.BlockSpec((tm, Fp), lambda i: (i, 0)),
        ),
        compiler_params=pltpu.CompilerParams(
            dimension_semantics=("parallel",),
            vmem_limit_bytes=32 * 1024 * 1024,
        ),
    )(patches, wcb, w2p, bp)

    y = out[:M, :F].reshape(N, H, W, F)
    # nn.Fold(isize, 1) on the transposed result == reshape to (N, F, H, W).
    return jnp.transpose(y, (0, 3, 1, 2))


# ----------------------------- parameter init ---------------------------------

def init_params(key, channels, filters, ksize, rows, cols):
    """Random params with the right shapes.  (The PyTorch module's SVD/top-k CUR
    initialisation only affects initial values, not forward semantics.)"""
    kd = channels * ksize * ksize
    k1, k2, k3, k4, k5 = jax.random.split(key, 5)
    return {
        "weight_c": 0.1 * jax.random.normal(k1, (kd, cols), jnp.float32),
        "weight_r": 0.1 * jax.random.normal(k2, (rows, filters), jnp.float32),
        "bias": 0.05 * jax.random.normal(k3, (filters,), jnp.float32),
        "rows": jax.random.permutation(k4, kd)[:rows].astype(jnp.int32),
        "cols": jax.random.permutation(k5, filters)[:cols].astype(jnp.int32),
    }


# ---------------------------- pure-JAX reference -------------------------------

def reference_forward(x_nchw, params):
    wc = params["weight_c"]
    wr = params["weight_r"]
    bias = params["bias"]
    rows_idx = params["rows"]
    cols_idx = params["cols"]
    N, C, H, W = x_nchw.shape
    F = wr.shape[1]
    u = jnp.linalg.pinv((wc[rows_idx, :] + wr[:, cols_idx]) * 0.5)
    flat = _unfold3x3(x_nchw)                          # f32 (M, KD)
    res = flat @ wc @ (u @ wr)                         # (M, F)
    res = res.reshape(N, H * W, F) + bias
    return jnp.transpose(res, (0, 2, 1)).reshape(N, F, H, W)


# ------------------------------------ main -------------------------------------

if __name__ == "__main__":
    key = jax.random.PRNGKey(0)
    kx, kp = jax.random.split(key)

    # CurConv2d(channels=4, filters=64, ksize=3, isize=16, rows=8, cols=16)
    channels, filters, ksize, isize, rows, cols = 4, 64, 3, 16, 8, 16
    params = init_params(kp, channels, filters, ksize, rows, cols)

    x = jax.random.normal(kx, (2, channels, isize, isize), jnp.float32)  # NCHW

    out = jax.jit(cur_conv2d_forward)(x, params)
    out = jax.block_until_ready(out)
    assert out.shape == (2, filters, isize, isize)

    ref = reference_forward(x, params)
    assert jnp.allclose(out, ref, atol=5e-2, rtol=5e-2), "mismatch vs reference"

    print("KERNEL_OK")
</pallas_src>

<mosaic_0001>
module attributes {stable_mosaic.version = 11 : i64} {
  func.func @cur_matmul_kernel(%arg0: i32, %arg1: memref<512x36xbf16, #tpu.memory_space<vmem>>, %arg2: memref<36x16xbf16, #tpu.memory_space<vmem>>, %arg3: memref<16x128xf32, #tpu.memory_space<vmem>>, %arg4: memref<1x128xf32, #tpu.memory_space<vmem>>, %arg5: memref<512x128xf32, #tpu.memory_space<vmem>>) attributes {dimension_semantics = [#tpu.dimension_semantics<parallel>], iteration_bounds = array<i64: 1>, scalar_prefetch = 0 : i64, scratch_operands = 0 : i64, tpu.core_type = #tpu.core_type<tc>, window_params = [{transform_indices = @transform_0, window_bounds = array<i64: 512, 36>}, {pipeline_mode = #tpu.pipeline_mode<synchronous>, transform_indices = @transform_1, window_bounds = array<i64: 36, 16>}, {pipeline_mode = #tpu.pipeline_mode<synchronous>, transform_indices = @transform_2, window_bounds = array<i64: 16, 128>}, {pipeline_mode = #tpu.pipeline_mode<synchronous>, transform_indices = @transform_3, window_bounds = array<i64: 1, 128>}, {transform_indices = @transform_4, window_bounds = array<i64: 512, 128>}]} {
    %c0 = arith.constant 0 : index
    %c0_0 = arith.constant 0 : index
    %0 = vector.load %arg1[%c0, %c0_0] : memref<512x36xbf16, #tpu.memory_space<vmem>>, vector<512x36xbf16>
    %c0_1 = arith.constant 0 : index
    %c0_2 = arith.constant 0 : index
    %1 = vector.load %arg2[%c0_1, %c0_2] : memref<36x16xbf16, #tpu.memory_space<vmem>>, vector<36x16xbf16>
    %cst = arith.constant dense<0.000000e+00> : vector<512x16xf32>
    %2 = tpu.matmul %0, %1, %cst {dimension_numbers = #tpu.dot_dimension_numbers<[1], [0], [0], [1], [0, 0, 1, 1], [], []>} : vector<512x36xbf16>, vector<36x16xbf16>, vector<512x16xf32> -> vector<512x16xf32>
    %c0_3 = arith.constant 0 : index
    %c0_4 = arith.constant 0 : index
    %3 = vector.load %arg3[%c0_3, %c0_4] : memref<16x128xf32, #tpu.memory_space<vmem>>, vector<16x128xf32>
    %cst_5 = arith.constant dense<0.000000e+00> : vector<512x128xf32>
    %4 = tpu.matmul %2, %3, %cst_5 {dimension_numbers = #tpu.dot_dimension_numbers<[1], [0], [0], [1], [0, 0, 1, 1], [], []>} : vector<512x16xf32>, vector<16x128xf32>, vector<512x128xf32> -> vector<512x128xf32>
    %c0_6 = arith.constant 0 : index
    %c0_7 = arith.constant 0 : index
    %5 = vector.load %arg4[%c0_6, %c0_7] : memref<1x128xf32, #tpu.memory_space<vmem>>, vector<1x128xf32>
    %6 = vector.broadcast %5 : vector<1x128xf32> to vector<512x128xf32>
    %7 = arith.addf %4, %6 : vector<512x128xf32>
    %c0_8 = arith.constant 0 : index
    %c0_9 = arith.constant 0 : index
    %8 = vector.load %arg5[%c0_8, %c0_9] : memref<512x128xf32, #tpu.memory_space<vmem>>, vector<512x128xf32>
    tpu.vector_store %arg5[%c0_8, %c0_9], %7 {strides = array<i32>} : memref<512x128xf32, #tpu.memory_space<vmem>>, vector<512x128xf32>,
    return
  }
  func.func @transform_0(%arg0: i32) -> (i32, i32) {
    %c0_i32 = arith.constant 0 : i32
    %c0_i32_0 = arith.constant 0 : i32
    return %arg0, %c0_i32 : i32, i32
  }
  func.func @transform_1(%arg0: i32) -> (i32, i32) {
    %c0_i32 = arith.constant 0 : i32
    %c0_i32_0 = arith.constant 0 : i32
    %c0_i32_1 = arith.constant 0 : i32
    return %c0_i32, %c0_i32_0 : i32, i32
  }
  func.func @transform_2(%arg0: i32) -> (i32, i32) {
    %c0_i32 = arith.constant 0 : i32
    %c0_i32_0 = arith.constant 0 : i32
    %c0_i32_1 = arith.constant 0 : i32
    return %c0_i32, %c0_i32_0 : i32, i32
  }
  func.func @transform_3(%arg0: i32) -> (i32, i32) {
    %c0_i32 = arith.constant 0 : i32
    %c0_i32_0 = arith.constant 0 : i32
    %c0_i32_1 = arith.constant 0 : i32
    return %c0_i32, %c0_i32_0 : i32, i32
  }
  func.func @transform_4(%arg0: i32) -> (i32, i32) {
    %c0_i32 = arith.constant 0 : i32
    %c0_i32_0 = arith.constant 0 : i32
    return %arg0, %c0_i32 : i32, i32
  }
}

</mosaic_0001>

<llo_original>
// kernel: custom-call.33
$region0: #{custom-call.33}
  %s0 = inlined_call_operand.vmem [shape: f32[16,8], index: 0, kind: input, shape index: {}]
  %s1 = inlined_call_operand.vmem [shape: f32[16,8], index: 1, kind: output, shape index: {0}]
  %s2 = inlined_call_operand.vmem [shape: f32[8], index: 2, kind: output, shape index: {1}]
  %3 = xla_tuple %s1, %s2
  $region1: #{custom-call.33} parent=0
    #allocation0 [shape = 'u8[8192]{0}', space=vmem, size = 0x2000, scoped, tag = 'operand span for operand 0']
    #allocation1 [shape = 'u8[8192]{0}', space=vmem, size = 0x2000, scoped, tag = 'operand span for operand 1']
    #allocation2 [shape = 'u8[4096]{0}', space=vmem, size = 0x1000, scoped, tag = 'operand span for operand 2']
    #allocation3 [shape = 'u8[512]{0}', space=vmem, size = 0x400, scoped, tag = 'packed  for operand 2']
    #allocation4 [shape = 'f32[16,128]{1,0}', space=vmem, size = 0x2000, scoped, tag = 'scratch for Householder reflectors']
    // Predicated region
    $region2: #{custom-call.33} parent=1 // pred_check
      _
    $region3: #{custom-call.33} parent=1 // pred_check_branch
      %5 = sbr.rel (0) target = $region5
    $region4: #{custom-call.33} parent=1 // pred_region
      // Predicated region
      $region6: #{custom-call.33} parent=4 // pred_check
        _
      $region7: #{custom-call.33} parent=4 // pred_check_branch
        %7 = sbr.rel (0) target = $region9
      $region8: #{custom-call.33} parent=4 // pred_region
        // Predicated region
        $region21: #{custom-call.33} parent=8 // pred_check
          _
        $region22: #{custom-call.33} parent=8 // pred_check_branch
          %25 = sbr.rel (0) target = $region24
        $region23: #{custom-call.33} parent=8 // pred_region
          loop: start=0, step=1, limit=1
          $region25: #{custom-call.33} parent=23 // loop_pre_header
            _
          $region26: #{custom-call.33} parent=23 // loop_header
            %s27 = sphi 0, %s31
            %p28 = scmp.ge.s32.totalorder %s27, 1
            %s32 = sphi %s0, %s0
            %s33 = sphi [#allocation0], [#allocation0]
          $region27: #{custom-call.33} parent=23 // loop_header_branch
            %30 = sbr.rel (%p28) target = $region31
          $region28: #{custom-call.33} parent=23 // loop_body
            %v34 = vld [vmem:[%s32] sm:$0xff]
            %35 = vst [vmem:[%s33] sm:$0xff] %v34
            %v36 = vld [vmem:[%s32 + $0x8] sm:$0xff]
            %37 = vst [vmem:[%s33 + $0x8] sm:$0xff] %v36
          $region29: #{custom-call.33} parent=23 // loop_footer
            %s31 = sadd.s32 1, %s27
          $region30: #{custom-call.33} parent=23 // loop_footer_branch
            %26 = sbr.rel target = $region26
          $region31: #{custom-call.33} parent=23 // loop_exit
            _
        $region24: #{custom-call.33} parent=8 // pred_fallthru
          _
        // Predicated region
        $region32: #{custom-call.33} parent=8 // pred_check
          _
        $region33: #{custom-call.33} parent=8 // pred_check_branch
          %39 = sbr.rel target = $region35
        $region34: #{custom-call.33} parent=8 // pred_region
          _
        $region35: #{custom-call.33} parent=8 // pred_fallthru
          _
      $region9: #{custom-call.33} parent=4 // pred_fallthru
        _
      // Predicated region
      $region10: #{custom-call.33} parent=4 // pred_check
        _
      $region11: #{custom-call.33} parent=4 // pred_check_branch
        %9 = sbr.rel target = $region13
      $region12: #{custom-call.33} parent=4 // pred_region
        %s11 = ssub.s32 256, 1
        loop: start=0, step=1, limit=1
        $region14: #{custom-call.33} parent=12 // loop_pre_header
          _
        $region15: #{custom-call.33} parent=12 // loop_header
          %s13 = sphi 0, %s17
          %p14 = scmp.ge.s32.totalorder %s13, 1
          %s18 = sphi %s0, %s0
          %s19 = sphi [#allocation0], [#allocation0]
        $region16: #{custom-call.33} parent=12 // loop_header_branch
          %16 = sbr.rel (%p14) target = $region20
        $region17: #{custom-call.33} parent=12 // loop_body
          %v20 = vld [vmem:[%s18] sm:%s11]
          %21 = vst [vmem:[%s19] sm:%s11] %v20
          %v22 = vld [vmem:[%s18 + $0x8] sm:%s11]
          %23 = vst [vmem:[%s19 + $0x8] sm:%s11] %v22
        $region18: #{custom-call.33} parent=12 // loop_footer
          %s17 = sadd.s32 1, %s13
        $region19: #{custom-call.33} parent=12 // loop_footer_branch
          %12 = sbr.rel target = $region15
        $region20: #{custom-call.33} parent=12 // loop_exit
          _
      $region13: #{custom-call.33} parent=4 // pred_fallthru
        _
    $region5: #{custom-call.33} parent=1 // pred_fallthru
      _
    %40 = vnop
    %v41 = vld [vmem:[#allocation0] sm:$0xff]
    %42 = vst [vmem:[#allocation1] sm:$0xff] %v41
    %s43 = scalar_lea.vmem [#allocation1], 8
    %s44 = scalar_lea.vmem [#allocation0], 8
    %v45 = vld [vmem:[%s44] sm:$0xff]
    %46 = vst [vmem:[%s43] sm:$0xff] %v45
    %47 = vst [vmem:[#allocation2] sm:$0x1] 0.0
    loop: start=0, step=1, limit=8
    $region36: #{custom-call.33} parent=1 // loop_pre_header
      _
    $region37: #{custom-call.33} parent=1 // loop_header
      %s49 = sphi 0, %s53
      %p50 = scmp.ge.s32.totalorder %s49, 8
    $region38: #{custom-call.33} parent=1 // loop_header_branch
      %52 = sbr.rel (%p50) target = $region42
    $region39: #{custom-call.33} parent=1 // loop_body
      %v54 = vld [vmem:[#allocation1] sm:$0xff]
      %v55 = vlaneseq
      %v56 = vshrl.u32 %v55, 7
      %v58 = vstv %s49
      %vm59 = vcmp.gt.s32.totalorder %v56, %v58
      %v60 = vsel %vm59, %v54, 0.0
      %v61 = vmul.f32 %v60, %v60
      %s62 = scalar_lea.vmem [#allocation1], 8
      %v63 = vld [vmem:[%s62] sm:$0xff]
      %v64 = vlaneseq
      %v65 = vshrl.u32 %v64, 7
      %v66 = vadd.s32 %v65, 8
      %v67 = vstv %s49
      %vm68 = vcmp.gt.s32.totalorder %v66, %v67
      %vm69 = vcmp.lt.s32.totalorder %v66, 16
      %vm70 = vmand %vm68, %vm69
      %v71 = vsel %vm70, %v63, 0.0
      %v72 = vmul.f32 %v71, %v71
      %v73 = vadd.f32 %v61, %v72
      %v74 = vrot.slane %v73, 4
      %v75 = vadd.f32 %v73, %v74
      %v76 = vrot.slane %v75, 2
      %v77 = vadd.f32 %v75, %v76
      %v78 = vrot.slane %v77, 1
      %v79 = vadd.f32 %v77, %v78
      %v80 = vrsqrt.pop %v79
      %v81 = vmul.f32 %v79, %v80
      %vm82 = vcmp.eq.f32.partialorder %v79, inf
      %v83 = vsel %vm82, %v79, %v81
      %vm84 = vcmp.eq.f32.partialorder %v79, 0.0
      %v85 = vand.u32 %v79, 2147483648
      %v86 = vsel %vm84, %v85, %v83
      %vm87 = vcmp.eq.f32.partialorder %v79, 0.0
      %s88 = sshrl.u32 %s49, 3
      %s89 = sand.u32 %s49, 7
      %s90 = smul.addr %s88, 8
      %s91 = sadd.s32 %s89, %s90
      %s92 = scalar_lea.vmem [#allocation1], %s91
      %v93 = vld [vmem:[%s92] ss:$0 sm:$0xff]
      %v94 = vand.u32 2147483647, %v93
      %v95 = vmax.f32 %v94, 0.0
      %v96 = vand.u32 2147483647, %v86
      %v97 = vmax.f32 %v95, %v96
      %v98 = vrcp.pop %v97
      %v99 = vmul.f32 %v94, %v98
      %v100 = vmul.f32 %v99, %v99
      %v101 = vrcp.pop %v97
      %v102 = vmul.f32 0.0, %v101
      %v103 = vmul.f32 %v102, %v102
      %v104 = vadd.f32 %v100, %v103
      %v105 = vrcp.pop %v97
      %v106 = vmul.f32 %v96, %v105
      %v107 = vmul.f32 %v106, %v106
      %v108 = vadd.f32 %v104, %v107
      %vm109 = vcmp.eq.f32.partialorder %v97, 0.0
      %v110 = vrsqrt.pop %v108
      %v111 = vmul.f32 %v108, %v110
      %vm112 = vcmp.eq.f32.partialorder %v108, inf
      %v113 = vsel %vm112, %v108, %v111
      %vm114 = vcmp.eq.f32.partialorder %v108, 0.0
      %v115 = vand.u32 %v108, 2147483648
      %v116 = vsel %vm114, %v115, %v113
      %v117 = vmul.f32 %v97, %v116
      %v118 = vsel %vm109, 0.0, %v117
      %vm119 = vcmp.lt.f32.partialorder %v93, 0.0
      %v120 = vxor.u32 %v118, 2147483648
      %v121 = vsel %vm119, %v118, %v120
      %v122 = vsub.f32 %v121, %v93
      %v123 = vrcp.pop %v121
      %v124 = vmul.f32 %v122, %v123
      %v125 = vsel %vm87, %v93, %v121
      %v126 = vsel %vm87, 0.0, %v124
      %v127 = vsub.f32 %v93, %v125
      %s128 = smov [#allocation1]
      %v129 = vlaneseq
      %v130 = vshrl.u32 %v129, 7
      %v131 = vmov %v130
      %v132 = vld [vmem:[%s128] sm:$0xff]
      %v134 = vstv %s49
      %vm135 = vcmp.gt.s32.totalorder %v131, %v134
      %v136 = vsel %vm135, %v132, 0.0
      %v137 = vrcp.pop %v127
      %v138 = vmul.f32 %v136, %v137
      %v139 = vsel %vm87, 0.0, %v138
      %v140 = vstv %s49
      %v141 = vlaneseq
      %v142 = vand.u32 %v141, 127
      %vm143 = vcmp.eq.s32.totalorder %v142, %v140
      %v144 = vsel %vm143, %v139, 0.0
      %145 = vadd.xlane.f32.xlu0 %v144
      %v146 = vpop.xlane.xlu0 %145
      %147 = vst [vmem:[#allocation4] sm:$0xff] %v146
      %s148 = scalar_lea.vmem %s128, 8
      %v149 = vld [vmem:[%s148] sm:$0xff]
      %v150 = vadd.s32 %v131, 8
      %v151 = vstv %s49
      %vm152 = vcmp.gt.s32.totalorder %v150, %v151
      %vm153 = vcmp.lt.s32.totalorder %v150, 16
      %vm154 = vmand %vm152, %vm153
      %v155 = vsel %vm154, %v149, 0.0
      %v156 = vrcp.pop %v127
      %v157 = vmul.f32 %v155, %v156
      %v158 = vsel %vm87, 0.0, %v157
      %v159 = vstv %s49
      %v160 = vlaneseq
      %v161 = vand.u32 %v160, 127
      %vm162 = vcmp.eq.s32.totalorder %v161, %v159
      %v163 = vsel %vm162, %v158, 0.0
      %164 = vadd.xlane.f32.xlu0 %v163
      %v165 = vpop.xlane.xlu0 %164
      %s166 = scalar_lea.vmem [#allocation4], 8
      %167 = vst [vmem:[%s166] sm:$0xff] %v165
      %s168 = scalar_lea.vmem [#allocation4], %s49
      %169 = vst [vmem:[%s168] sm:$0x1] 1.0
      %v170 = vstv %s49
      %v171 = vlaneseq
      %v172 = vand.u32 %v171, 127
      %vm173 = vcmp.eq.s32.totalorder %v172, %v170
      %v174 = vsel %vm173, %v126, 0.0
      %175 = vadd.xlane.f32.xlu0 %v174
      %v176 = vpop.xlane.xlu0 %175
      %v177 = vstv %s49
      %v178 = vlaneseq
      %v179 = vand.u32 %v178, 127
      %vm180 = vcmp.eq.s32.totalorder %v179, %v177
      %v181 = vld [vmem:[#allocation2] ss:$0 sm:$0xff]
      %v182 = vsel %vm180, %v176, %v181
      %183 = vst [vmem:[#allocation2] sm:$0x1] %v182
      %s184 = smov [#allocation1]
      %s185 = smov [#allocation4]
      %v186 = vlaneseq
      %v187 = vshrl.u32 %v186, 7
      %v188 = vmov %v187
      %v190 = vld [vmem:[%s185] sm:$0xff]
      %v191 = vld [vmem:[%s184] sm:$0xff]
      %v192 = vmul.f32 %v190, %v191
      %v193 = vadd.s32 %v188, 8
      %s194 = scalar_lea.vmem %s185, 8
      %v195 = vld [vmem:[%s194] sm:$0xff]
      %s196 = scalar_lea.vmem %s184, 8
      %v197 = vld [vmem:[%s196] sm:$0xff]
      %v198 = vmul.f32 %v195, %v197
      %vm199 = vcmp.lt.s32.totalorder %v193, 16
      %v200 = vsel %vm199, %v198, 0.0
      %v201 = vadd.f32 %v192, %v200
      %v202 = vrot.slane %v201, 4
      %v203 = vadd.f32 %v201, %v202
      %v204 = vrot.slane %v203, 2
      %v205 = vadd.f32 %v203, %v204
      %v206 = vrot.slane %v205, 1
      %v207 = vadd.f32 %v205, %v206
      %s208 = smov %s184
      %s209 = smov %s185
      %v210 = vlaneseq
      %v211 = vshrl.u32 %v210, 7
      %v212 = vmov %v211
      %v213 = vmul.f32 %v207, %v176
      %v215 = vlaneseq
      %v216 = vand.u32 %v215, 127
      %v217 = vld [vmem:[%s209] sm:$0xff]
      %v218 = vmul.f32 %v217, %v213
      %v219 = vld [vmem:[%s208] sm:$0xff]
      %v220 = vstv %s49
      %vm221 = vcmp.gt.s32.totalorder %v216, %v220
      %v222 = vsub.f32 %v219, %v218
      %v223 = vsel %vm221, %v222, %v219
      %v224 = vstv %s49
      %v225 = vlaneseq
      %v226 = vand.u32 %v225, 127
      %vm227 = vcmp.eq.s32.totalorder %v226, %v224
      %v228 = vstv %s49
      %vm229 = vcmp.ge.s32.totalorder %v212, %v228
      %vm230 = vmand %vm227, %vm229
      %v231 = vsel %vm230, %v217, %v223
      %232 = vst [vmem:[%s208] sm:$0xff] %v231
      %v233 = vadd.s32 %v212, 8
      %v234 = vlaneseq
      %v235 = vand.u32 %v234, 127
      %s236 = scalar_lea.vmem %s209, 8
      %v237 = vld [vmem:[%s236] sm:$0xff]
      %v238 = vmul.f32 %v237, %v213
      %s239 = scalar_lea.vmem %s208, 8
      %v240 = vld [vmem:[%s239] sm:$0xff]
      %v241 = vstv %s49
      %vm242 = vcmp.gt.s32.totalorder %v235, %v241
      %v243 = vsub.f32 %v240, %v238
      %v244 = vsel %vm242, %v243, %v240
      %v245 = vstv %s49
      %v246 = vlaneseq
      %v247 = vand.u32 %v246, 127
      %vm248 = vcmp.eq.s32.totalorder %v247, %v245
      %v249 = vstv %s49
      %vm250 = vcmp.ge.s32.totalorder %v233, %v249
      %vm251 = vmand %vm248, %vm250
      %v252 = vsel %vm251, %v237, %v244
      %253 = vst [vmem:[%s239] sm:$0xff] %v252
      %s254 = scalar_lea.vmem %s208, %s49
      %v255 = vld [vmem:[%s254] ss:$0 sm:$0xff]
      %v256 = vstv %s49
      %v257 = vlaneseq
      %v258 = vand.u32 %v257, 127
      %vm259 = vcmp.eq.s32.totalorder %v258, %v256
      %v260 = vsel %vm259, %v125, %v255
      %261 = vst [vmem:[%s254] sm:$0x1] %v260
    $region40: #{custom-call.33} parent=1 // loop_footer
      %s53 = sadd.s32 1, %s49
    $region41: #{custom-call.33} parent=1 // loop_footer_branch
      %48 = sbr.rel target = $region37
    $region42: #{custom-call.33} parent=1 // loop_exit
      _
    %s263 = sshll.u32 1, 1
    %s264 = ssub.s32 %s263, 1
    %v266 = vld [vmem:[#allocation2] sm:%s264]
    %s267 = sshll.u32 1, 1
    %s268 = ssub.s32 %s267, 1
    %269 = vst [vmem:[#allocation3] sm:%s268] %v266
    // Predicated region
    $region43: #{custom-call.33} parent=1 // pred_check
      _
    $region44: #{custom-call.33} parent=1 // pred_check_branch
      %271 = sbr.rel (0) target = $region46
    $region45: #{custom-call.33} parent=1 // pred_region
      // Predicated region
      $region47: #{custom-call.33} parent=45 // pred_check
        _
      $region48: #{custom-call.33} parent=45 // pred_check_branch
        %273 = sbr.rel (0) target = $region50
      $region49: #{custom-call.33} parent=45 // pred_region
        // Predicated region
        $region62: #{custom-call.33} parent=49 // pred_check
          _
        $region63: #{custom-call.33} parent=49 // pred_check_branch
          %291 = sbr.rel (0) target = $region65
        $region64: #{custom-call.33} parent=49 // pred_region
          loop: start=0, step=1, limit=1
          $region66: #{custom-call.33} parent=64 // loop_pre_header
            _
          $region67: #{custom-call.33} parent=64 // loop_header
            %s293 = sphi 0, %s297
            %p294 = scmp.ge.s32.totalorder %s293, 1
            %s298 = sphi [#allocation1], [#allocation1]
            %s299 = sphi %s1, %s1
          $region68: #{custom-call.33} parent=64 // loop_header_branch
            %296 = sbr.rel (%p294) target = $region72
          $region69: #{custom-call.33} parent=64 // loop_body
            %v300 = vld [vmem:[%s298] sm:$0xff]
            %301 = vst [vmem:[%s299] sm:$0xff] %v300
            %v302 = vld [vmem:[%s298 + $0x8] sm:$0xff]
            %303 = vst [vmem:[%s299 + $0x8] sm:$0xff] %v302
          $region70: #{custom-call.33} parent=64 // loop_footer
            %s297 = sadd.s32 1, %s293
          $region71: #{custom-call.33} parent=64 // loop_footer_branch
            %292 = sbr.rel target = $region67
          $region72: #{custom-call.33} parent=64 // loop_exit
            _
        $region65: #{custom-call.33} parent=49 // pred_fallthru
          _
        // Predicated region
        $region73: #{custom-call.33} parent=49 // pred_check
          _
        $region74: #{custom-call.33} parent=49 // pred_check_branch
          %305 = sbr.rel target = $region76
        $region75: #{custom-call.33} parent=49 // pred_region
          _
        $region76: #{custom-call.33} parent=49 // pred_fallthru
          _
      $region50: #{custom-call.33} parent=45 // pred_fallthru
        _
      // Predicated region
      $region51: #{custom-call.33} parent=45 // pred_check
        _
      $region52: #{custom-call.33} parent=45 // pred_check_branch
        %275 = sbr.rel target = $region54
      $region53: #{custom-call.33} parent=45 // pred_region
        %s277 = ssub.s32 256, 1
        loop: start=0, step=1, limit=1
        $region55: #{custom-call.33} parent=53 // loop_pre_header
          _
        $region56: #{custom-call.33} parent=53 // loop_header
          %s279 = sphi 0, %s283
          %p280 = scmp.ge.s32.totalorder %s279, 1
          %s284 = sphi [#allocation1], [#allocation1]
          %s285 = sphi %s1, %s1
        $region57: #{custom-call.33} parent=53 // loop_header_branch
          %282 = sbr.rel (%p280) target = $region61
        $region58: #{custom-call.33} parent=53 // loop_body
          %v286 = vld [vmem:[%s284] sm:%s277]
          %287 = vst [vmem:[%s285] sm:%s277] %v286
          %v288 = vld [vmem:[%s284 + $0x8] sm:%s277]
          %289 = vst [vmem:[%s285 + $0x8] sm:%s277] %v288
        $region59: #{custom-call.33} parent=53 // loop_footer
          %s283 = sadd.s32 1, %s279
        $region60: #{custom-call.33} parent=53 // loop_footer_branch
          %278 = sbr.rel target = $region56
        $region61: #{custom-call.33} parent=53 // loop_exit
          _
      $region54: #{custom-call.33} parent=45 // pred_fallthru
        _
    $region46: #{custom-call.33} parent=1 // pred_fallthru
      _
    %306 = vnop
    // Predicated region
    $region77: #{custom-call.33} parent=1 // pred_check
      _
    $region78: #{custom-call.33} parent=1 // pred_check_branch
      %308 = sbr.rel (0) target = $region80
    $region79: #{custom-call.33} parent=1 // pred_region
      // Predicated region
      $region81: #{custom-call.33} parent=79 // pred_check
        _
      $region82: #{custom-call.33} parent=79 // pred_check_branch
        %310 = sbr.rel (0) target = $region84
      $region83: #{custom-call.33} parent=79 // pred_region
        // Predicated region
        $region85: #{custom-call.33} parent=83 // pred_check
          _
        $region86: #{custom-call.33} parent=83 // pred_check_branch
          %312 = sbr.rel target = $region88
        $region87: #{custom-call.33} parent=83 // pred_region
          // Predicated region
          $region100: #{custom-call.33} parent=87 // pred_check
            _
          $region101: #{custom-call.33} parent=87 // pred_check_branch
            %328 = sbr.rel (0) target = $region103
          $region102: #{custom-call.33} parent=87 // pred_region
            %s330 = ssub.s32 2, 1
            loop: start=0, step=1, limit=1
            $region104: #{custom-call.33} parent=102 // loop_pre_header
              _
            $region105: #{custom-call.33} parent=102 // loop_header
              %s332 = sphi 0, %s336
              %p333 = scmp.ge.s32.totalorder %s332, 1
              %s337 = sphi [#allocation3], [#allocation3]
              %s338 = sphi %s2, %s2
            $region106: #{custom-call.33} parent=102 // loop_header_branch
              %335 = sbr.rel (%p333) target = $region110
            $region107: #{custom-call.33} parent=102 // loop_body
              %v339 = vld [vmem:[%s337] sm:%s330]
              %340 = vst [vmem:[%s338] sm:%s330] %v339
            $region108: #{custom-call.33} parent=102 // loop_footer
              %s336 = sadd.s32 1, %s332
            $region109: #{custom-call.33} parent=102 // loop_footer_branch
              %331 = sbr.rel target = $region105
            $region110: #{custom-call.33} parent=102 // loop_exit
              _
          $region103: #{custom-call.33} parent=87 // pred_fallthru
            _
        $region88: #{custom-call.33} parent=83 // pred_fallthru
          _
        // Predicated region
        $region89: #{custom-call.33} parent=83 // pred_check
          _
        $region90: #{custom-call.33} parent=83 // pred_check_branch
          %314 = sbr.rel (0) target = $region92
        $region91: #{custom-call.33} parent=83 // pred_region
          %s316 = ssub.s32 2, 1
          loop: start=0, step=1, limit=1
          $region93: #{custom-call.33} parent=91 // loop_pre_header
            _
          $region94: #{custom-call.33} parent=91 // loop_header
            %s318 = sphi 0, %s322
            %p319 = scmp.ge.s32.totalorder %s318, 1
            %s323 = sphi [#allocation3], [#allocation3]
            %s324 = sphi %s2, %s2
          $region95: #{custom-call.33} parent=91 // loop_header_branch
            %321 = sbr.rel (%p319) target = $region99
          $region96: #{custom-call.33} parent=91 // loop_body
            %v325 = vld [vmem:[%s323] sm:%s316]
            %326 = vst [vmem:[%s324] sm:%s316] %v325
          $region97: #{custom-call.33} parent=91 // loop_footer
            %s322 = sadd.s32 1, %s318
          $region98: #{custom-call.33} parent=91 // loop_footer_branch
            %317 = sbr.rel target = $region94
          $region99: #{custom-call.33} parent=91 // loop_exit
            _
        $region92: #{custom-call.33} parent=83 // pred_fallthru
          _
      $region84: #{custom-call.33} parent=79 // pred_fallthru
        _
      %341 = vnop
    $region80: #{custom-call.33} parent=1 // pred_fallthru
      _
    // Predicated region
    $region111: #{custom-call.33} parent=1 // pred_check
      _
    $region112: #{custom-call.33} parent=1 // pred_check_branch
      %343 = sbr.rel (0) target = $region114
    $region113: #{custom-call.33} parent=1 // pred_region
      _
    $region114: #{custom-call.33} parent=1 // pred_fallthru
      _

// kernel: custom-call.34
$region0: #{custom-call.34}
  %s0 = inlined_call_operand.vmem [shape: f32[8,8], index: 0, kind: input, shape index: {}]
  %s1 = inlined_call_operand.vmem [shape: f32[8,8], index: 1, kind: output, shape index: {}]
  $region1: #{custom-call.34} parent=0
    #allocation0 [shape = 'u8[4096]{0}', space=vmem, size = 0x1000, scoped, tag = 'operand span for operand 0']
    #allocation1 [shape = 'u8[4096]{0}', space=vmem, size = 0x1000, scoped, tag = 'operand span for operand 1']
    %p3 = scmp.gt.s32.totalorder 8, 0
    // Predicated region
    $region2: #{custom-call.34} parent=1 // pred_check
      %p4 = pneg %p3
    $region3: #{custom-call.34} parent=1 // pred_check_branch
      %6 = sbr.rel (%p4) target = $region5
    $region4: #{custom-call.34} parent=1 // pred_region
      %s7 = sshra.s32 8, 3
      %p8 = scmp.gt.s32.totalorder %s7, 0
      // Predicated region
      $region6: #{custom-call.34} parent=4 // pred_check
        %p9 = pneg %p8
      $region7: #{custom-call.34} parent=4 // pred_check_branch
        %11 = sbr.rel (%p9) target = $region9
      $region8: #{custom-call.34} parent=4 // pred_region
        %s12 = ssub.s32 %s7, 1
        %s13 = smul.u32 %s12, 128
        %s14 = sshra.s32 %s13, 4
        %s15 = scalar_lea.vmem %s0, %s14
        %v16 = vld [vmem:[%s0] sm:$0xff]
        // While loop
        $region10: #{custom-call.34} parent=8 // loop_pre_header
          _
        $region11: #{custom-call.34} parent=8 // loop_header
          %s17 = sphi %s0, %s39
          %s18 = sphi [#allocation0], %s40
          %v19 = vphi %v16, %v41
          %s20 = ssub.s32 %s15, 64
          %p21 = scmp.gt.s32.totalorder %s17, %s20
        $region12: #{custom-call.34} parent=8 // loop_header_branch
          %23 = sbr.rel (%p21) target = $region16
        $region13: #{custom-call.34} parent=8 // loop_body
          %24 = vst [vmem:[%s18] sm:$0xff] %v19
          %v25 = vld [vmem:[%s17 + $0x8] sm:$0xff]
          %26 = vst [vmem:[%s18 + $0x8] sm:$0xff] %v25
          %v27 = vld [vmem:[%s17 + $0x10] sm:$0xff]
          %28 = vst [vmem:[%s18 + $0x10] sm:$0xff] %v27
          %v29 = vld [vmem:[%s17 + $0x18] sm:$0xff]
          %30 = vst [vmem:[%s18 + $0x18] sm:$0xff] %v29
          %v31 = vld [vmem:[%s17 + $0x20] sm:$0xff]
          %32 = vst [vmem:[%s18 + $0x20] sm:$0xff] %v31
          %v33 = vld [vmem:[%s17 + $0x28] sm:$0xff]
          %34 = vst [vmem:[%s18 + $0x28] sm:$0xff] %v33
          %v35 = vld [vmem:[%s17 + $0x30] sm:$0xff]
          %36 = vst [vmem:[%s18 + $0x30] sm:$0xff] %v35
          %v37 = vld [vmem:[%s17 + $0x38] sm:$0xff]
          %38 = vst [vmem:[%s18 + $0x38] sm:$0xff] %v37
        $region14: #{custom-call.34} parent=8 // loop_footer
          %s39 = scalar_lea.vmem %s17, 64
          %s40 = scalar_lea.vmem %s18, 64
          %v41 = vld [vmem:[%s17 + $0x40] sm:$0xff]
        $region15: #{custom-call.34} parent=8 // loop_footer_branch
          %42 = sbr.rel target = $region11
        $region16: #{custom-call.34} parent=8 // loop_exit
          _
        // While loop
        $region17: #{custom-call.34} parent=8 // loop_pre_header
          _
        $region18: #{custom-call.34} parent=8 // loop_header
          %s43 = sphi %s17, %s51
          %s44 = sphi %s18, %s52
          %v45 = vphi %v19, %v45
          %p46 = scmp.gt.s32.totalorder %s43, %s15
        $region19: #{custom-call.34} parent=8 // loop_header_branch
          %48 = sbr.rel (%p46) target = $region23
        $region20: #{custom-call.34} parent=8 // loop_body
          %v49 = vld [vmem:[%s43] sm:$0xff]
          %50 = vst [vmem:[%s44] sm:$0xff] %v49
        $region21: #{custom-call.34} parent=8 // loop_footer
          %s51 = scalar_lea.vmem %s43, 8
          %s52 = scalar_lea.vmem %s44, 8
        $region22: #{custom-call.34} parent=8 // loop_footer_branch
          %53 = sbr.rel target = $region18
        $region23: #{custom-call.34} parent=8 // loop_exit
          _
      $region9: #{custom-call.34} parent=4 // pred_fallthru
        _
      %s54 = sand.u32 8, 7
      %s55 = sshll.u32 1, %s54
      %s56 = ssub.s32 %s55, 1
      %s57 = smul.u32 %s7, 128
      %s58 = sshra.s32 %s57, 4
      %s59 = scalar_lea.vmem [#allocation0], %s58
      %s60 = smul.u32 %s7, 128
      %s61 = sshra.s32 %s60, 4
      %s62 = scalar_lea.vmem %s0, %s61
      %v63 = vld [vmem:[%s62] sm:%s56]
      %64 = vst [vmem:[%s59] sm:%s56] %v63
    $region5: #{custom-call.34} parent=1 // pred_fallthru
      _
    %v65 = vlaneseq
    %v66 = vand.u32 %v65, 127
    %v67 = vlaneseq
    %v68 = vshrl.u32 %v67, 7
    %vm70 = vcmp.eq.s32.totalorder %v66, %v68
    %v71 = vld [vmem:[#allocation0] sm:$0xff]
    %v72 = vlaneseq
    %v73 = vand.u32 %v72, 127
    %vm74 = vcmp.eq.s32.totalorder %v73, 0
    %v75 = vsel %vm74, %v71, 1.0
    %v76 = vsel %vm70, %v75, 0.0
    %s77 = scalar_lea.vmem [#allocation0], 1
    %v78 = vld [vmem:[%s77] ss:$0 sm:$0xff]
    %vm79 = vcmask 64512
    %v80 = vsel %vm79, %v78, 0.0
    %v81 = vlaneseq
    %v82 = vand.u32 %v81, 127
    %vm83 = vcmp.eq.s32.totalorder %v82, 1
    %v84 = vmul.f32 %v80, %v76
    %85 = vadd.xlane.f32.xlu0 %v84
    %v86 = vpop.xlane.xlu0 %85
    %v87 = vsel %vm83, %v86, %v76
    %s88 = scalar_lea.vmem [#allocation0], 2
    %v89 = vld [vmem:[%s88] ss:$0 sm:$0xff]
    %vm90 = vcmask 64512
    %v91 = vsel %vm90, %v89, 0.0
    %v92 = vlaneseq
    %v93 = vand.u32 %v92, 127
    %vm94 = vcmp.eq.s32.totalorder %v93, 2
    %v95 = vmul.f32 %v91, %v87
    %96 = vadd.xlane.f32.xlu0 %v95
    %v97 = vpop.xlane.xlu0 %96
    %v98 = vsel %vm94, %v97, %v87
    %s99 = scalar_lea.vmem [#allocation0], 3
    %v100 = vld [vmem:[%s99] ss:$0 sm:$0xff]
    %vm101 = vcmask 64512
    %v102 = vsel %vm101, %v100, 0.0
    %v103 = vlaneseq
    %v104 = vand.u32 %v103, 127
    %vm105 = vcmp.eq.s32.totalorder %v104, 3
    %v106 = vmul.f32 %v102, %v98
    %107 = vadd.xlane.f32.xlu0 %v106
    %v108 = vpop.xlane.xlu0 %107
    %v109 = vsel %vm105, %v108, %v98
    %s110 = scalar_lea.vmem [#allocation0], 4
    %v111 = vld [vmem:[%s110] ss:$0 sm:$0xff]
    %vm112 = vcmask 64512
    %v113 = vsel %vm112, %v111, 0.0
    %v114 = vlaneseq
    %v115 = vand.u32 %v114, 127
    %vm116 = vcmp.eq.s32.totalorder %v115, 4
    %v117 = vmul.f32 %v113, %v109
    %118 = vadd.xlane.f32.xlu0 %v117
    %v119 = vpop.xlane.xlu0 %118
    %v120 = vsel %vm116, %v119, %v109
    %s121 = scalar_lea.vmem [#allocation0], 5
    %v122 = vld [vmem:[%s121] ss:$0 sm:$0xff]
    %vm123 = vcmask 64512
    %v124 = vsel %vm123, %v122, 0.0
    %v125 = vlaneseq
    %v126 = vand.u32 %v125, 127
    %vm127 = vcmp.eq.s32.totalorder %v126, 5
    %v128 = vmul.f32 %v124, %v120
    %129 = vadd.xlane.f32.xlu0 %v128
    %v130 = vpop.xlane.xlu0 %129
    %v131 = vsel %vm127, %v130, %v120
    %s132 = scalar_lea.vmem [#allocation0], 6
    %v133 = vld [vmem:[%s132] ss:$0 sm:$0xff]
    %vm134 = vcmask 64512
    %v135 = vsel %vm134, %v133, 0.0
    %v136 = vlaneseq
    %v137 = vand.u32 %v136, 127
    %vm138 = vcmp.eq.s32.totalorder %v137, 6
    %v139 = vmul.f32 %v135, %v131
    %140 = vadd.xlane.f32.xlu0 %v139
    %v141 = vpop.xlane.xlu0 %140
    %v142 = vsel %vm138, %v141, %v131
    %s143 = scalar_lea.vmem [#allocation0], 7
    %v144 = vld [vmem:[%s143] ss:$0 sm:$0xff]
    %vm145 = vcmask 64512
    %v146 = vsel %vm145, %v144, 0.0
    %v147 = vlaneseq
    %v148 = vand.u32 %v147, 127
    %vm149 = vcmp.eq.s32.totalorder %v148, 7
    %v150 = vmul.f32 %v146, %v142
    %151 = vadd.xlane.f32.xlu0 %v150
    %v152 = vpop.xlane.xlu0 %151
    %v153 = vsel %vm149, %v152, %v142
    %154 = vst [vmem:[#allocation1] sm:$0xff] %v153
    %p156 = scmp.gt.s32.totalorder 8, 0
    // Predicated region
    $region24: #{custom-call.34} parent=1 // pred_check
      %p157 = pneg %p156
    $region25: #{custom-call.34} parent=1 // pred_check_branch
      %159 = sbr.rel (%p157) target = $region27
    $region26: #{custom-call.34} parent=1 // pred_region
      %s160 = sshra.s32 8, 3
      %p161 = scmp.gt.s32.totalorder %s160, 0
      // Predicated region
      $region28: #{custom-call.34} parent=26 // pred_check
        %p162 = pneg %p161
      $region29: #{custom-call.34} parent=26 // pred_check_branch
        %164 = sbr.rel (%p162) target = $region31
      $region30: #{custom-call.34} parent=26 // pred_region
        %s165 = ssub.s32 %s160, 1
        %s166 = smul.u32 %s165, 128
        %s167 = sshra.s32 %s166, 4
        %s168 = scalar_lea.vmem [#allocation1], %s167
        %v169 = vld [vmem:[#allocation1] sm:$0xff]
        // While loop
        $region32: #{custom-call.34} parent=30 // loop_pre_header
          _
        $region33: #{custom-call.34} parent=30 // loop_header
          %s170 = sphi [#allocation1], %s192
          %s171 = sphi %s1, %s193
          %v172 = vphi %v169, %v194
          %s173 = ssub.s32 %s168, 64
          %p174 = scmp.gt.s32.totalorder %s170, %s173
        $region34: #{custom-call.34} parent=30 // loop_header_branch
          %176 = sbr.rel (%p174) target = $region38
        $region35: #{custom-call.34} parent=30 // loop_body
          %177 = vst [vmem:[%s171] sm:$0xff] %v172
          %v178 = vld [vmem:[%s170 + $0x8] sm:$0xff]
          %179 = vst [vmem:[%s171 + $0x8] sm:$0xff] %v178
          %v180 = vld [vmem:[%s170 + $0x10] sm:$0xff]
          %181 = vst [vmem:[%s171 + $0x10] sm:$0xff] %v180
          %v182 = vld [vmem:[%s170 + $0x18] sm:$0xff]
          %183 = vst [vmem:[%s171 + $0x18] sm:$0xff] %v182
          %v184 = vld [vmem:[%s170 + $0x20] sm:$0xff]
          %185 = vst [vmem:[%s171 + $0x20] sm:$0xff] %v184
          %v186 = vld [vmem:[%s170 + $0x28] sm:$0xff]
          %187 = vst [vmem:[%s171 + $0x28] sm:$0xff] %v186
          %v188 = vld [vmem:[%s170 + $0x30] sm:$0xff]
          %189 = vst [vmem:[%s171 + $0x30] sm:$0xff] %v188
          %v190 = vld [vmem:[%s170 + $0x38] sm:$0xff]
          %191 = vst [vmem:[%s171 + $0x38] sm:$0xff] %v190
        $region36: #{custom-call.34} parent=30 // loop_footer
          %s192 = scalar_lea.vmem %s170, 64
          %s193 = scalar_lea.vmem %s171, 64
          %v194 = vld [vmem:[%s170 + $0x40] sm:$0xff]
        $region37: #{custom-call.34} parent=30 // loop_footer_branch
          %195 = sbr.rel target = $region33
        $region38: #{custom-call.34} parent=30 // loop_exit
          _
        // While loop
        $region39: #{custom-call.34} parent=30 // loop_pre_header
          _
        $region40: #{custom-call.34} parent=30 // loop_header
          %s196 = sphi %s170, %s204
          %s197 = sphi %s171, %s205
          %v198 = vphi %v172, %v198
          %p199 = scmp.gt.s32.totalorder %s196, %s168
        $region41: #{custom-call.34} parent=30 // loop_header_branch
          %201 = sbr.rel (%p199) target = $region45
        $region42: #{custom-call.34} parent=30 // loop_body
          %v202 = vld [vmem:[%s196] sm:$0xff]
          %203 = vst [vmem:[%s197] sm:$0xff] %v202
        $region43: #{custom-call.34} parent=30 // loop_footer
          %s204 = scalar_lea.vmem %s196, 8
          %s205 = scalar_lea.vmem %s197, 8
        $region44: #{custom-call.34} parent=30 // loop_footer_branch
          %206 = sbr.rel target = $region40
        $region45: #{custom-call.34} parent=30 // loop_exit
          _
      $region31: #{custom-call.34} parent=26 // pred_fallthru
        _
      %s207 = sand.u32 8, 7
      %s208 = sshll.u32 1, %s207
      %s209 = ssub.s32 %s208, 1
      %s210 = smul.u32 %s160, 128
      %s211 = sshra.s32 %s210, 4
      %s212 = scalar_lea.vmem %s1, %s211
      %s213 = smul.u32 %s160, 128
      %s214 = sshra.s32 %s213, 4
      %s215 = scalar_lea.vmem [#allocation1], %s214
      %v216 = vld [vmem:[%s215] sm:%s209]
      %217 = vst [vmem:[%s212] sm:%s209] %v216
    $region27: #{custom-call.34} parent=1 // pred_fallthru
      _

// kernel: custom-call.53
$region0: #{custom-call.53}
  %s0 = inlined_call_operand.vmem [shape: f32[8,8], index: 0, kind: input, shape index: {}]
  %s1 = inlined_call_operand.vmem [shape: f32[8,8], index: 1, kind: output, shape index: {}]
  $region1: #{custom-call.53} parent=0
    #allocation0 [shape = 'u8[4096]{0}', space=vmem, size = 0x1000, scoped, tag = 'operand span for operand 0']
    #allocation1 [shape = 'u8[4096]{0}', space=vmem, size = 0x1000, scoped, tag = 'operand span for operand 1']
    // Predicated region
    $region2: #{custom-call.53} parent=1 // pred_check
      _
    $region3: #{custom-call.53} parent=1 // pred_check_branch
      %3 = sbr.rel (0) target = $region5
    $region4: #{custom-call.53} parent=1 // pred_region
      // Predicated region
      $region6: #{custom-call.53} parent=4 // pred_check
        _
      $region7: #{custom-call.53} parent=4 // pred_check_branch
        %5 = sbr.rel (0) target = $region9
      $region8: #{custom-call.53} parent=4 // pred_region
        // Predicated region
        $region21: #{custom-call.53} parent=8 // pred_check
          _
        $region22: #{custom-call.53} parent=8 // pred_check_branch
          %21 = sbr.rel (0) target = $region24
        $region23: #{custom-call.53} parent=8 // pred_region
          loop: start=0, step=1, limit=1
          $region25: #{custom-call.53} parent=23 // loop_pre_header
            _
          $region26: #{custom-call.53} parent=23 // loop_header
            %s23 = sphi 0, %s27
            %p24 = scmp.ge.s32.totalorder %s23, 1
            %s28 = sphi %s0, %s0
            %s29 = sphi [#allocation0], [#allocation0]
          $region27: #{custom-call.53} parent=23 // loop_header_branch
            %26 = sbr.rel (%p24) target = $region31
          $region28: #{custom-call.53} parent=23 // loop_body
            %v30 = vld [vmem:[%s28] sm:$0xff]
            %31 = vst [vmem:[%s29] sm:$0xff] %v30
          $region29: #{custom-call.53} parent=23 // loop_footer
            %s27 = sadd.s32 1, %s23
          $region30: #{custom-call.53} parent=23 // loop_footer_branch
            %22 = sbr.rel target = $region26
          $region31: #{custom-call.53} parent=23 // loop_exit
            _
        $region24: #{custom-call.53} parent=8 // pred_fallthru
          _
        // Predicated region
        $region32: #{custom-call.53} parent=8 // pred_check
          _
        $region33: #{custom-call.53} parent=8 // pred_check_branch
          %33 = sbr.rel target = $region35
        $region34: #{custom-call.53} parent=8 // pred_region
          _
        $region35: #{custom-call.53} parent=8 // pred_fallthru
          _
      $region9: #{custom-call.53} parent=4 // pred_fallthru
        _
      // Predicated region
      $region10: #{custom-call.53} parent=4 // pred_check
        _
      $region11: #{custom-call.53} parent=4 // pred_check_branch
        %7 = sbr.rel target = $region13
      $region12: #{custom-call.53} parent=4 // pred_region
        %s9 = ssub.s32 256, 1
        loop: start=0, step=1, limit=1
        $region14: #{custom-call.53} parent=12 // loop_pre_header
          _
        $region15: #{custom-call.53} parent=12 // loop_header
          %s11 = sphi 0, %s15
          %p12 = scmp.ge.s32.totalorder %s11, 1
          %s16 = sphi %s0, %s0
          %s17 = sphi [#allocation0], [#allocation0]
        $region16: #{custom-call.53} parent=12 // loop_header_branch
          %14 = sbr.rel (%p12) target = $region20
        $region17: #{custom-call.53} parent=12 // loop_body
          %v18 = vld [vmem:[%s16] sm:%s9]
          %19 = vst [vmem:[%s17] sm:%s9] %v18
        $region18: #{custom-call.53} parent=12 // loop_footer
          %s15 = sadd.s32 1, %s11
        $region19: #{custom-call.53} parent=12 // loop_footer_branch
          %10 = sbr.rel target = $region15
        $region20: #{custom-call.53} parent=12 // loop_exit
          _
      $region13: #{custom-call.53} parent=4 // pred_fallthru
        _
    $region5: #{custom-call.53} parent=1 // pred_fallthru
      _
    %34 = vnop
    %35 = vst [vmem:[#allocation1] sm:$0xff] 0.0
    %vm36 = vcmask 7168
    %v37 = vld [vmem:[#allocation1] ss:$0 sm:$0xff]
    %v38 = vld [vmem:[#allocation0] ss:$0 sm:$0xff]
    %v39 = vmul.f32 %v37, %v37
    %40 = vadd.xlane.f32.xlu0 %v39
    %v41 = vpop.xlane.xlu0 %40
    %v42 = vsub.f32 %v38, %v41
    %v43 = vrsqrt.pop %v42
    %v44 = vld [vmem:[#allocation0] sm:$0xff]
    %v45 = vld [vmem:[#allocation1] sm:$0xff]
    %v46 = vmul.f32 %v45, %v37
    %47 = vadd.xlane.f32.xlu0 %v46
    %v48 = vpop.xlane.xlu0 %47
    %v49 = vsub.f32 %v44, %v48
    %v50 = vmul.f32 %v49, %v43
    %v51 = vsel %vm36, %v50, 0.0
    %v52 = vadd.f32 %v45, %v51
    %53 = vst [vmem:[#allocation1] sm:$0xff] %v52
    %vm54 = vcmask 15368
    %s55 = scalar_lea.vmem [#allocation1], 1
    %v56 = vld [vmem:[%s55] ss:$0 sm:$0xff]
    %s57 = scalar_lea.vmem [#allocation0], 1
    %v58 = vld [vmem:[%s57] ss:$0 sm:$0xff]
    %v59 = vmul.f32 %v56, %v56
    %60 = vadd.xlane.f32.xlu0 %v59
    %v61 = vpop.xlane.xlu0 %60
    %v62 = vsub.f32 %v58, %v61
    %v63 = vrsqrt.pop %v62
    %v64 = vld [vmem:[#allocation0] sm:$0xff]
    %v65 = vld [vmem:[#allocation1] sm:$0xff]
    %v66 = vmul.f32 %v65, %v56
    %67 = vadd.xlane.f32.xlu0 %v66
    %v68 = vpop.xlane.xlu0 %67
    %v69 = vsub.f32 %v64, %v68
    %v70 = vmul.f32 %v69, %v63
    %vm71 = vcmask 1047553
    %vm72 = vmand %vm54, %vm71
    %v73 = vsel %vm72, %v70, 0.0
    %v74 = vadd.f32 %v65, %v73
    %75 = vst [vmem:[#allocation1] sm:$0xff] %v74
    %vm76 = vcmask 23568
    %s77 = scalar_lea.vmem [#allocation1], 2
    %v78 = vld [vmem:[%s77] ss:$0 sm:$0xff]
    %s79 = scalar_lea.vmem [#allocation0], 2
    %v80 = vld [vmem:[%s79] ss:$0 sm:$0xff]
    %v81 = vmul.f32 %v78, %v78
    %82 = vadd.xlane.f32.xlu0 %v81
    %v83 = vpop.xlane.xlu0 %82
    %v84 = vsub.f32 %v80, %v83
    %v85 = vrsqrt.pop %v84
    %v86 = vld [vmem:[#allocation0] sm:$0xff]
    %v87 = vld [vmem:[#allocation1] sm:$0xff]
    %v88 = vmul.f32 %v87, %v78
    %89 = vadd.xlane.f32.xlu0 %v88
    %v90 = vpop.xlane.xlu0 %89
    %v91 = vsub.f32 %v86, %v90
    %v92 = vmul.f32 %v91, %v85
    %vm93 = vcmask 1047554
    %vm94 = vmand %vm76, %vm93
    %v95 = vsel %vm94, %v92, 0.0
    %v96 = vadd.f32 %v87, %v95
    %97 = vst [vmem:[#allocation1] sm:$0xff] %v96
    %vm98 = vcmask 31768
    %s99 = scalar_lea.vmem [#allocation1], 3
    %v100 = vld [vmem:[%s99] ss:$0 sm:$0xff]
    %s101 = scalar_lea.vmem [#allocation0], 3
    %v102 = vld [vmem:[%s101] ss:$0 sm:$0xff]
    %v103 = vmul.f32 %v100, %v100
    %104 = vadd.xlane.f32.xlu0 %v103
    %v105 = vpop.xlane.xlu0 %104
    %v106 = vsub.f32 %v102, %v105
    %v107 = vrsqrt.pop %v106
    %v108 = vld [vmem:[#allocation0] sm:$0xff]
    %v109 = vld [vmem:[#allocation1] sm:$0xff]
    %v110 = vmul.f32 %v109, %v100
    %111 = vadd.xlane.f32.xlu0 %v110
    %v112 = vpop.xlane.xlu0 %111
    %v113 = vsub.f32 %v108, %v112
    %v114 = vmul.f32 %v113, %v107
    %vm115 = vcmask 1047555
    %vm116 = vmand %vm98, %vm115
    %v117 = vsel %vm116, %v114, 0.0
    %v118 = vadd.f32 %v109, %v117
    %119 = vst [vmem:[#allocation1] sm:$0xff] %v118
    %vm120 = vcmask 39968
    %s121 = scalar_lea.vmem [#allocation1], 4
    %v122 = vld [vmem:[%s121] ss:$0 sm:$0xff]
    %s123 = scalar_lea.vmem [#allocation0], 4
    %v124 = vld [vmem:[%s123] ss:$0 sm:$0xff]
    %v125 = vmul.f32 %v122, %v122
    %126 = vadd.xlane.f32.xlu0 %v125
    %v127 = vpop.xlane.xlu0 %126
    %v128 = vsub.f32 %v124, %v127
    %v129 = vrsqrt.pop %v128
    %v130 = vld [vmem:[#allocation0] sm:$0xff]
    %v131 = vld [vmem:[#allocation1] sm:$0xff]
    %v132 = vmul.f32 %v131, %v122
    %133 = vadd.xlane.f32.xlu0 %v132
    %v134 = vpop.xlane.xlu0 %133
    %v135 = vsub.f32 %v130, %v134
    %v136 = vmul.f32 %v135, %v129
    %vm137 = vcmask 1047556
    %vm138 = vmand %vm120, %vm137
    %v139 = vsel %vm138, %v136, 0.0
    %v140 = vadd.f32 %v131, %v139
    %141 = vst [vmem:[#allocation1] sm:$0xff] %v140
    %vm142 = vcmask 48168
    %s143 = scalar_lea.vmem [#allocation1], 5
    %v144 = vld [vmem:[%s143] ss:$0 sm:$0xff]
    %s145 = scalar_lea.vmem [#allocation0], 5
    %v146 = vld [vmem:[%s145] ss:$0 sm:$0xff]
    %v147 = vmul.f32 %v144, %v144
    %148 = vadd.xlane.f32.xlu0 %v147
    %v149 = vpop.xlane.xlu0 %148
    %v150 = vsub.f32 %v146, %v149
    %v151 = vrsqrt.pop %v150
    %v152 = vld [vmem:[#allocation0] sm:$0xff]
    %v153 = vld [vmem:[#allocation1] sm:$0xff]
    %v154 = vmul.f32 %v153, %v144
    %155 = vadd.xlane.f32.xlu0 %v154
    %v156 = vpop.xlane.xlu0 %155
    %v157 = vsub.f32 %v152, %v156
    %v158 = vmul.f32 %v157, %v151
    %vm159 = vcmask 1047557
    %vm160 = vmand %vm142, %vm159
    %v161 = vsel %vm160, %v158, 0.0
    %v162 = vadd.f32 %v153, %v161
    %163 = vst [vmem:[#allocation1] sm:$0xff] %v162
    %vm164 = vcmask 56368
    %s165 = scalar_lea.vmem [#allocation1], 6
    %v166 = vld [vmem:[%s165] ss:$0 sm:$0xff]
    %s167 = scalar_lea.vmem [#allocation0], 6
    %v168 = vld [vmem:[%s167] ss:$0 sm:$0xff]
    %v169 = vmul.f32 %v166, %v166
    %170 = vadd.xlane.f32.xlu0 %v169
    %v171 = vpop.xlane.xlu0 %170
    %v172 = vsub.f32 %v168, %v171
    %v173 = vrsqrt.pop %v172
    %v174 = vld [vmem:[#allocation0] sm:$0xff]
    %v175 = vld [vmem:[#allocation1] sm:$0xff]
    %v176 = vmul.f32 %v175, %v166
    %177 = vadd.xlane.f32.xlu0 %v176
    %v178 = vpop.xlane.xlu0 %177
    %v179 = vsub.f32 %v174, %v178
    %v180 = vmul.f32 %v179, %v173
    %vm181 = vcmask 1047558
    %vm182 = vmand %vm164, %vm181
    %v183 = vsel %vm182, %v180, 0.0
    %v184 = vadd.f32 %v175, %v183
    %185 = vst [vmem:[#allocation1] sm:$0xff] %v184
    %vm186 = vcmask 64568
    %s187 = scalar_lea.vmem [#allocation1], 7
    %v188 = vld [vmem:[%s187] ss:$0 sm:$0xff]
    %s189 = scalar_lea.vmem [#allocation0], 7
    %v190 = vld [vmem:[%s189] ss:$0 sm:$0xff]
    %v191 = vmul.f32 %v188, %v188
    %192 = vadd.xlane.f32.xlu0 %v191
    %v193 = vpop.xlane.xlu0 %192
    %v194 = vsub.f32 %v190, %v193
    %v195 = vrsqrt.pop %v194
    %v196 = vld [vmem:[#allocation0] sm:$0xff]
    %v197 = vld [vmem:[#allocation1] sm:$0xff]
    %v198 = vmul.f32 %v197, %v188
    %199 = vadd.xlane.f32.xlu0 %v198
    %v200 = vpop.xlane.xlu0 %199
    %v201 = vsub.f32 %v196, %v200
    %v202 = vmul.f32 %v201, %v195
    %vm203 = vcmask 1047559
    %vm204 = vmand %vm186, %vm203
    %v205 = vsel %vm204, %v202, 0.0
    %v206 = vadd.f32 %v197, %v205
    %207 = vst [vmem:[#allocation1] sm:$0xff] %v206
    // Predicated region
    $region36: #{custom-call.53} parent=1 // pred_check
      _
    $region37: #{custom-call.53} parent=1 // pred_check_branch
      %209 = sbr.rel (0) target = $region39
    $region38: #{custom-call.53} parent=1 // pred_region
      // Predicated region
      $region40: #{custom-call.53} parent=38 // pred_check
        _
      $region41: #{custom-call.53} parent=38 // pred_check_branch
        %211 = sbr.rel (0) target = $region43
      $region42: #{custom-call.53} parent=38 // pred_region
        // Predicated region
        $region55: #{custom-call.53} parent=42 // pred_check
          _
        $region56: #{custom-call.53} parent=42 // pred_check_branch
          %227 = sbr.rel (0) target = $region58
        $region57: #{custom-call.53} parent=42 // pred_region
          loop: start=0, step=1, limit=1
          $region59: #{custom-call.53} parent=57 // loop_pre_header
            _
          $region60: #{custom-call.53} parent=57 // loop_header
            %s229 = sphi 0, %s233
            %p230 = scmp.ge.s32.totalorder %s229, 1
            %s234 = sphi [#allocation1], [#allocation1]
            %s235 = sphi %s1, %s1
          $region61: #{custom-call.53} parent=57 // loop_header_branch
            %232 = sbr.rel (%p230) target = $region65
          $region62: #{custom-call.53} parent=57 // loop_body
            %v236 = vld [vmem:[%s234] sm:$0xff]
            %237 = vst [vmem:[%s235] sm:$0xff] %v236
          $region63: #{custom-call.53} parent=57 // loop_footer
            %s233 = sadd.s32 1, %s229
          $region64: #{custom-call.53} parent=57 // loop_footer_branch
            %228 = sbr.rel target = $region60
          $region65: #{custom-call.53} parent=57 // loop_exit
            _
        $region58: #{custom-call.53} parent=42 // pred_fallthru
          _
        // Predicated region
        $region66: #{custom-call.53} parent=42 // pred_check
          _
        $region67: #{custom-call.53} parent=42 // pred_check_branch
          %239 = sbr.rel target = $region69
        $region68: #{custom-call.53} parent=42 // pred_region
          _
        $region69: #{custom-call.53} parent=42 // pred_fallthru
          _
      $region43: #{custom-call.53} parent=38 // pred_fallthru
        _
      // Predicated region
      $region44: #{custom-call.53} parent=38 // pred_check
        _
      $region45: #{custom-call.53} parent=38 // pred_check_branch
        %213 = sbr.rel target = $region47
      $region46: #{custom-call.53} parent=38 // pred_region
        %s215 = ssub.s32 256, 1
        loop: start=0, step=1, limit=1
        $region48: #{custom-call.53} parent=46 // loop_pre_header
          _
        $region49: #{custom-call.53} parent=46 // loop_header
          %s217 = sphi 0, %s221
          %p218 = scmp.ge.s32.totalorder %s217, 1
          %s222 = sphi [#allocation1], [#allocation1]
          %s223 = sphi %s1, %s1
        $region50: #{custom-call.53} parent=46 // loop_header_branch
          %220 = sbr.rel (%p218) target = $region54
        $region51: #{custom-call.53} parent=46 // loop_body
          %v224 = vld [vmem:[%s222] sm:%s215]
          %225 = vst [vmem:[%s223] sm:%s215] %v224
        $region52: #{custom-call.53} parent=46 // loop_footer
          %s221 = sadd.s32 1, %s217
        $region53: #{custom-call.53} parent=46 // loop_footer_branch
          %216 = sbr.rel target = $region49
        $region54: #{custom-call.53} parent=46 // loop_exit
          _
      $region47: #{custom-call.53} parent=38 // pred_fallthru
        _
    $region39: #{custom-call.53} parent=1 // pred_fallthru
      _
    %240 = vnop

// kernel: custom-call.54
$region0: #{custom-call.54}
  %s0 = inlined_call_operand.vmem [shape: f32[1,8,8], index: 0, kind: input, shape index: {}]
  %s1 = inlined_call_operand.vmem [shape: f32[1,8,8], index: 1, kind: output, shape index: {}]
  $region1: #{custom-call.54} parent=0
    #allocation0 [shape = 'u8[4096]{0}', space=vmem, size = 0x1000, scoped, tag = 'operand span for operand 0']
    #allocation1 [shape = 'u8[4096]{0}', space=vmem, size = 0x1000, scoped, tag = 'operand span for operand 1']
    #allocation2 [shape = 'f32[8,8]{1,0}', space=vmem, size = 0x1000, scoped, tag = 'rescaled input a']
    // Predicated region
    $region2: #{custom-call.54} parent=1 // pred_check
      _
    $region3: #{custom-call.54} parent=1 // pred_check_branch
      %3 = sbr.rel (0) target = $region5
    $region4: #{custom-call.54} parent=1 // pred_region
      // Predicated region
      $region6: #{custom-call.54} parent=4 // pred_check
        _
      $region7: #{custom-call.54} parent=4 // pred_check_branch
        %5 = sbr.rel (0) target = $region9
      $region8: #{custom-call.54} parent=4 // pred_region
        // Predicated region
        $region21: #{custom-call.54} parent=8 // pred_check
          _
        $region22: #{custom-call.54} parent=8 // pred_check_branch
          %21 = sbr.rel (0) target = $region24
        $region23: #{custom-call.54} parent=8 // pred_region
          loop: start=0, step=1, limit=1
          $region25: #{custom-call.54} parent=23 // loop_pre_header
            _
          $region26: #{custom-call.54} parent=23 // loop_header
            %s23 = sphi 0, %s27
            %p24 = scmp.ge.s32.totalorder %s23, 1
            %s28 = sphi %s0, %s0
            %s29 = sphi [#allocation0], [#allocation0]
          $region27: #{custom-call.54} parent=23 // loop_header_branch
            %26 = sbr.rel (%p24) target = $region31
          $region28: #{custom-call.54} parent=23 // loop_body
            %v30 = vld [vmem:[%s28] sm:$0xff]
            %31 = vst [vmem:[%s29] sm:$0xff] %v30
          $region29: #{custom-call.54} parent=23 // loop_footer
            %s27 = sadd.s32 1, %s23
          $region30: #{custom-call.54} parent=23 // loop_footer_branch
            %22 = sbr.rel target = $region26
          $region31: #{custom-call.54} parent=23 // loop_exit
            _
        $region24: #{custom-call.54} parent=8 // pred_fallthru
          _
        // Predicated region
        $region32: #{custom-call.54} parent=8 // pred_check
          _
        $region33: #{custom-call.54} parent=8 // pred_check_branch
          %33 = sbr.rel target = $region35
        $region34: #{custom-call.54} parent=8 // pred_region
          _
        $region35: #{custom-call.54} parent=8 // pred_fallthru
          _
      $region9: #{custom-call.54} parent=4 // pred_fallthru
        _
      // Predicated region
      $region10: #{custom-call.54} parent=4 // pred_check
        _
      $region11: #{custom-call.54} parent=4 // pred_check_branch
        %7 = sbr.rel target = $region13
      $region12: #{custom-call.54} parent=4 // pred_region
        %s9 = ssub.s32 256, 1
        loop: start=0, step=1, limit=1
        $region14: #{custom-call.54} parent=12 // loop_pre_header
          _
        $region15: #{custom-call.54} parent=12 // loop_header
          %s11 = sphi 0, %s15
          %p12 = scmp.ge.s32.totalorder %s11, 1
          %s16 = sphi %s0, %s0
          %s17 = sphi [#allocation0], [#allocation0]
        $region16: #{custom-call.54} parent=12 // loop_header_branch
          %14 = sbr.rel (%p12) target = $region20
        $region17: #{custom-call.54} parent=12 // loop_body
          %v18 = vld [vmem:[%s16] sm:%s9]
          %19 = vst [vmem:[%s17] sm:%s9] %v18
        $region18: #{custom-call.54} parent=12 // loop_footer
          %s15 = sadd.s32 1, %s11
        $region19: #{custom-call.54} parent=12 // loop_footer_branch
          %10 = sbr.rel target = $region15
        $region20: #{custom-call.54} parent=12 // loop_exit
          _
      $region13: #{custom-call.54} parent=4 // pred_fallthru
        _
    $region5: #{custom-call.54} parent=1 // pred_fallthru
      _
    %34 = vnop
    %v35 = vlaneseq
    %v36 = vand.u32 %v35, 127
    %vm37 = vcmp.lt.s32.totalorder %v36, 8
    %v38 = vlaneseq
    %v39 = vshrl.u32 %v38, 7
    %vm41 = vcmp.eq.s32.totalorder %v39, %v36
    %v42 = vld [vmem:[#allocation0] sm:$0xff]
    %v43 = vsel %vm41, %v42, 0.0
    %44 = vadd.xlane.f32.xlu0 %v43
    %v45 = vpop.xlane.xlu0 %44
    %vm46 = vcmp.ge.s32.totalorder %v39, %v36
    %vm47 = vmand %vm46, %vm37
    %v48 = vsel %vm47, %v42, 0.0
    %v49 = vrcp.pop %v45
    %v50 = vmul.f32 %v48, %v49
    %51 = vst [vmem:[#allocation2] sm:$0xff] %v50
    %v52 = vlaneseq
    %v53 = vand.u32 %v52, 127
    %v54 = vlaneseq
    %v55 = vshrl.u32 %v54, 7
    %vm57 = vcmp.eq.s32.totalorder %v53, %v55
    %v58 = vlaneseq
    %v59 = vand.u32 %v58, 127
    %vm60 = vcmp.eq.s32.totalorder %v59, 0
    %v61 = vsel %vm60, 1.0, -1.0
    %v62 = vsel %vm57, %v61, 0.0
    %s63 = scalar_lea.vmem [#allocation2], 1
    %v64 = vld [vmem:[%s63] ss:$0 sm:$0xff]
    %v65 = vxor.u32 %v64, 2147483648
    %v66 = vlaneseq
    %v67 = vand.u32 %v66, 127
    %vm68 = vcmp.eq.s32.totalorder %v67, 1
    %v69 = vmul.f32 %v65, %v62
    %70 = vadd.xlane.f32.xlu0 %v69
    %v71 = vpop.xlane.xlu0 %70
    %v72 = vsel %vm68, %v71, %v62
    %s73 = scalar_lea.vmem [#allocation2], 2
    %v74 = vld [vmem:[%s73] ss:$0 sm:$0xff]
    %v75 = vxor.u32 %v74, 2147483648
    %v76 = vlaneseq
    %v77 = vand.u32 %v76, 127
    %vm78 = vcmp.eq.s32.totalorder %v77, 2
    %v79 = vmul.f32 %v75, %v72
    %80 = vadd.xlane.f32.xlu0 %v79
    %v81 = vpop.xlane.xlu0 %80
    %v82 = vsel %vm78, %v81, %v72
    %s83 = scalar_lea.vmem [#allocation2], 3
    %v84 = vld [vmem:[%s83] ss:$0 sm:$0xff]
    %v85 = vxor.u32 %v84, 2147483648
    %v86 = vlaneseq
    %v87 = vand.u32 %v86, 127
    %vm88 = vcmp.eq.s32.totalorder %v87, 3
    %v89 = vmul.f32 %v85, %v82
    %90 = vadd.xlane.f32.xlu0 %v89
    %v91 = vpop.xlane.xlu0 %90
    %v92 = vsel %vm88, %v91, %v82
    %s93 = scalar_lea.vmem [#allocation2], 4
    %v94 = vld [vmem:[%s93] ss:$0 sm:$0xff]
    %v95 = vxor.u32 %v94, 2147483648
    %v96 = vlaneseq
    %v97 = vand.u32 %v96, 127
    %vm98 = vcmp.eq.s32.totalorder %v97, 4
    %v99 = vmul.f32 %v95, %v92
    %100 = vadd.xlane.f32.xlu0 %v99
    %v101 = vpop.xlane.xlu0 %100
    %v102 = vsel %vm98, %v101, %v92
    %s103 = scalar_lea.vmem [#allocation2], 5
    %v104 = vld [vmem:[%s103] ss:$0 sm:$0xff]
    %v105 = vxor.u32 %v104, 2147483648
    %v106 = vlaneseq
    %v107 = vand.u32 %v106, 127
    %vm108 = vcmp.eq.s32.totalorder %v107, 5
    %v109 = vmul.f32 %v105, %v102
    %110 = vadd.xlane.f32.xlu0 %v109
    %v111 = vpop.xlane.xlu0 %110
    %v112 = vsel %vm108, %v111, %v102
    %s113 = scalar_lea.vmem [#allocation2], 6
    %v114 = vld [vmem:[%s113] ss:$0 sm:$0xff]
    %v115 = vxor.u32 %v114, 2147483648
    %v116 = vlaneseq
    %v117 = vand.u32 %v116, 127
    %vm118 = vcmp.eq.s32.totalorder %v117, 6
    %v119 = vmul.f32 %v115, %v112
    %120 = vadd.xlane.f32.xlu0 %v119
    %v121 = vpop.xlane.xlu0 %120
    %v122 = vsel %vm118, %v121, %v112
    %s123 = scalar_lea.vmem [#allocation2], 7
    %v124 = vld [vmem:[%s123] ss:$0 sm:$0xff]
    %v125 = vxor.u32 %v124, 2147483648
    %v126 = vlaneseq
    %v127 = vand.u32 %v126, 127
    %vm128 = vcmp.eq.s32.totalorder %v127, 7
    %v129 = vmul.f32 %v125, %v122
    %130 = vadd.xlane.f32.xlu0 %v129
    %v131 = vpop.xlane.xlu0 %130
    %v132 = vsel %vm128, %v131, %v122
    %v133 = vrcp.pop %v45
    %v134 = vmul.f32 %v132, %v133
    %vm135 = vweird.f32 %v45
    %v136 = vsel %vm135, %v132, %v134
    %137 = vst [vmem:[#allocation1] sm:$0xff] %v136
    // Predicated region
    $region36: #{custom-call.54} parent=1 // pred_check
      _
    $region37: #{custom-call.54} parent=1 // pred_check_branch
      %139 = sbr.rel (0) target = $region39
    $region38: #{custom-call.54} parent=1 // pred_region
      // Predicated region
      $region40: #{custom-call.54} parent=38 // pred_check
        _
      $region41: #{custom-call.54} parent=38 // pred_check_branch
        %141 = sbr.rel (0) target = $region43
      $region42: #{custom-call.54} parent=38 // pred_region
        // Predicated region
        $region55: #{custom-call.54} parent=42 // pred_check
          _
        $region56: #{custom-call.54} parent=42 // pred_check_branch
          %157 = sbr.rel (0) target = $region58
        $region57: #{custom-call.54} parent=42 // pred_region
          loop: start=0, step=1, limit=1
          $region59: #{custom-call.54} parent=57 // loop_pre_header
            _
          $region60: #{custom-call.54} parent=57 // loop_header
            %s159 = sphi 0, %s163
            %p160 = scmp.ge.s32.totalorder %s159, 1
            %s164 = sphi [#allocation1], [#allocation1]
            %s165 = sphi %s1, %s1
          $region61: #{custom-call.54} parent=57 // loop_header_branch
            %162 = sbr.rel (%p160) target = $region65
          $region62: #{custom-call.54} parent=57 // loop_body
            %v166 = vld [vmem:[%s164] sm:$0xff]
            %167 = vst [vmem:[%s165] sm:$0xff] %v166
          $region63: #{custom-call.54} parent=57 // loop_footer
            %s163 = sadd.s32 1, %s159
          $region64: #{custom-call.54} parent=57 // loop_footer_branch
            %158 = sbr.rel target = $region60
          $region65: #{custom-call.54} parent=57 // loop_exit
            _
        $region58: #{custom-call.54} parent=42 // pred_fallthru
          _
        // Predicated region
        $region66: #{custom-call.54} parent=42 // pred_check
          _
        $region67: #{custom-call.54} parent=42 // pred_check_branch
          %169 = sbr.rel target = $region69
        $region68: #{custom-call.54} parent=42 // pred_region
          _
        $region69: #{custom-call.54} parent=42 // pred_fallthru
          _
      $region43: #{custom-call.54} parent=38 // pred_fallthru
        _
      // Predicated region
      $region44: #{custom-call.54} parent=38 // pred_check
        _
      $region45: #{custom-call.54} parent=38 // pred_check_branch
        %143 = sbr.rel target = $region47
      $region46: #{custom-call.54} parent=38 // pred_region
        %s145 = ssub.s32 256, 1
        loop: start=0, step=1, limit=1
        $region48: #{custom-call.54} parent=46 // loop_pre_header
          _
        $region49: #{custom-call.54} parent=46 // loop_header
          %s147 = sphi 0, %s151
          %p148 = scmp.ge.s32.totalorder %s147, 1
          %s152 = sphi [#allocation1], [#allocation1]
          %s153 = sphi %s1, %s1
        $region50: #{custom-call.54} parent=46 // loop_header_branch
          %150 = sbr.rel (%p148) target = $region54
        $region51: #{custom-call.54} parent=46 // loop_body
          %v154 = vld [vmem:[%s152] sm:%s145]
          %155 = vst [vmem:[%s153] sm:%s145] %v154
        $region52: #{custom-call.54} parent=46 // loop_footer
          %s151 = sadd.s32 1, %s147
        $region53: #{custom-call.54} parent=46 // loop_footer_branch
          %146 = sbr.rel target = $region49
        $region54: #{custom-call.54} parent=46 // loop_exit
          _
      $region47: #{custom-call.54} parent=38 // pred_fallthru
        _
    $region39: #{custom-call.54} parent=1 // pred_fallthru
      _
    %170 = vnop

// kernel: custom-call.17
$region0: #{custom-call.17}
  %s0 = inlined_call_operand.vmem [shape: f32[4,4], index: 0, kind: input, shape index: {}]
  %s1 = inlined_call_operand.vmem [shape: f32[4,4], index: 1, kind: input, shape index: {}]
  %s2 = inlined_call_operand.vmem [shape: f32[4,4], index: 2, kind: input, shape index: {}]
  %s3 = inlined_call_operand.vmem [shape: f32[4,4], index: 3, kind: input, shape index: {}]
  %s4 = inlined_call_operand.vmem [shape: f32[4], index: 4, kind: output, shape index: {0}]
  %s5 = inlined_call_operand.vmem [shape: f32[4], index: 5, kind: output, shape index: {1}]
  %s6 = inlined_call_operand.vmem [shape: f32[4,4], index: 6, kind: output, shape index: {2}]
  %s7 = inlined_call_operand.vmem [shape: f32[4,4], index: 7, kind: output, shape index: {3}]
  %s8 = inlined_call_operand.vmem [shape: f32[4,4], index: 8, kind: output, shape index: {4}]
  %s9 = inlined_call_operand.vmem [shape: f32[4,4], index: 9, kind: output, shape index: {5}]
  %10 = xla_tuple %s4, %s5, %s6, %s7, %s8, %s9
  $region1: #{custom-call.17} parent=0
    #allocation0 [shape = 'u8[4096]{0}', space=vmem, size = 0x1000, scoped, tag = 'operand span for operand 0']
    #allocation1 [shape = 'u8[2048]{0}', space=vmem, size = 0x800, scoped, tag = 'packed  for operand 0']
    #allocation2 [shape = 'u8[4096]{0}', space=vmem, size = 0x1000, scoped, tag = 'operand span for operand 1']
    #allocation3 [shape = 'u8[2048]{0}', space=vmem, size = 0x800, scoped, tag = 'packed  for operand 1']
    #allocation4 [shape = 'u8[4096]{0}', space=vmem, size = 0x1000, scoped, tag = 'operand span for operand 2']
    #allocation5 [shape = 'u8[2048]{0}', space=vmem, size = 0x800, scoped, tag = 'packed  for operand 2']
    #allocation6 [shape = 'u8[4096]{0}', space=vmem, size = 0x1000, scoped, tag = 'operand span for operand 3']
    #allocation7 [shape = 'u8[2048]{0}', space=vmem, size = 0x800, scoped, tag = 'packed  for operand 3']
    #allocation8 [shape = 'u8[4096]{0}', space=vmem, size = 0x1000, scoped, tag = 'operand span for operand 4']
    #allocation9 [shape = 'u8[512]{0}', space=vmem, size = 0x400, scoped, tag = 'packed  for operand 4']
    #allocation10 [shape = 'u8[4096]{0}', space=vmem, size = 0x1000, scoped, tag = 'operand span for operand 5']
    #allocation11 [shape = 'u8[512]{0}', space=vmem, size = 0x400, scoped, tag = 'packed  for operand 5']
    #allocation12 [shape = 'u8[4096]{0}', space=vmem, size = 0x1000, scoped, tag = 'operand span for operand 6']
    #allocation13 [shape = 'u8[2048]{0}', space=vmem, size = 0x800, scoped, tag = 'packed  for operand 6']
    #allocation14 [shape = 'u8[4096]{0}', space=vmem, size = 0x1000, scoped, tag = 'operand span for operand 7']
    #allocation15 [shape = 'u8[2048]{0}', space=vmem, size = 0x800, scoped, tag = 'packed  for operand 7']
    #allocation16 [shape = 'u8[4096]{0}', space=vmem, size = 0x1000, scoped, tag = 'operand span for operand 8']
    #allocation17 [shape = 'u8[2048]{0}', space=vmem, size = 0x800, scoped, tag = 'packed  for operand 8']
    #allocation18 [shape = 'u8[4096]{0}', space=vmem, size = 0x1000, scoped, tag = 'operand span for operand 9']
    #allocation19 [shape = 'u8[2048]{0}', space=vmem, size = 0x800, scoped, tag = 'packed  for operand 9']
    #allocation20 [shape = 'f32[4,4]{1,0}', space=vmem, size = 0x1000, scoped, tag = 'a top-left matrix']
    #allocation21 [shape = 'f32[4,4]{1,0}', space=vmem, size = 0x1000, scoped, tag = 'a top-right matrix']
    #allocation22 [shape = 'f32[4,4]{1,0}', space=vmem, size = 0x1000, scoped, tag = 'a bottom-left matrix']
    #allocation23 [shape = 'f32[4,4]{1,0}', space=vmem, size = 0x1000, scoped, tag = 'a bottom-right matrix']
    %p12 = scmp.gt.s32.totalorder 4, 0
    // Predicated region
    $region2: #{custom-call.17} parent=1 // pred_check
      %p13 = pneg %p12
    $region3: #{custom-call.17} parent=1 // pred_check_branch
      %15 = sbr.rel (%p13) target = $region5
    $region4: #{custom-call.17} parent=1 // pred_region
      %s16 = sshra.s32 4, 3
      %p17 = scmp.gt.s32.totalorder %s16, 0
      // Predicated region
      $region6: #{custom-call.17} parent=4 // pred_check
        %p18 = pneg %p17
      $region7: #{custom-call.17} parent=4 // pred_check_branch
        %20 = sbr.rel (%p18) target = $region9
      $region8: #{custom-call.17} parent=4 // pred_region
        %s21 = ssub.s32 %s16, 1
        %s22 = smul.u32 %s21, 128
        %s23 = sshra.s32 %s22, 4
        %s24 = scalar_lea.vmem %s0, %s23
        %v25 = vld [vmem:[%s0] sm:$0xff]
        // While loop
        $region10: #{custom-call.17} parent=8 // loop_pre_header
          _
        $region11: #{custom-call.17} parent=8 // loop_header
          %s26 = sphi %s0, %s48
          %s27 = sphi [#allocation1], %s49
          %v28 = vphi %v25, %v50
          %s29 = ssub.s32 %s24, 64
          %p30 = scmp.gt.s32.totalorder %s26, %s29
        $region12: #{custom-call.17} parent=8 // loop_header_branch
          %32 = sbr.rel (%p30) target = $region16
        $region13: #{custom-call.17} parent=8 // loop_body
          %33 = vst [vmem:[%s27] sm:$0xff] %v28
          %v34 = vld [vmem:[%s26 + $0x8] sm:$0xff]
          %35 = vst [vmem:[%s27 + $0x8] sm:$0xff] %v34
          %v36 = vld [vmem:[%s26 + $0x10] sm:$0xff]
          %37 = vst [vmem:[%s27 + $0x10] sm:$0xff] %v36
          %v38 = vld [vmem:[%s26 + $0x18] sm:$0xff]
          %39 = vst [vmem:[%s27 + $0x18] sm:$0xff] %v38
          %v40 = vld [vmem:[%s26 + $0x20] sm:$0xff]
          %41 = vst [vmem:[%s27 + $0x20] sm:$0xff] %v40
          %v42 = vld [vmem:[%s26 + $0x28] sm:$0xff]
          %43 = vst [vmem:[%s27 + $0x28] sm:$0xff] %v42
          %v44 = vld [vmem:[%s26 + $0x30] sm:$0xff]
          %45 = vst [vmem:[%s27 + $0x30] sm:$0xff] %v44
          %v46 = vld [vmem:[%s26 + $0x38] sm:$0xff]
          %47 = vst [vmem:[%s27 + $0x38] sm:$0xff] %v46
        $region14: #{custom-call.17} parent=8 // loop_footer
          %s48 = scalar_lea.vmem %s26, 64
          %s49 = scalar_lea.vmem %s27, 64
          %v50 = vld [vmem:[%s26 + $0x40] sm:$0xff]
        $region15: #{custom-call.17} parent=8 // loop_footer_branch
          %51 = sbr.rel target = $region11
        $region16: #{custom-call.17} parent=8 // loop_exit
          _
        // While loop
        $region17: #{custom-call.17} parent=8 // loop_pre_header
          _
        $region18: #{custom-call.17} parent=8 // loop_header
          %s52 = sphi %s26, %s60
          %s53 = sphi %s27, %s61
          %v54 = vphi %v28, %v54
          %p55 = scmp.gt.s32.totalorder %s52, %s24
        $region19: #{custom-call.17} parent=8 // loop_header_branch
          %57 = sbr.rel (%p55) target = $region23
        $region20: #{custom-call.17} parent=8 // loop_body
          %v58 = vld [vmem:[%s52] sm:$0xff]
          %59 = vst [vmem:[%s53] sm:$0xff] %v58
        $region21: #{custom-call.17} parent=8 // loop_footer
          %s60 = scalar_lea.vmem %s52, 8
          %s61 = scalar_lea.vmem %s53, 8
        $region22: #{custom-call.17} parent=8 // loop_footer_branch
          %62 = sbr.rel target = $region18
        $region23: #{custom-call.17} parent=8 // loop_exit
          _
      $region9: #{custom-call.17} parent=4 // pred_fallthru
        _
      %s63 = sand.u32 4, 7
      %s64 = sshll.u32 1, %s63
      %s65 = ssub.s32 %s64, 1
      %s66 = smul.u32 %s16, 128
      %s67 = sshra.s32 %s66, 4
      %s68 = scalar_lea.vmem [#allocation1], %s67
      %s69 = smul.u32 %s16, 128
      %s70 = sshra.s32 %s69, 4
      %s71 = scalar_lea.vmem %s0, %s70
      %v72 = vld [vmem:[%s71] sm:%s65]
      %73 = vst [vmem:[%s68] sm:%s65] %v72
    $region5: #{custom-call.17} parent=1 // pred_fallthru
      _
    %p75 = scmp.gt.s32.totalorder 4, 0
    // Predicated region
    $region24: #{custom-call.17} parent=1 // pred_check
      %p76 = pneg %p75
    $region25: #{custom-call.17} parent=1 // pred_check_branch
      %78 = sbr.rel (%p76) target = $region27
    $region26: #{custom-call.17} parent=1 // pred_region
      %s79 = sshra.s32 4, 3
      %p80 = scmp.gt.s32.totalorder %s79, 0
      // Predicated region
      $region28: #{custom-call.17} parent=26 // pred_check
        %p81 = pneg %p80
      $region29: #{custom-call.17} parent=26 // pred_check_branch
        %83 = sbr.rel (%p81) target = $region31
      $region30: #{custom-call.17} parent=26 // pred_region
        %s84 = ssub.s32 %s79, 1
        %s85 = smul.u32 %s84, 128
        %s86 = sshra.s32 %s85, 4
        %s87 = scalar_lea.vmem %s1, %s86
        %v88 = vld [vmem:[%s1] sm:$0xff]
        // While loop
        $region32: #{custom-call.17} parent=30 // loop_pre_header
          _
        $region33: #{custom-call.17} parent=30 // loop_header
          %s89 = sphi %s1, %s111
          %s90 = sphi [#allocation3], %s112
          %v91 = vphi %v88, %v113
          %s92 = ssub.s32 %s87, 64
          %p93 = scmp.gt.s32.totalorder %s89, %s92
        $region34: #{custom-call.17} parent=30 // loop_header_branch
          %95 = sbr.rel (%p93) target = $region38
        $region35: #{custom-call.17} parent=30 // loop_body
          %96 = vst [vmem:[%s90] sm:$0xff] %v91
          %v97 = vld [vmem:[%s89 + $0x8] sm:$0xff]
          %98 = vst [vmem:[%s90 + $0x8] sm:$0xff] %v97
          %v99 = vld [vmem:[%s89 + $0x10] sm:$0xff]
          %100 = vst [vmem:[%s90 + $0x10] sm:$0xff] %v99
          %v101 = vld [vmem:[%s89 + $0x18] sm:$0xff]
          %102 = vst [vmem:[%s90 + $0x18] sm:$0xff] %v101
          %v103 = vld [vmem:[%s89 + $0x20] sm:$0xff]
          %104 = vst [vmem:[%s90 + $0x20] sm:$0xff] %v103
          %v105 = vld [vmem:[%s89 + $0x28] sm:$0xff]
          %106 = vst [vmem:[%s90 + $0x28] sm:$0xff] %v105
          %v107 = vld [vmem:[%s89 + $0x30] sm:$0xff]
          %108 = vst [vmem:[%s90 + $0x30] sm:$0xff] %v107
          %v109 = vld [vmem:[%s89 + $0x38] sm:$0xff]
          %110 = vst [vmem:[%s90 + $0x38] sm:$0xff] %v109
        $region36: #{custom-call.17} parent=30 // loop_footer
          %s111 = scalar_lea.vmem %s89, 64
          %s112 = scalar_lea.vmem %s90, 64
          %v113 = vld [vmem:[%s89 + $0x40] sm:$0xff]
        $region37: #{custom-call.17} parent=30 // loop_footer_branch
          %114 = sbr.rel target = $region33
        $region38: #{custom-call.17} parent=30 // loop_exit
          _
        // While loop
        $region39: #{custom-call.17} parent=30 // loop_pre_header
          _
        $region40: #{custom-call.17} parent=30 // loop_header
          %s115 = sphi %s89, %s123
          %s116 = sphi %s90, %s124
          %v117 = vphi %v91, %v117
          %p118 = scmp.gt.s32.totalorder %s115, %s87
        $region41: #{custom-call.17} parent=30 // loop_header_branch
          %120 = sbr.rel (%p118) target = $region45
        $region42: #{custom-call.17} parent=30 // loop_body
          %v121 = vld [vmem:[%s115] sm:$0xff]
          %122 = vst [vmem:[%s116] sm:$0xff] %v121
        $region43: #{custom-call.17} parent=30 // loop_footer
          %s123 = scalar_lea.vmem %s115, 8
          %s124 = scalar_lea.vmem %s116, 8
        $region44: #{custom-call.17} parent=30 // loop_footer_branch
          %125 = sbr.rel target = $region40
        $region45: #{custom-call.17} parent=30 // loop_exit
          _
      $region31: #{custom-call.17} parent=26 // pred_fallthru
        _
      %s126 = sand.u32 4, 7
      %s127 = sshll.u32 1, %s126
      %s128 = ssub.s32 %s127, 1
      %s129 = smul.u32 %s79, 128
      %s130 = sshra.s32 %s129, 4
      %s131 = scalar_lea.vmem [#allocation3], %s130
      %s132 = smul.u32 %s79, 128
      %s133 = sshra.s32 %s132, 4
      %s134 = scalar_lea.vmem %s1, %s133
      %v135 = vld [vmem:[%s134] sm:%s128]
      %136 = vst [vmem:[%s131] sm:%s128] %v135
    $region27: #{custom-call.17} parent=1 // pred_fallthru
      _
    %p138 = scmp.gt.s32.totalorder 4, 0
    // Predicated region
    $region46: #{custom-call.17} parent=1 // pred_check
      %p139 = pneg %p138
    $region47: #{custom-call.17} parent=1 // pred_check_branch
      %141 = sbr.rel (%p139) target = $region49
    $region48: #{custom-call.17} parent=1 // pred_region
      %s142 = sshra.s32 4, 3
      %p143 = scmp.gt.s32.totalorder %s142, 0
      // Predicated region
      $region50: #{custom-call.17} parent=48 // pred_check
        %p144 = pneg %p143
      $region51: #{custom-call.17} parent=48 // pred_check_branch
        %146 = sbr.rel (%p144) target = $region53
      $region52: #{custom-call.17} parent=48 // pred_region
        %s147 = ssub.s32 %s142, 1
        %s148 = smul.u32 %s147, 128
        %s149 = sshra.s32 %s148, 4
        %s150 = scalar_lea.vmem %s2, %s149
        %v151 = vld [vmem:[%s2] sm:$0xff]
        // While loop
        $region54: #{custom-call.17} parent=52 // loop_pre_header
          _
        $region55: #{custom-call.17} parent=52 // loop_header
          %s152 = sphi %s2, %s174
          %s153 = sphi [#allocation5], %s175
          %v154 = vphi %v151, %v176
          %s155 = ssub.s32 %s150, 64
          %p156 = scmp.gt.s32.totalorder %s152, %s155
        $region56: #{custom-call.17} parent=52 // loop_header_branch
          %158 = sbr.rel (%p156) target = $region60
        $region57: #{custom-call.17} parent=52 // loop_body
          %159 = vst [vmem:[%s153] sm:$0xff] %v154
          %v160 = vld [vmem:[%s152 + $0x8] sm:$0xff]
          %161 = vst [vmem:[%s153 + $0x8] sm:$0xff] %v160
          %v162 = vld [vmem:[%s152 + $0x10] sm:$0xff]
          %163 = vst [vmem:[%s153 + $0x10] sm:$0xff] %v162
          %v164 = vld [vmem:[%s152 + $0x18] sm:$0xff]
          %165 = vst [vmem:[%s153 + $0x18] sm:$0xff] %v164
          %v166 = vld [vmem:[%s152 + $0x20] sm:$0xff]
          %167 = vst [vmem:[%s153 + $0x20] sm:$0xff] %v166
          %v168 = vld [vmem:[%s152 + $0x28] sm:$0xff]
          %169 = vst [vmem:[%s153 + $0x28] sm:$0xff] %v168
          %v170 = vld [vmem:[%s152 + $0x30] sm:$0xff]
          %171 = vst [vmem:[%s153 + $0x30] sm:$0xff] %v170
          %v172 = vld [vmem:[%s152 + $0x38] sm:$0xff]
          %173 = vst [vmem:[%s153 + $0x38] sm:$0xff] %v172
        $region58: #{custom-call.17} parent=52 // loop_footer
          %s174 = scalar_lea.vmem %s152, 64
          %s175 = scalar_lea.vmem %s153, 64
          %v176 = vld [vmem:[%s152 + $0x40] sm:$0xff]
        $region59: #{custom-call.17} parent=52 // loop_footer_branch
          %177 = sbr.rel target = $region55
        $region60: #{custom-call.17} parent=52 // loop_exit
          _
        // While loop
        $region61: #{custom-call.17} parent=52 // loop_pre_header
          _
        $region62: #{custom-call.17} parent=52 // loop_header
          %s178 = sphi %s152, %s186
          %s179 = sphi %s153, %s187
          %v180 = vphi %v154, %v180
          %p181 = scmp.gt.s32.totalorder %s178, %s150
        $region63: #{custom-call.17} parent=52 // loop_header_branch
          %183 = sbr.rel (%p181) target = $region67
        $region64: #{custom-call.17} parent=52 // loop_body
          %v184 = vld [vmem:[%s178] sm:$0xff]
          %185 = vst [vmem:[%s179] sm:$0xff] %v184
        $region65: #{custom-call.17} parent=52 // loop_footer
          %s186 = scalar_lea.vmem %s178, 8
          %s187 = scalar_lea.vmem %s179, 8
        $region66: #{custom-call.17} parent=52 // loop_footer_branch
          %188 = sbr.rel target = $region62
        $region67: #{custom-call.17} parent=52 // loop_exit
          _
      $region53: #{custom-call.17} parent=48 // pred_fallthru
        _
      %s189 = sand.u32 4, 7
      %s190 = sshll.u32 1, %s189
      %s191 = ssub.s32 %s190, 1
      %s192 = smul.u32 %s142, 128
      %s193 = sshra.s32 %s192, 4
      %s194 = scalar_lea.vmem [#allocation5], %s193
      %s195 = smul.u32 %s142, 128
      %s196 = sshra.s32 %s195, 4
      %s197 = scalar_lea.vmem %s2, %s196
      %v198 = vld [vmem:[%s197] sm:%s191]
      %199 = vst [vmem:[%s194] sm:%s191] %v198
    $region49: #{custom-call.17} parent=1 // pred_fallthru
      _
    %p201 = scmp.gt.s32.totalorder 4, 0
    // Predicated region
    $region68: #{custom-call.17} parent=1 // pred_check
      %p202 = pneg %p201
    $region69: #{custom-call.17} parent=1 // pred_check_branch
      %204 = sbr.rel (%p202) target = $region71
    $region70: #{custom-call.17} parent=1 // pred_region
      %s205 = sshra.s32 4, 3
      %p206 = scmp.gt.s32.totalorder %s205, 0
      // Predicated region
      $region72: #{custom-call.17} parent=70 // pred_check
        %p207 = pneg %p206
      $region73: #{custom-call.17} parent=70 // pred_check_branch
        %209 = sbr.rel (%p207) target = $region75
      $region74: #{custom-call.17} parent=70 // pred_region
        %s210 = ssub.s32 %s205, 1
        %s211 = smul.u32 %s210, 128
        %s212 = sshra.s32 %s211, 4
        %s213 = scalar_lea.vmem %s3, %s212
        %v214 = vld [vmem:[%s3] sm:$0xff]
        // While loop
        $region76: #{custom-call.17} parent=74 // loop_pre_header
          _
        $region77: #{custom-call.17} parent=74 // loop_header
          %s215 = sphi %s3, %s237
          %s216 = sphi [#allocation7], %s238
          %v217 = vphi %v214, %v239
          %s218 = ssub.s32 %s213, 64
          %p219 = scmp.gt.s32.totalorder %s215, %s218
        $region78: #{custom-call.17} parent=74 // loop_header_branch
          %221 = sbr.rel (%p219) target = $region82
        $region79: #{custom-call.17} parent=74 // loop_body
          %222 = vst [vmem:[%s216] sm:$0xff] %v217
          %v223 = vld [vmem:[%s215 + $0x8] sm:$0xff]
          %224 = vst [vmem:[%s216 + $0x8] sm:$0xff] %v223
          %v225 = vld [vmem:[%s215 + $0x10] sm:$0xff]
          %226 = vst [vmem:[%s216 + $0x10] sm:$0xff] %v225
          %v227 = vld [vmem:[%s215 + $0x18] sm:$0xff]
          %228 = vst [vmem:[%s216 + $0x18] sm:$0xff] %v227
          %v229 = vld [vmem:[%s215 + $0x20] sm:$0xff]
          %230 = vst [vmem:[%s216 + $0x20] sm:$0xff] %v229
          %v231 = vld [vmem:[%s215 + $0x28] sm:$0xff]
          %232 = vst [vmem:[%s216 + $0x28] sm:$0xff] %v231
          %v233 = vld [vmem:[%s215 + $0x30] sm:$0xff]
          %234 = vst [vmem:[%s216 + $0x30] sm:$0xff] %v233
          %v235 = vld [vmem:[%s215 + $0x38] sm:$0xff]
          %236 = vst [vmem:[%s216 + $0x38] sm:$0xff] %v235
        $region80: #{custom-call.17} parent=74 // loop_footer
          %s237 = scalar_lea.vmem %s215, 64
          %s238 = scalar_lea.vmem %s216, 64
          %v239 = vld [vmem:[%s215 + $0x40] sm:$0xff]
        $region81: #{custom-call.17} parent=74 // loop_footer_branch
          %240 = sbr.rel target = $region77
        $region82: #{custom-call.17} parent=74 // loop_exit
          _
        // While loop
        $region83: #{custom-call.17} parent=74 // loop_pre_header
          _
        $region84: #{custom-call.17} parent=74 // loop_header
          %s241 = sphi %s215, %s249
          %s242 = sphi %s216, %s250
          %v243 = vphi %v217, %v243
          %p244 = scmp.gt.s32.totalorder %s241, %s213
        $region85: #{custom-call.17} parent=74 // loop_header_branch
          %246 = sbr.rel (%p244) target = $region89
        $region86: #{custom-call.17} parent=74 // loop_body
          %v247 = vld [vmem:[%s241] sm:$0xff]
          %248 = vst [vmem:[%s242] sm:$0xff] %v247
        $region87: #{custom-call.17} parent=74 // loop_footer
          %s249 = scalar_lea.vmem %s241, 8
          %s250 = scalar_lea.vmem %s242, 8
        $region88: #{custom-call.17} parent=74 // loop_footer_branch
          %251 = sbr.rel target = $region84
        $region89: #{custom-call.17} parent=74 // loop_exit
          _
      $region75: #{custom-call.17} parent=70 // pred_fallthru
        _
      %s252 = sand.u32 4, 7
      %s253 = sshll.u32 1, %s252
      %s254 = ssub.s32 %s253, 1
      %s255 = smul.u32 %s205, 128
      %s256 = sshra.s32 %s255, 4
      %s257 = scalar_lea.vmem [#allocation7], %s256
      %s258 = smul.u32 %s205, 128
      %s259 = sshra.s32 %s258, 4
      %s260 = scalar_lea.vmem %s3, %s259
      %v261 = vld [vmem:[%s260] sm:%s254]
      %262 = vst [vmem:[%s257] sm:%s254] %v261
    $region71: #{custom-call.17} parent=1 // pred_fallthru
      _
    %s264 = sshll.u32 1, 4
    %s265 = ssub.s32 %s264, 1
    %v266 = vld [vmem:[#allocation1] sm:%s265]
    %267 = vst [vmem:[#allocation0] sm:%s265] %v266
    %s269 = sshll.u32 1, 4
    %s270 = ssub.s32 %s269, 1
    %v271 = vld [vmem:[#allocation3] sm:%s270]
    %272 = vst [vmem:[#allocation2] sm:%s270] %v271
    %s274 = sshll.u32 1, 4
    %s275 = ssub.s32 %s274, 1
    %v276 = vld [vmem:[#allocation5] sm:%s275]
    %277 = vst [vmem:[#allocation4] sm:%s275] %v276
    %s279 = sshll.u32 1, 4
    %s280 = ssub.s32 %s279, 1
    %v281 = vld [vmem:[#allocation7] sm:%s280]
    %282 = vst [vmem:[#allocation6] sm:%s280] %v281
    %s283 = smov [#allocation20]
    %v284 = vld [vmem:[#allocation0] sm:$0xff]
    %285 = vst [vmem:[%s283] sm:$0xff] %v284
    %s286 = smov [#allocation21]
    %v287 = vld [vmem:[#allocation2] sm:$0xff]
    %288 = vst [vmem:[%s286] sm:$0xff] %v287
    %s289 = smov [#allocation22]
    %v290 = vld [vmem:[#allocation4] sm:$0xff]
    %291 = vst [vmem:[%s289] sm:$0xff] %v290
    %s292 = smov [#allocation23]
    %v293 = vld [vmem:[#allocation6] sm:$0xff]
    %294 = vst [vmem:[%s292] sm:$0xff] %v293
    %295 = vst [vmem:[#allocation12] sm:$0xff] 0.0
    %296 = vst [vmem:[#allocation14] sm:$0xff] 0.0
    %297 = vst [vmem:[#allocation16] sm:$0xff] 0.0
    %298 = vst [vmem:[#allocation18] sm:$0xff] 0.0
    %s299 = smov [#allocation12]
    %v300 = vlaneseq
    %v301 = vand.u32 %v300, 127
    %v302 = vmov %v301
    %v303 = vlaneseq
    %v304 = vshrl.u32 %v303, 7
    %v305 = vmov %v304
    %v306 = vld [vmem:[%s299] sm:$0xf]
    %vm309 = vcmp.eq.s32.totalorder %v305, %v302
    %v310 = vsel %vm309, 1.0, %v306
    %311 = vst [vmem:[%s299] sm:$0xf] %v310
    %s312 = smov [#allocation18]
    %v313 = vlaneseq
    %v314 = vand.u32 %v313, 127
    %v315 = vmov %v314
    %v316 = vlaneseq
    %v317 = vshrl.u32 %v316, 7
    %v318 = vmov %v317
    %v319 = vld [vmem:[%s312] sm:$0xf]
    %vm322 = vcmp.eq.s32.totalorder %v318, %v315
    %v323 = vsel %vm322, 1.0, %v319
    %324 = vst [vmem:[%s312] sm:$0xf] %v323
    // While loop
    $region90: #{custom-call.17} parent=1 // loop_pre_header
      _
    $region91: #{custom-call.17} parent=1 // loop_header
      %s326 = sphi 0, %s868
      %v327 = vlaneseq
      %v328 = vand.u32 %v327, 127
      %v329 = vmov %v328
      %v330 = vlaneseq
      %v331 = vshrl.u32 %v330, 7
      %v332 = vmov %v331
      %s333 = smov [#allocation20]
      %v334 = vlaneseq
      %v335 = vand.u32 %v334, 127
      %vm336 = vcmp.ge.s32.totalorder %v335, 0
      %vm337 = vcmp.lt.s32.totalorder %v335, 4
      %vm338 = vmand %vm336, %vm337
      %v339 = vld [vmem:[%s333] sm:$0xf]
      %v340 = vsel %vm338, %v339, 0.0
      %v341 = vmul.f32 %v340, %v340
      %vm344 = vcmp.eq.s32.totalorder %v332, %v329
      %v345 = vsel %vm344, 0.0, %v341
      %v346 = vlaneseq
      %v347 = vand.u32 %v346, 127
      %v348 = vmov %v347
      %v349 = vlaneseq
      %v350 = vshrl.u32 %v349, 7
      %v351 = vmov %v350
      %s352 = smov [#allocation21]
      %v353 = vlaneseq
      %v354 = vand.u32 %v353, 127
      %vm355 = vcmp.ge.s32.totalorder %v354, 0
      %vm356 = vcmp.lt.s32.totalorder %v354, 4
      %vm357 = vmand %vm355, %vm356
      %v358 = vld [vmem:[%s352] sm:$0xf]
      %v359 = vsel %vm357, %v358, 0.0
      %v360 = vmul.f32 %v359, %v359
      %v361 = vadd.f32 %v345, %v360
      %v362 = vadd.f32 %v341, %v360
      %v363 = vlaneseq
      %v364 = vand.u32 %v363, 127
      %v365 = vmov %v364
      %v366 = vlaneseq
      %v367 = vshrl.u32 %v366, 7
      %v368 = vmov %v367
      %s369 = smov [#allocation22]
      %v370 = vlaneseq
      %v371 = vand.u32 %v370, 127
      %vm372 = vcmp.ge.s32.totalorder %v371, 0
      %vm373 = vcmp.lt.s32.totalorder %v371, 4
      %vm374 = vmand %vm372, %vm373
      %v375 = vld [vmem:[%s369] sm:$0xf]
      %v376 = vsel %vm374, %v375, 0.0
      %v377 = vmul.f32 %v376, %v376
      %v378 = vadd.f32 %v361, %v377
      %v379 = vadd.f32 %v362, %v377
      %v380 = vlaneseq
      %v381 = vand.u32 %v380, 127
      %v382 = vmov %v381
      %v383 = vlaneseq
      %v384 = vshrl.u32 %v383, 7
      %v385 = vmov %v384
      %s386 = smov [#allocation23]
      %v387 = vlaneseq
      %v388 = vand.u32 %v387, 127
      %vm389 = vcmp.ge.s32.totalorder %v388, 0
      %vm390 = vcmp.lt.s32.totalorder %v388, 4
      %vm391 = vmand %vm389, %vm390
      %v392 = vld [vmem:[%s386] sm:$0xf]
      %v393 = vsel %vm391, %v392, 0.0
      %v394 = vmul.f32 %v393, %v393
      %vm397 = vcmp.eq.s32.totalorder %v385, %v382
      %v398 = vsel %vm397, 0.0, %v394
      %v399 = vadd.f32 %v378, %v398
      %v400 = vadd.f32 %v379, %v394
      %401 = vadd.xlane.f32.xlu0 %v400
      %v402 = vpop.xlane.xlu0 %401
      %v403 = vrot.slane %v402, 4
      %v404 = vadd.f32 %v402, %v403
      %v405 = vrot.slane %v404, 2
      %v406 = vadd.f32 %v404, %v405
      %v407 = vrot.slane %v406, 1
      %v408 = vadd.f32 %v406, %v407
      %409 = vadd.xlane.f32.xlu0 %v399
      %v410 = vpop.xlane.xlu0 %409
      %v411 = vrot.slane %v410, 4
      %v412 = vadd.f32 %v410, %v411
      %v413 = vrot.slane %v412, 2
      %v414 = vadd.f32 %v412, %v413
      %v415 = vrot.slane %v414, 1
      %v416 = vadd.f32 %v414, %v415
      %s417 = vtos %v416
      %s418 = vtos %v408
      %s419 = smul.f32 1e-10, %s418
      %p420 = scmp.le.f32.partialorder %s417, %s419
      %p421 = scmp.ge.s32.totalorder %s326, 15
      %p422 = por %p420, %p421
    $region92: #{custom-call.17} parent=1 // loop_header_branch
      %870 = sbr.rel (%p422) target = $region96
    $region93: #{custom-call.17} parent=1 // loop_body
      loop: start=0, step=1, limit=7
      $region97: #{custom-call.17} parent=93 // loop_pre_header
        _
      $region98: #{custom-call.17} parent=93 // loop_header
        %s424 = sphi 0, %s428
        %p425 = scmp.ge.s32.totalorder %s424, 7
      $region99: #{custom-call.17} parent=93 // loop_header_branch
        %427 = sbr.rel (%p425) target = $region103
      $region100: #{custom-call.17} parent=93 // loop_body
        #allocation24 [shape = 'f32[1024]{0}', space=vmem, size = 0x1000, scoped, tag = 'a_tl_diag vmem']
        #allocation25 [shape = 'f32[1024]{0}', space=vmem, size = 0x1000, scoped, tag = 'a_tr_diag vmem']
        #allocation26 [shape = 'f32[1024]{0}', space=vmem, size = 0x1000, scoped, tag = 'a_br_diag vmem']
        #allocation27 [shape = 'f32[1024]{0}', space=vmem, size = 0x1000, scoped, tag = 'rt1 vmem']
        #allocation28 [shape = 'f32[1024]{0}', space=vmem, size = 0x1000, scoped, tag = 'rt2 vmem']
        #allocation29 [shape = 'f32[1024]{0}', space=vmem, size = 0x1000, scoped, tag = 'c vmem']
        #allocation30 [shape = 'f32[1024]{0}', space=vmem, size = 0x1000, scoped, tag = 's vmem']
        #allocation31 [shape = 'f32[4096]{0}', space=vmem, size = 0x4000, scoped, tag = 'c broadcast']
        #allocation32 [shape = 'f32[4096]{0}', space=vmem, size = 0x4000, scoped, tag = 's broadcast']
        %s429 = smov [#allocation20]
        %s430 = smov [#allocation24]
        %v431 = vlaneseq
        %v432 = vand.u32 %v431, 127
        %v433 = vmov %v432
        %v434 = vlaneseq
        %v435 = vshrl.u32 %v434, 7
        %v436 = vmov %v435
        %v437 = vld [vmem:[%s429] sm:$0xf]
        %vm440 = vcmp.eq.s32.totalorder %v436, %v433
        %v441 = vsel %vm440, %v437, 0.0
        %v442 = vrot.slane %v441, 4
        %v443 = vadd.f32 %v441, %v442
        %v444 = vrot.slane %v443, 2
        %v445 = vadd.f32 %v443, %v444
        %v446 = vrot.slane %v445, 1
        %v447 = vadd.f32 %v445, %v446
        %448 = vst [vmem:[%s430] sm:$0x1] %v447
        %s449 = smov [#allocation21]
        %s450 = smov [#allocation25]
        %v451 = vlaneseq
        %v452 = vand.u32 %v451, 127
        %v453 = vmov %v452
        %v454 = vlaneseq
        %v455 = vshrl.u32 %v454, 7
        %v456 = vmov %v455
        %v457 = vld [vmem:[%s449] sm:$0xf]
        %vm460 = vcmp.eq.s32.totalorder %v456, %v453
        %v461 = vsel %vm460, %v457, 0.0
        %v462 = vrot.slane %v461, 4
        %v463 = vadd.f32 %v461, %v462
        %v464 = vrot.slane %v463, 2
        %v465 = vadd.f32 %v463, %v464
        %v466 = vrot.slane %v465, 1
        %v467 = vadd.f32 %v465, %v466
        %468 = vst [vmem:[%s450] sm:$0x1] %v467
        %s469 = smov [#allocation23]
        %s470 = smov [#allocation26]
        %v471 = vlaneseq
        %v472 = vand.u32 %v471, 127
        %v473 = vmov %v472
        %v474 = vlaneseq
        %v475 = vshrl.u32 %v474, 7
        %v476 = vmov %v475
        %v477 = vld [vmem:[%s469] sm:$0xf]
        %vm480 = vcmp.eq.s32.totalorder %v476, %v473
        %v481 = vsel %vm480, %v477, 0.0
        %v482 = vrot.slane %v481, 4
        %v483 = vadd.f32 %v481, %v482
        %v484 = vrot.slane %v483, 2
        %v485 = vadd.f32 %v483, %v484
        %v486 = vrot.slane %v485, 1
        %v487 = vadd.f32 %v485, %v486
        %488 = vst [vmem:[%s470] sm:$0x1] %v487
        %s489 = smov [#allocation29]
        %s490 = smov [#allocation30]
        %s491 = smov [#allocation24]
        %v492 = vld [vmem:[%s491] sm:$0xff]
        %s493 = smov [#allocation25]
        %v494 = vld [vmem:[%s493] sm:$0xff]
        %s495 = smov [#allocation26]
        %v496 = vld [vmem:[%s495] sm:$0xff]
        %v497 = vsub.f32 %v496, %v492
        %v498 = vmul.f32 2.0, %v494
        %v499 = vrcp.pop %v498
        %v500 = vmul.f32 %v497, %v499
        %vm501 = vcmp.ge.f32.partialorder %v500, 0.0
        %v502 = vmul.f32 %v500, %v500
        %v503 = vadd.f32 1.0, %v502
        %v504 = vrsqrt.pop %v503
        %v505 = vmul.f32 %v503, %v504
        %vm506 = vcmp.eq.f32.partialorder %v503, inf
        %v507 = vsel %vm506, %v503, %v505
        %vm508 = vcmp.eq.f32.partialorder %v503, 0.0
        %v509 = vand.u32 %v503, 2147483648
        %v510 = vsel %vm508, %v509, %v507
        %v511 = vxor.u32 %v510, 2147483648
        %v512 = vsel %vm501, %v510, %v511
        %v513 = vadd.f32 %v500, %v512
        %v514 = vrcp.pop %v513
        %v515 = vand.u32 2147483647, %v492
        %v516 = vand.u32 2147483647, %v494
        %v517 = vand.u32 2147483647, %v496
        %v518 = vmin.f32 %v515, %v517
        %v519 = vmul.f32 1.1920929e-08, %v518
        %vm520 = vcmp.le.f32.partialorder %v516, %v519
        %v521 = vsel %vm520, 0.0, %v514
        %v522 = vmul.f32 %v521, %v521
        %v523 = vadd.f32 1.0, %v522
        %v524 = vrsqrt.pop %v523
        %v525 = vmul.f32 %v521, %v524
        %v526 = vmul.f32 %v521, %v494
        %v527 = vsub.f32 %v492, %v526
        %v528 = vmul.f32 %v521, %v494
        %v529 = vadd.f32 %v496, %v528
        %s530 = smov [#allocation27]
        %531 = vst [vmem:[%s530] sm:$0xff] %v527
        %s532 = smov [#allocation28]
        %533 = vst [vmem:[%s532] sm:$0xff] %v529
        %s534 = smov %s489
        %535 = vst [vmem:[%s534] sm:$0xff] %v524
        %s536 = smov %s490
        %537 = vst [vmem:[%s536] sm:$0xff] %v525
        %s538 = smov [#allocation29]
        %v539 = vld [vmem:[%s538] ss:$0 sm:$0xff]
        %v540 = vlaneseq
        %v541 = vand.u32 %v540, 127
        %v542 = vmov %v541
        %v543 = vlaneseq
        %v544 = vshrl.u32 %v543, 7
        %v545 = vmov %v544
        %vm547 = vcmp.eq.s32.totalorder %v545, %v542
        %v548 = vsel %vm547, %v539, 0.0
        %549 = vadd.xlane.f32.xlu0 %v548
        %v550 = vpop.xlane.xlu0 %549
        %s551 = smov [#allocation31]
        %552 = vst [vmem:[%s551] sm:$0xff] %v550
        %s553 = smov [#allocation30]
        %v554 = vld [vmem:[%s553] ss:$0 sm:$0xff]
        %v555 = vlaneseq
        %v556 = vand.u32 %v555, 127
        %v557 = vmov %v556
        %v558 = vlaneseq
        %v559 = vshrl.u32 %v558, 7
        %v560 = vmov %v559
        %vm562 = vcmp.eq.s32.totalorder %v560, %v557
        %v563 = vsel %vm562, %v554, 0.0
        %564 = vadd.xlane.f32.xlu0 %v563
        %v565 = vpop.xlane.xlu0 %564
        %s566 = smov [#allocation32]
        %567 = vst [vmem:[%s566] sm:$0xff] %v565
        %s568 = smov [#allocation31]
        %v569 = vld [vmem:[%s568] sm:$0xff]
        %s570 = smov [#allocation32]
        %v571 = vld [vmem:[%s570] sm:$0xff]
        %s572 = smov [#allocation20]
        %s573 = smov [#allocation21]
        %s574 = smov [#allocation22]
        %s575 = smov [#allocation23]
        %v576 = vld [vmem:[%s572] sm:$0xf]
        %v577 = vld [vmem:[%s573] sm:$0xf]
        %v578 = vld [vmem:[%s574] sm:$0xf]
        %v579 = vld [vmem:[%s575] sm:$0xf]
        %v580 = vmul.f32 %v569, %v576
        %v581 = vmul.f32 %v571, %v578
        %v582 = vsub.f32 %v580, %v581
        %v583 = vmul.f32 %v569, %v577
        %v584 = vmul.f32 %v571, %v579
        %v585 = vsub.f32 %v583, %v584
        %v586 = vmul.f32 %v571, %v576
        %v587 = vmul.f32 %v569, %v578
        %v588 = vadd.f32 %v586, %v587
        %v589 = vmul.f32 %v571, %v577
        %v590 = vmul.f32 %v569, %v579
        %v591 = vadd.f32 %v589, %v590
        %592 = vst [vmem:[%s572] sm:$0xf] %v582
        %593 = vst [vmem:[%s573] sm:$0xf] %v585
        %594 = vst [vmem:[%s574] sm:$0xf] %v588
        %595 = vst [vmem:[%s575] sm:$0xf] %v591
        %s596 = smov [#allocation29]
        %v597 = vld [vmem:[%s596] ss:$0 sm:$0xff]
        %s598 = smov [#allocation30]
        %v599 = vld [vmem:[%s598] ss:$0 sm:$0xff]
        %s600 = smov [#allocation20]
        %s601 = smov [#allocation21]
        %s602 = smov [#allocation22]
        %s603 = smov [#allocation23]
        %v604 = vld [vmem:[%s600] sm:$0xf]
        %v605 = vld [vmem:[%s601] sm:$0xf]
        %v606 = vld [vmem:[%s602] sm:$0xf]
        %v607 = vld [vmem:[%s603] sm:$0xf]
        %v608 = vmul.f32 %v597, %v604
        %v609 = vmul.f32 %v599, %v605
        %v610 = vsub.f32 %v608, %v609
        %v611 = vmul.f32 %v599, %v604
        %v612 = vmul.f32 %v597, %v605
        %v613 = vadd.f32 %v611, %v612
        %v614 = vmul.f32 %v597, %v606
        %v615 = vmul.f32 %v599, %v607
        %v616 = vsub.f32 %v614, %v615
        %v617 = vmul.f32 %v599, %v606
        %v618 = vmul.f32 %v597, %v607
        %v619 = vadd.f32 %v617, %v618
        %620 = vst [vmem:[%s600] sm:$0xf] %v610
        %621 = vst [vmem:[%s601] sm:$0xf] %v613
        %622 = vst [vmem:[%s602] sm:$0xf] %v616
        %623 = vst [vmem:[%s603] sm:$0xf] %v619
        %s624 = smov [#allocation20]
        %s625 = smov [#allocation27]
        %v626 = vlaneseq
        %v627 = vand.u32 %v626, 127
        %v628 = vmov %v627
        %v629 = vlaneseq
        %v630 = vshrl.u32 %v629, 7
        %v631 = vmov %v630
        %v632 = vld [vmem:[%s625] ss:$0 sm:$0xff]
        %v633 = vld [vmem:[%s624] sm:$0xf]
        %vm636 = vcmp.eq.s32.totalorder %v631, %v628
        %v637 = vsel %vm636, %v632, %v633
        %638 = vst [vmem:[%s624] sm:$0xf] %v637
        %s639 = smov [#allocation21]
        %v640 = vlaneseq
        %v641 = vand.u32 %v640, 127
        %v642 = vmov %v641
        %v643 = vlaneseq
        %v644 = vshrl.u32 %v643, 7
        %v645 = vmov %v644
        %v646 = vld [vmem:[%s639] sm:$0xf]
        %vm649 = vcmp.eq.s32.totalorder %v645, %v642
        %v650 = vsel %vm649, 0.0, %v646
        %651 = vst [vmem:[%s639] sm:$0xf] %v650
        %s652 = smov [#allocation22]
        %v653 = vlaneseq
        %v654 = vand.u32 %v653, 127
        %v655 = vmov %v654
        %v656 = vlaneseq
        %v657 = vshrl.u32 %v656, 7
        %v658 = vmov %v657
        %v659 = vld [vmem:[%s652] sm:$0xf]
        %vm662 = vcmp.eq.s32.totalorder %v658, %v655
        %v663 = vsel %vm662, 0.0, %v659
        %664 = vst [vmem:[%s652] sm:$0xf] %v663
        %s665 = smov [#allocation23]
        %s666 = smov [#allocation28]
        %v667 = vlaneseq
        %v668 = vand.u32 %v667, 127
        %v669 = vmov %v668
        %v670 = vlaneseq
        %v671 = vshrl.u32 %v670, 7
        %v672 = vmov %v671
        %v673 = vld [vmem:[%s666] ss:$0 sm:$0xff]
        %v674 = vld [vmem:[%s665] sm:$0xf]
        %vm677 = vcmp.eq.s32.totalorder %v672, %v669
        %v678 = vsel %vm677, %v673, %v674
        %679 = vst [vmem:[%s665] sm:$0xf] %v678
        %s680 = smov [#allocation20]
        %s681 = smov [#allocation21]
        %v682 = vld [vmem:[%s681] sm:$0xf]
        %683 = vrot.lane.b32.xlu0 %v682, 1
        %v684 = vpop.permute.xlu0 %683
        %v685 = vld [vmem:[%s680] sm:$0xf]
        %v686 = vld [vmem:[%s680] sm:$0xf]
        %687 = vrot.lane.b32.xlu0 %v686, 1
        %v688 = vpop.permute.xlu0 %687
        %v689 = vlaneseq
        %v690 = vand.u32 %v689, 127
        %vm691 = vcmp.eq.s32.totalorder %v690, 0
        %v692 = vsel %vm691, %v686, %v688
        %v693 = vlaneseq
        %v694 = vand.u32 %v693, 127
        %vm695 = vcmp.eq.s32.totalorder %v694, 1
        %v696 = vsel %vm695, %v684, %v692
        %v697 = vlaneseq
        %v698 = vand.u32 %v697, 127
        %vm699 = vcmp.ge.s32.totalorder %v698, 0
        %vm700 = vcmp.lt.s32.totalorder %v698, 4
        %vm701 = vmand %vm699, %vm700
        %v702 = vsel %vm701, %v696, 0.0
        %v703 = vld [vmem:[%s681] sm:$0xf]
        %704 = vrot.lane.b32.xlu0 %v703, 127
        %v705 = vpop.permute.xlu0 %704
        %v706 = vlaneseq
        %v707 = vand.u32 %v706, 127
        %vm708 = vcmp.eq.s32.totalorder %v707, 3
        %v709 = vsel %vm708, %v685, %v705
        %710 = vst [vmem:[%s680] sm:$0xf] %v702
        %711 = vst [vmem:[%s681] sm:$0xf] %v709
        %s712 = smov [#allocation22]
        %s713 = smov [#allocation23]
        %v714 = vld [vmem:[%s713] sm:$0xf]
        %715 = vrot.lane.b32.xlu0 %v714, 1
        %v716 = vpop.permute.xlu0 %715
        %v717 = vld [vmem:[%s712] sm:$0xf]
        %v718 = vld [vmem:[%s712] sm:$0xf]
        %719 = vrot.lane.b32.xlu0 %v718, 1
        %v720 = vpop.permute.xlu0 %719
        %v721 = vlaneseq
        %v722 = vand.u32 %v721, 127
        %vm723 = vcmp.eq.s32.totalorder %v722, 0
        %v724 = vsel %vm723, %v718, %v720
        %v725 = vlaneseq
        %v726 = vand.u32 %v725, 127
        %vm727 = vcmp.eq.s32.totalorder %v726, 1
        %v728 = vsel %vm727, %v716, %v724
        %v729 = vlaneseq
        %v730 = vand.u32 %v729, 127
        %vm731 = vcmp.ge.s32.totalorder %v730, 0
        %vm732 = vcmp.lt.s32.totalorder %v730, 4
        %vm733 = vmand %vm731, %vm732
        %v734 = vsel %vm733, %v728, 0.0
        %v735 = vld [vmem:[%s713] sm:$0xf]
        %736 = vrot.lane.b32.xlu0 %v735, 127
        %v737 = vpop.permute.xlu0 %736
        %v738 = vlaneseq
        %v739 = vand.u32 %v738, 127
        %vm740 = vcmp.eq.s32.totalorder %v739, 3
        %v741 = vsel %vm740, %v717, %v737
        %742 = vst [vmem:[%s712] sm:$0xf] %v734
        %743 = vst [vmem:[%s713] sm:$0xf] %v741
        %s744 = smov [#allocation20]
        %s745 = smov [#allocation22]
        %v746 = vld [vmem:[%s744] ss:$0 sm:$0xff]
        %s748 = scalar_lea.vmem %s744, 4294967295
        %v749 = vld [vmem:[%s748] sm:$0xe]
        %v750 = vlaneseq
        %v751 = vshrl.u32 %v750, 7
        %vm752 = vcmp.eq.s32.totalorder %v751, 0
        %v753 = vsel %vm752, %v746, %v749
        %s754 = scalar_lea.vmem %s744, 3
        %v755 = vld [vmem:[%s754] ss:$0 sm:$0xff]
        %756 = vst [vmem:[%s744] sm:$0xf] %v753
        %v757 = vld [vmem:[%s745] ss:$0 sm:$0xff]
        %s758 = scalar_lea.vmem %s744, 1
        %759 = vst [vmem:[%s758] sm:$0x1] %v757
        %s760 = scalar_lea.vmem %s745, 1
        %v761 = vld [vmem:[%s760] sm:$0x7]
        %v762 = vlaneseq
        %v763 = vshrl.u32 %v762, 7
        %vm764 = vcmp.eq.s32.totalorder %v763, 3
        %v765 = vsel %vm764, %v755, %v761
        %v766 = vld [vmem:[%s745] ss:$0 sm:$0xff]
        %767 = vst [vmem:[%s745] sm:$0xf] %v765
        %s768 = smov [#allocation21]
        %s769 = smov [#allocation23]
        %v770 = vld [vmem:[%s768] ss:$0 sm:$0xff]
        %s772 = scalar_lea.vmem %s768, 4294967295
        %v773 = vld [vmem:[%s772] sm:$0xe]
        %v774 = vlaneseq
        %v775 = vshrl.u32 %v774, 7
        %vm776 = vcmp.eq.s32.totalorder %v775, 0
        %v777 = vsel %vm776, %v770, %v773
        %s778 = scalar_lea.vmem %s768, 3
        %v779 = vld [vmem:[%s778] ss:$0 sm:$0xff]
        %780 = vst [vmem:[%s768] sm:$0xf] %v777
        %v781 = vld [vmem:[%s769] ss:$0 sm:$0xff]
        %s782 = scalar_lea.vmem %s768, 1
        %783 = vst [vmem:[%s782] sm:$0x1] %v781
        %s784 = scalar_lea.vmem %s769, 1
        %v785 = vld [vmem:[%s784] sm:$0x7]
        %v786 = vlaneseq
        %v787 = vshrl.u32 %v786, 7
        %vm788 = vcmp.eq.s32.totalorder %v787, 3
        %v789 = vsel %vm788, %v779, %v785
        %v790 = vld [vmem:[%s769] ss:$0 sm:$0xff]
        %791 = vst [vmem:[%s769] sm:$0xf] %v789
        %s792 = smov [#allocation31]
        %v793 = vld [vmem:[%s792] sm:$0xff]
        %s794 = smov [#allocation32]
        %v795 = vld [vmem:[%s794] sm:$0xff]
        %s796 = smov [#allocation12]
        %s797 = smov [#allocation14]
        %s798 = smov [#allocation16]
        %s799 = smov [#allocation18]
        %v800 = vld [vmem:[%s796] sm:$0xf]
        %v801 = vld [vmem:[%s797] sm:$0xf]
        %v802 = vld [vmem:[%s798] sm:$0xf]
        %v803 = vld [vmem:[%s799] sm:$0xf]
        %v804 = vmul.f32 %v793, %v800
        %v805 = vmul.f32 %v795, %v802
        %v806 = vsub.f32 %v804, %v805
        %v807 = vmul.f32 %v793, %v801
        %v808 = vmul.f32 %v795, %v803
        %v809 = vsub.f32 %v807, %v808
        %v810 = vmul.f32 %v795, %v800
        %v811 = vmul.f32 %v793, %v802
        %v812 = vadd.f32 %v810, %v811
        %v813 = vmul.f32 %v795, %v801
        %v814 = vmul.f32 %v793, %v803
        %v815 = vadd.f32 %v813, %v814
        %816 = vst [vmem:[%s796] sm:$0xf] %v806
        %817 = vst [vmem:[%s797] sm:$0xf] %v809
        %818 = vst [vmem:[%s798] sm:$0xf] %v812
        %819 = vst [vmem:[%s799] sm:$0xf] %v815
        %s820 = smov [#allocation12]
        %s821 = smov [#allocation16]
        %v822 = vld [vmem:[%s820] ss:$0 sm:$0xff]
        %s824 = scalar_lea.vmem %s820, 4294967295
        %v825 = vld [vmem:[%s824] sm:$0xe]
        %v826 = vlaneseq
        %v827 = vshrl.u32 %v826, 7
        %vm828 = vcmp.eq.s32.totalorder %v827, 0
        %v829 = vsel %vm828, %v822, %v825
        %s830 = scalar_lea.vmem %s820, 3
        %v831 = vld [vmem:[%s830] ss:$0 sm:$0xff]
        %832 = vst [vmem:[%s820] sm:$0xf] %v829
        %v833 = vld [vmem:[%s821] ss:$0 sm:$0xff]
        %s834 = scalar_lea.vmem %s820, 1
        %835 = vst [vmem:[%s834] sm:$0x1] %v833
        %s836 = scalar_lea.vmem %s821, 1
        %v837 = vld [vmem:[%s836] sm:$0x7]
        %v838 = vlaneseq
        %v839 = vshrl.u32 %v838, 7
        %vm840 = vcmp.eq.s32.totalorder %v839, 3
        %v841 = vsel %vm840, %v831, %v837
        %v842 = vld [vmem:[%s821] ss:$0 sm:$0xff]
        %843 = vst [vmem:[%s821] sm:$0xf] %v841
        %s844 = smov [#allocation14]
        %s845 = smov [#allocation18]
        %v846 = vld [vmem:[%s844] ss:$0 sm:$0xff]
        %s848 = scalar_lea.vmem %s844, 4294967295
        %v849 = vld [vmem:[%s848] sm:$0xe]
        %v850 = vlaneseq
        %v851 = vshrl.u32 %v850, 7
        %vm852 = vcmp.eq.s32.totalorder %v851, 0
        %v853 = vsel %vm852, %v846, %v849
        %s854 = scalar_lea.vmem %s844, 3
        %v855 = vld [vmem:[%s854] ss:$0 sm:$0xff]
        %856 = vst [vmem:[%s844] sm:$0xf] %v853
        %v857 = vld [vmem:[%s845] ss:$0 sm:$0xff]
        %s858 = scalar_lea.vmem %s844, 1
        %859 = vst [vmem:[%s858] sm:$0x1] %v857
        %s860 = scalar_lea.vmem %s845, 1
        %v861 = vld [vmem:[%s860] sm:$0x7]
        %v862 = vlaneseq
        %v863 = vshrl.u32 %v862, 7
        %vm864 = vcmp.eq.s32.totalorder %v863, 3
        %v865 = vsel %vm864, %v855, %v861
        %v866 = vld [vmem:[%s845] ss:$0 sm:$0xff]
        %867 = vst [vmem:[%s845] sm:$0xf] %v865
      $region101: #{custom-call.17} parent=93 // loop_footer
        %s428 = sadd.s32 1, %s424
      $region102: #{custom-call.17} parent=93 // loop_footer_branch
        %423 = sbr.rel target = $region98
      $region103: #{custom-call.17} parent=93 // loop_exit
        _
      %s868 = sadd.s32 %s326, 1
    $region94: #{custom-call.17} parent=1 // loop_footer
      _
    $region95: #{custom-call.17} parent=1 // loop_footer_branch
      %325 = sbr.rel target = $region91
    $region96: #{custom-call.17} parent=1 // loop_exit
      _
    %s871 = smov [#allocation20]
    %s872 = smov [#allocation8]
    %v873 = vlaneseq
    %v874 = vand.u32 %v873, 127
    %v875 = vmov %v874
    %v876 = vlaneseq
    %v877 = vshrl.u32 %v876, 7
    %v878 = vmov %v877
    %v879 = vld [vmem:[%s871] sm:$0xf]
    %vm882 = vcmp.eq.s32.totalorder %v878, %v875
    %v883 = vsel %vm882, %v879, 0.0
    %v884 = vrot.slane %v883, 4
    %v885 = vadd.f32 %v883, %v884
    %v886 = vrot.slane %v885, 2
    %v887 = vadd.f32 %v885, %v886
    %v888 = vrot.slane %v887, 1
    %v889 = vadd.f32 %v887, %v888
    %890 = vst [vmem:[%s872] sm:$0x1] %v889
    %s891 = smov [#allocation23]
    %s892 = smov [#allocation10]
    %v893 = vlaneseq
    %v894 = vand.u32 %v893, 127
    %v895 = vmov %v894
    %v896 = vlaneseq
    %v897 = vshrl.u32 %v896, 7
    %v898 = vmov %v897
    %v899 = vld [vmem:[%s891] sm:$0xf]
    %vm902 = vcmp.eq.s32.totalorder %v898, %v895
    %v903 = vsel %vm902, %v899, 0.0
    %v904 = vrot.slane %v903, 4
    %v905 = vadd.f32 %v903, %v904
    %v906 = vrot.slane %v905, 2
    %v907 = vadd.f32 %v905, %v906
    %v908 = vrot.slane %v907, 1
    %v909 = vadd.f32 %v907, %v908
    %910 = vst [vmem:[%s892] sm:$0x1] %v909
    %s912 = sshll.u32 1, 1
    %s913 = ssub.s32 %s912, 1
    %v915 = vld [vmem:[#allocation8] sm:%s913]
    %s916 = sshll.u32 1, 1
    %s917 = ssub.s32 %s916, 1
    %918 = vst [vmem:[#allocation9] sm:%s917] %v915
    %s920 = sshll.u32 1, 1
    %s921 = ssub.s32 %s920, 1
    %v923 = vld [vmem:[#allocation10] sm:%s921]
    %s924 = sshll.u32 1, 1
    %s925 = ssub.s32 %s924, 1
    %926 = vst [vmem:[#allocation11] sm:%s925] %v923
    %s928 = sshll.u32 1, 4
    %s929 = ssub.s32 %s928, 1
    %v931 = vld [vmem:[#allocation12] sm:%s929]
    %s932 = sshll.u32 1, 4
    %s933 = ssub.s32 %s932, 1
    %934 = vst [vmem:[#allocation13] sm:%s933] %v931
    %s936 = sshll.u32 1, 4
    %s937 = ssub.s32 %s936, 1
    %v939 = vld [vmem:[#allocation14] sm:%s937]
    %s940 = sshll.u32 1, 4
    %s941 = ssub.s32 %s940, 1
    %942 = vst [vmem:[#allocation15] sm:%s941] %v939
    %s944 = sshll.u32 1, 4
    %s945 = ssub.s32 %s944, 1
    %v947 = vld [vmem:[#allocation16] sm:%s945]
    %s948 = sshll.u32 1, 4
    %s949 = ssub.s32 %s948, 1
    %950 = vst [vmem:[#allocation17] sm:%s949] %v947
    %s952 = sshll.u32 1, 4
    %s953 = ssub.s32 %s952, 1
    %v955 = vld [vmem:[#allocation18] sm:%s953]
    %s956 = sshll.u32 1, 4
    %s957 = ssub.s32 %s956, 1
    %958 = vst [vmem:[#allocation19] sm:%s957] %v955
    // Predicated region
    $region104: #{custom-call.17} parent=1 // pred_check
      _
    $region105: #{custom-call.17} parent=1 // pred_check_branch
      %960 = sbr.rel (0) target = $region107
    $region106: #{custom-call.17} parent=1 // pred_region
      %p962 = scmp.gt.s32.totalorder 1, 0
      // Predicated region
      $region108: #{custom-call.17} parent=106 // pred_check
        %p963 = pneg %p962
      $region109: #{custom-call.17} parent=106 // pred_check_branch
        %965 = sbr.rel (%p963) target = $region111
      $region110: #{custom-call.17} parent=106 // pred_region
        %s966 = sshra.s32 1, 3
        %p967 = scmp.gt.s32.totalorder %s966, 0
        // Predicated region
        $region112: #{custom-call.17} parent=110 // pred_check
          %p968 = pneg %p967
        $region113: #{custom-call.17} parent=110 // pred_check_branch
          %970 = sbr.rel (%p968) target = $region115
        $region114: #{custom-call.17} parent=110 // pred_region
          %s971 = ssub.s32 %s966, 1
          %s972 = smul.u32 %s971, 128
          %s973 = sshra.s32 %s972, 4
          %s974 = scalar_lea.vmem [#allocation9], %s973
          %v975 = vld [vmem:[#allocation9] sm:$0xff]
          // While loop
          $region116: #{custom-call.17} parent=114 // loop_pre_header
            _
          $region117: #{custom-call.17} parent=114 // loop_header
            %s976 = sphi [#allocation9], %s998
            %s977 = sphi %s4, %s999
            %v978 = vphi %v975, %v1000
            %s979 = ssub.s32 %s974, 64
            %p980 = scmp.gt.s32.totalorder %s976, %s979
          $region118: #{custom-call.17} parent=114 // loop_header_branch
            %982 = sbr.rel (%p980) target = $region122
          $region119: #{custom-call.17} parent=114 // loop_body
            %983 = vst [vmem:[%s977] sm:$0xff] %v978
            %v984 = vld [vmem:[%s976 + $0x8] sm:$0xff]
            %985 = vst [vmem:[%s977 + $0x8] sm:$0xff] %v984
            %v986 = vld [vmem:[%s976 + $0x10] sm:$0xff]
            %987 = vst [vmem:[%s977 + $0x10] sm:$0xff] %v986
            %v988 = vld [vmem:[%s976 + $0x18] sm:$0xff]
            %989 = vst [vmem:[%s977 + $0x18] sm:$0xff] %v988
            %v990 = vld [vmem:[%s976 + $0x20] sm:$0xff]
            %991 = vst [vmem:[%s977 + $0x20] sm:$0xff] %v990
            %v992 = vld [vmem:[%s976 + $0x28] sm:$0xff]
            %993 = vst [vmem:[%s977 + $0x28] sm:$0xff] %v992
            %v994 = vld [vmem:[%s976 + $0x30] sm:$0xff]
            %995 = vst [vmem:[%s977 + $0x30] sm:$0xff] %v994
            %v996 = vld [vmem:[%s976 + $0x38] sm:$0xff]
            %997 = vst [vmem:[%s977 + $0x38] sm:$0xff] %v996
          $region120: #{custom-call.17} parent=114 // loop_footer
            %s998 = scalar_lea.vmem %s976, 64
            %s999 = scalar_lea.vmem %s977, 64
            %v1000 = vld [vmem:[%s976 + $0x40] sm:$0xff]
          $region121: #{custom-call.17} parent=114 // loop_footer_branch
            %1001 = sbr.rel target = $region117
          $region122: #{custom-call.17} parent=114 // loop_exit
            _
          // While loop
          $region123: #{custom-call.17} parent=114 // loop_pre_header
            _
          $region124: #{custom-call.17} parent=114 // loop_header
            %s1002 = sphi %s976, %s1010
            %s1003 = sphi %s977, %s1011
            %v1004 = vphi %v978, %v1004
            %p1005 = scmp.gt.s32.totalorder %s1002, %s974
          $region125: #{custom-call.17} parent=114 // loop_header_branch
            %1007 = sbr.rel (%p1005) target = $region129
          $region126: #{custom-call.17} parent=114 // loop_body
            %v1008 = vld [vmem:[%s1002] sm:$0xff]
            %1009 = vst [vmem:[%s1003] sm:$0xff] %v1008
          $region127: #{custom-call.17} parent=114 // loop_footer
            %s1010 = scalar_lea.vmem %s1002, 8
            %s1011 = scalar_lea.vmem %s1003, 8
          $region128: #{custom-call.17} parent=114 // loop_footer_branch
            %1012 = sbr.rel target = $region124
          $region129: #{custom-call.17} parent=114 // loop_exit
            _
        $region115: #{custom-call.17} parent=110 // pred_fallthru
          _
        %s1013 = sand.u32 1, 7
        %s1014 = sshll.u32 1, %s1013
        %s1015 = ssub.s32 %s1014, 1
        %s1016 = smul.u32 %s966, 128
        %s1017 = sshra.s32 %s1016, 4
        %s1018 = scalar_lea.vmem %s4, %s1017
        %s1019 = smul.u32 %s966, 128
        %s1020 = sshra.s32 %s1019, 4
        %s1021 = scalar_lea.vmem [#allocation9], %s1020
        %v1022 = vld [vmem:[%s1021] sm:%s1015]
        %1023 = vst [vmem:[%s1018] sm:%s1015] %v1022
      $region111: #{custom-call.17} parent=106 // pred_fallthru
        _
    $region107: #{custom-call.17} parent=1 // pred_fallthru
      _
    // Predicated region
    $region130: #{custom-call.17} parent=1 // pred_check
      _
    $region131: #{custom-call.17} parent=1 // pred_check_branch
      %1025 = sbr.rel (0) target = $region133
    $region132: #{custom-call.17} parent=1 // pred_region
      %p1027 = scmp.gt.s32.totalorder 1, 0
      // Predicated region
      $region134: #{custom-call.17} parent=132 // pred_check
        %p1028 = pneg %p1027
      $region135: #{custom-call.17} parent=132 // pred_check_branch
        %1030 = sbr.rel (%p1028) target = $region137
      $region136: #{custom-call.17} parent=132 // pred_region
        %s1031 = sshra.s32 1, 3
        %p1032 = scmp.gt.s32.totalorder %s1031, 0
        // Predicated region
        $region138: #{custom-call.17} parent=136 // pred_check
          %p1033 = pneg %p1032
        $region139: #{custom-call.17} parent=136 // pred_check_branch
          %1035 = sbr.rel (%p1033) target = $region141
        $region140: #{custom-call.17} parent=136 // pred_region
          %s1036 = ssub.s32 %s1031, 1
          %s1037 = smul.u32 %s1036, 128
          %s1038 = sshra.s32 %s1037, 4
          %s1039 = scalar_lea.vmem [#allocation11], %s1038
          %v1040 = vld [vmem:[#allocation11] sm:$0xff]
          // While loop
          $region142: #{custom-call.17} parent=140 // loop_pre_header
            _
          $region143: #{custom-call.17} parent=140 // loop_header
            %s1041 = sphi [#allocation11], %s1063
            %s1042 = sphi %s5, %s1064
            %v1043 = vphi %v1040, %v1065
            %s1044 = ssub.s32 %s1039, 64
            %p1045 = scmp.gt.s32.totalorder %s1041, %s1044
          $region144: #{custom-call.17} parent=140 // loop_header_branch
            %1047 = sbr.rel (%p1045) target = $region148
          $region145: #{custom-call.17} parent=140 // loop_body
            %1048 = vst [vmem:[%s1042] sm:$0xff] %v1043
            %v1049 = vld [vmem:[%s1041 + $0x8] sm:$0xff]
            %1050 = vst [vmem:[%s1042 + $0x8] sm:$0xff] %v1049
            %v1051 = vld [vmem:[%s1041 + $0x10] sm:$0xff]
            %1052 = vst [vmem:[%s1042 + $0x10] sm:$0xff] %v1051
            %v1053 = vld [vmem:[%s1041 + $0x18] sm:$0xff]
            %1054 = vst [vmem:[%s1042 + $0x18] sm:$0xff] %v1053
            %v1055 = vld [vmem:[%s1041 + $0x20] sm:$0xff]
            %1056 = vst [vmem:[%s1042 + $0x20] sm:$0xff] %v1055
            %v1057 = vld [vmem:[%s1041 + $0x28] sm:$0xff]
            %1058 = vst [vmem:[%s1042 + $0x28] sm:$0xff] %v1057
            %v1059 = vld [vmem:[%s1041 + $0x30] sm:$0xff]
            %1060 = vst [vmem:[%s1042 + $0x30] sm:$0xff] %v1059
            %v1061 = vld [vmem:[%s1041 + $0x38] sm:$0xff]
            %1062 = vst [vmem:[%s1042 + $0x38] sm:$0xff] %v1061
          $region146: #{custom-call.17} parent=140 // loop_footer
            %s1063 = scalar_lea.vmem %s1041, 64
            %s1064 = scalar_lea.vmem %s1042, 64
            %v1065 = vld [vmem:[%s1041 + $0x40] sm:$0xff]
          $region147: #{custom-call.17} parent=140 // loop_footer_branch
            %1066 = sbr.rel target = $region143
          $region148: #{custom-call.17} parent=140 // loop_exit
            _
          // While loop
          $region149: #{custom-call.17} parent=140 // loop_pre_header
            _
          $region150: #{custom-call.17} parent=140 // loop_header
            %s1067 = sphi %s1041, %s1075
            %s1068 = sphi %s1042, %s1076
            %v1069 = vphi %v1043, %v1069
            %p1070 = scmp.gt.s32.totalorder %s1067, %s1039
          $region151: #{custom-call.17} parent=140 // loop_header_branch
            %1072 = sbr.rel (%p1070) target = $region155
          $region152: #{custom-call.17} parent=140 // loop_body
            %v1073 = vld [vmem:[%s1067] sm:$0xff]
            %1074 = vst [vmem:[%s1068] sm:$0xff] %v1073
          $region153: #{custom-call.17} parent=140 // loop_footer
            %s1075 = scalar_lea.vmem %s1067, 8
            %s1076 = scalar_lea.vmem %s1068, 8
          $region154: #{custom-call.17} parent=140 // loop_footer_branch
            %1077 = sbr.rel target = $region150
          $region155: #{custom-call.17} parent=140 // loop_exit
            _
        $region141: #{custom-call.17} parent=136 // pred_fallthru
          _
        %s1078 = sand.u32 1, 7
        %s1079 = sshll.u32 1, %s1078
        %s1080 = ssub.s32 %s1079, 1
        %s1081 = smul.u32 %s1031, 128
        %s1082 = sshra.s32 %s1081, 4
        %s1083 = scalar_lea.vmem %s5, %s1082
        %s1084 = smul.u32 %s1031, 128
        %s1085 = sshra.s32 %s1084, 4
        %s1086 = scalar_lea.vmem [#allocation11], %s1085
        %v1087 = vld [vmem:[%s1086] sm:%s1080]
        %1088 = vst [vmem:[%s1083] sm:%s1080] %v1087
      $region137: #{custom-call.17} parent=132 // pred_fallthru
        _
    $region133: #{custom-call.17} parent=1 // pred_fallthru
      _
    %p1090 = scmp.gt.s32.totalorder 4, 0
    // Predicated region
    $region156: #{custom-call.17} parent=1 // pred_check
      %p1091 = pneg %p1090
    $region157: #{custom-call.17} parent=1 // pred_check_branch
      %1093 = sbr.rel (%p1091) target = $region159
    $region158: #{custom-call.17} parent=1 // pred_region
      %s1094 = sshra.s32 4, 3
      %p1095 = scmp.gt.s32.totalorder %s1094, 0
      // Predicated region
      $region160: #{custom-call.17} parent=158 // pred_check
        %p1096 = pneg %p1095
      $region161: #{custom-call.17} parent=158 // pred_check_branch
        %1098 = sbr.rel (%p1096) target = $region163
      $region162: #{custom-call.17} parent=158 // pred_region
        %s1099 = ssub.s32 %s1094, 1
        %s1100 = smul.u32 %s1099, 128
        %s1101 = sshra.s32 %s1100, 4
        %s1102 = scalar_lea.vmem [#allocation13], %s1101
        %v1103 = vld [vmem:[#allocation13] sm:$0xff]
        // While loop
        $region164: #{custom-call.17} parent=162 // loop_pre_header
          _
        $region165: #{custom-call.17} parent=162 // loop_header
          %s1104 = sphi [#allocation13], %s1126
          %s1105 = sphi %s6, %s1127
          %v1106 = vphi %v1103, %v1128
          %s1107 = ssub.s32 %s1102, 64
          %p1108 = scmp.gt.s32.totalorder %s1104, %s1107
        $region166: #{custom-call.17} parent=162 // loop_header_branch
          %1110 = sbr.rel (%p1108) target = $region170
        $region167: #{custom-call.17} parent=162 // loop_body
          %1111 = vst [vmem:[%s1105] sm:$0xff] %v1106
          %v1112 = vld [vmem:[%s1104 + $0x8] sm:$0xff]
          %1113 = vst [vmem:[%s1105 + $0x8] sm:$0xff] %v1112
          %v1114 = vld [vmem:[%s1104 + $0x10] sm:$0xff]
          %1115 = vst [vmem:[%s1105 + $0x10] sm:$0xff] %v1114
          %v1116 = vld [vmem:[%s1104 + $0x18] sm:$0xff]
          %1117 = vst [vmem:[%s1105 + $0x18] sm:$0xff] %v1116
          %v1118 = vld [vmem:[%s1104 + $0x20] sm:$0xff]
          %1119 = vst [vmem:[%s1105 + $0x20] sm:$0xff] %v1118
          %v1120 = vld [vmem:[%s1104 + $0x28] sm:$0xff]
          %1121 = vst [vmem:[%s1105 + $0x28] sm:$0xff] %v1120
          %v1122 = vld [vmem:[%s1104 + $0x30] sm:$0xff]
          %1123 = vst [vmem:[%s1105 + $0x30] sm:$0xff] %v1122
          %v1124 = vld [vmem:[%s1104 + $0x38] sm:$0xff]
          %1125 = vst [vmem:[%s1105 + $0x38] sm:$0xff] %v1124
        $region168: #{custom-call.17} parent=162 // loop_footer
          %s1126 = scalar_lea.vmem %s1104, 64
          %s1127 = scalar_lea.vmem %s1105, 64
          %v1128 = vld [vmem:[%s1104 + $0x40] sm:$0xff]
        $region169: #{custom-call.17} parent=162 // loop_footer_branch
          %1129 = sbr.rel target = $region165
        $region170: #{custom-call.17} parent=162 // loop_exit
          _
        // While loop
        $region171: #{custom-call.17} parent=162 // loop_pre_header
          _
        $region172: #{custom-call.17} parent=162 // loop_header
          %s1130 = sphi %s1104, %s1138
          %s1131 = sphi %s1105, %s1139
          %v1132 = vphi %v1106, %v1132
          %p1133 = scmp.gt.s32.totalorder %s1130, %s1102
        $region173: #{custom-call.17} parent=162 // loop_header_branch
          %1135 = sbr.rel (%p1133) target = $region177
        $region174: #{custom-call.17} parent=162 // loop_body
          %v1136 = vld [vmem:[%s1130] sm:$0xff]
          %1137 = vst [vmem:[%s1131] sm:$0xff] %v1136
        $region175: #{custom-call.17} parent=162 // loop_footer
          %s1138 = scalar_lea.vmem %s1130, 8
          %s1139 = scalar_lea.vmem %s1131, 8
        $region176: #{custom-call.17} parent=162 // loop_footer_branch
          %1140 = sbr.rel target = $region172
        $region177: #{custom-call.17} parent=162 // loop_exit
          _
      $region163: #{custom-call.17} parent=158 // pred_fallthru
        _
      %s1141 = sand.u32 4, 7
      %s1142 = sshll.u32 1, %s1141
      %s1143 = ssub.s32 %s1142, 1
      %s1144 = smul.u32 %s1094, 128
      %s1145 = sshra.s32 %s1144, 4
      %s1146 = scalar_lea.vmem %s6, %s1145
      %s1147 = smul.u32 %s1094, 128
      %s1148 = sshra.s32 %s1147, 4
      %s1149 = scalar_lea.vmem [#allocation13], %s1148
      %v1150 = vld [vmem:[%s1149] sm:%s1143]
      %1151 = vst [vmem:[%s1146] sm:%s1143] %v1150
    $region159: #{custom-call.17} parent=1 // pred_fallthru
      _
    %p1153 = scmp.gt.s32.totalorder 4, 0
    // Predicated region
    $region178: #{custom-call.17} parent=1 // pred_check
      %p1154 = pneg %p1153
    $region179: #{custom-call.17} parent=1 // pred_check_branch
      %1156 = sbr.rel (%p1154) target = $region181
    $region180: #{custom-call.17} parent=1 // pred_region
      %s1157 = sshra.s32 4, 3
      %p1158 = scmp.gt.s32.totalorder %s1157, 0
      // Predicated region
      $region182: #{custom-call.17} parent=180 // pred_check
        %p1159 = pneg %p1158
      $region183: #{custom-call.17} parent=180 // pred_check_branch
        %1161 = sbr.rel (%p1159) target = $region185
      $region184: #{custom-call.17} parent=180 // pred_region
        %s1162 = ssub.s32 %s1157, 1
        %s1163 = smul.u32 %s1162, 128
        %s1164 = sshra.s32 %s1163, 4
        %s1165 = scalar_lea.vmem [#allocation15], %s1164
        %v1166 = vld [vmem:[#allocation15] sm:$0xff]
        // While loop
        $region186: #{custom-call.17} parent=184 // loop_pre_header
          _
        $region187: #{custom-call.17} parent=184 // loop_header
          %s1167 = sphi [#allocation15], %s1189
          %s1168 = sphi %s7, %s1190
          %v1169 = vphi %v1166, %v1191
          %s1170 = ssub.s32 %s1165, 64
          %p1171 = scmp.gt.s32.totalorder %s1167, %s1170
        $region188: #{custom-call.17} parent=184 // loop_header_branch
          %1173 = sbr.rel (%p1171) target = $region192
        $region189: #{custom-call.17} parent=184 // loop_body
          %1174 = vst [vmem:[%s1168] sm:$0xff] %v1169
          %v1175 = vld [vmem:[%s1167 + $0x8] sm:$0xff]
          %1176 = vst [vmem:[%s1168 + $0x8] sm:$0xff] %v1175
          %v1177 = vld [vmem:[%s1167 + $0x10] sm:$0xff]
          %1178 = vst [vmem:[%s1168 + $0x10] sm:$0xff] %v1177
          %v1179 = vld [vmem:[%s1167 + $0x18] sm:$0xff]
          %1180 = vst [vmem:[%s1168 + $0x18] sm:$0xff] %v1179
          %v1181 = vld [vmem:[%s1167 + $0x20] sm:$0xff]
          %1182 = vst [vmem:[%s1168 + $0x20] sm:$0xff] %v1181
          %v1183 = vld [vmem:[%s1167 + $0x28] sm:$0xff]
          %1184 = vst [vmem:[%s1168 + $0x28] sm:$0xff] %v1183
          %v1185 = vld [vmem:[%s1167 + $0x30] sm:$0xff]
          %1186 = vst [vmem:[%s1168 + $0x30] sm:$0xff] %v1185
          %v1187 = vld [vmem:[%s1167 + $0x38] sm:$0xff]
          %1188 = vst [vmem:[%s1168 + $0x38] sm:$0xff] %v1187
        $region190: #{custom-call.17} parent=184 // loop_footer
          %s1189 = scalar_lea.vmem %s1167, 64
          %s1190 = scalar_lea.vmem %s1168, 64
          %v1191 = vld [vmem:[%s1167 + $0x40] sm:$0xff]
        $region191: #{custom-call.17} parent=184 // loop_footer_branch
          %1192 = sbr.rel target = $region187
        $region192: #{custom-call.17} parent=184 // loop_exit
          _
        // While loop
        $region193: #{custom-call.17} parent=184 // loop_pre_header
          _
        $region194: #{custom-call.17} parent=184 // loop_header
          %s1193 = sphi %s1167, %s1201
          %s1194 = sphi %s1168, %s1202
          %v1195 = vphi %v1169, %v1195
          %p1196 = scmp.gt.s32.totalorder %s1193, %s1165
        $region195: #{custom-call.17} parent=184 // loop_header_branch
          %1198 = sbr.rel (%p1196) target = $region199
        $region196: #{custom-call.17} parent=184 // loop_body
          %v1199 = vld [vmem:[%s1193] sm:$0xff]
          %1200 = vst [vmem:[%s1194] sm:$0xff] %v1199
        $region197: #{custom-call.17} parent=184 // loop_footer
          %s1201 = scalar_lea.vmem %s1193, 8
          %s1202 = scalar_lea.vmem %s1194, 8
        $region198: #{custom-call.17} parent=184 // loop_footer_branch
          %1203 = sbr.rel target = $region194
        $region199: #{custom-call.17} parent=184 // loop_exit
          _
      $region185: #{custom-call.17} parent=180 // pred_fallthru
        _
      %s1204 = sand.u32 4, 7
      %s1205 = sshll.u32 1, %s1204
      %s1206 = ssub.s32 %s1205, 1
      %s1207 = smul.u32 %s1157, 128
      %s1208 = sshra.s32 %s1207, 4
      %s1209 = scalar_lea.vmem %s7, %s1208
      %s1210 = smul.u32 %s1157, 128
      %s1211 = sshra.s32 %s1210, 4
      %s1212 = scalar_lea.vmem [#allocation15], %s1211
      %v1213 = vld [vmem:[%s1212] sm:%s1206]
      %1214 = vst [vmem:[%s1209] sm:%s1206] %v1213
    $region181: #{custom-call.17} parent=1 // pred_fallthru
      _
    %p1216 = scmp.gt.s32.totalorder 4, 0
    // Predicated region
    $region200: #{custom-call.17} parent=1 // pred_check
      %p1217 = pneg %p1216
    $region201: #{custom-call.17} parent=1 // pred_check_branch
      %1219 = sbr.rel (%p1217) target = $region203
    $region202: #{custom-call.17} parent=1 // pred_region
      %s1220 = sshra.s32 4, 3
      %p1221 = scmp.gt.s32.totalorder %s1220, 0
      // Predicated region
      $region204: #{custom-call.17} parent=202 // pred_check
        %p1222 = pneg %p1221
      $region205: #{custom-call.17} parent=202 // pred_check_branch
        %1224 = sbr.rel (%p1222) target = $region207
      $region206: #{custom-call.17} parent=202 // pred_region
        %s1225 = ssub.s32 %s1220, 1
        %s1226 = smul.u32 %s1225, 128
        %s1227 = sshra.s32 %s1226, 4
        %s1228 = scalar_lea.vmem [#allocation17], %s1227
        %v1229 = vld [vmem:[#allocation17] sm:$0xff]
        // While loop
        $region208: #{custom-call.17} parent=206 // loop_pre_header
          _
        $region209: #{custom-call.17} parent=206 // loop_header
          %s1230 = sphi [#allocation17], %s1252
          %s1231 = sphi %s8, %s1253
          %v1232 = vphi %v1229, %v1254
          %s1233 = ssub.s32 %s1228, 64
          %p1234 = scmp.gt.s32.totalorder %s1230, %s1233
        $region210: #{custom-call.17} parent=206 // loop_header_branch
          %1236 = sbr.rel (%p1234) target = $region214
        $region211: #{custom-call.17} parent=206 // loop_body
          %1237 = vst [vmem:[%s1231] sm:$0xff] %v1232
          %v1238 = vld [vmem:[%s1230 + $0x8] sm:$0xff]
          %1239 = vst [vmem:[%s1231 + $0x8] sm:$0xff] %v1238
          %v1240 = vld [vmem:[%s1230 + $0x10] sm:$0xff]
          %1241 = vst [vmem:[%s1231 + $0x10] sm:$0xff] %v1240
          %v1242 = vld [vmem:[%s1230 + $0x18] sm:$0xff]
          %1243 = vst [vmem:[%s1231 + $0x18] sm:$0xff] %v1242
          %v1244 = vld [vmem:[%s1230 + $0x20] sm:$0xff]
          %1245 = vst [vmem:[%s1231 + $0x20] sm:$0xff] %v1244
          %v1246 = vld [vmem:[%s1230 + $0x28] sm:$0xff]
          %1247 = vst [vmem:[%s1231 + $0x28] sm:$0xff] %v1246
          %v1248 = vld [vmem:[%s1230 + $0x30] sm:$0xff]
          %1249 = vst [vmem:[%s1231 + $0x30] sm:$0xff] %v1248
          %v1250 = vld [vmem:[%s1230 + $0x38] sm:$0xff]
          %1251 = vst [vmem:[%s1231 + $0x38] sm:$0xff] %v1250
        $region212: #{custom-call.17} parent=206 // loop_footer
          %s1252 = scalar_lea.vmem %s1230, 64
          %s1253 = scalar_lea.vmem %s1231, 64
          %v1254 = vld [vmem:[%s1230 + $0x40] sm:$0xff]
        $region213: #{custom-call.17} parent=206 // loop_footer_branch
          %1255 = sbr.rel target = $region209
        $region214: #{custom-call.17} parent=206 // loop_exit
          _
        // While loop
        $region215: #{custom-call.17} parent=206 // loop_pre_header
          _
        $region216: #{custom-call.17} parent=206 // loop_header
          %s1256 = sphi %s1230, %s1264
          %s1257 = sphi %s1231, %s1265
          %v1258 = vphi %v1232, %v1258
          %p1259 = scmp.gt.s32.totalorder %s1256, %s1228
        $region217: #{custom-call.17} parent=206 // loop_header_branch
          %1261 = sbr.rel (%p1259) target = $region221
        $region218: #{custom-call.17} parent=206 // loop_body
          %v1262 = vld [vmem:[%s1256] sm:$0xff]
          %1263 = vst [vmem:[%s1257] sm:$0xff] %v1262
        $region219: #{custom-call.17} parent=206 // loop_footer
          %s1264 = scalar_lea.vmem %s1256, 8
          %s1265 = scalar_lea.vmem %s1257, 8
        $region220: #{custom-call.17} parent=206 // loop_footer_branch
          %1266 = sbr.rel target = $region216
        $region221: #{custom-call.17} parent=206 // loop_exit
          _
      $region207: #{custom-call.17} parent=202 // pred_fallthru
        _
      %s1267 = sand.u32 4, 7
      %s1268 = sshll.u32 1, %s1267
      %s1269 = ssub.s32 %s1268, 1
      %s1270 = smul.u32 %s1220, 128
      %s1271 = sshra.s32 %s1270, 4
      %s1272 = scalar_lea.vmem %s8, %s1271
      %s1273 = smul.u32 %s1220, 128
      %s1274 = sshra.s32 %s1273, 4
      %s1275 = scalar_lea.vmem [#allocation17], %s1274
      %v1276 = vld [vmem:[%s1275] sm:%s1269]
      %1277 = vst [vmem:[%s1272] sm:%s1269] %v1276
    $region203: #{custom-call.17} parent=1 // pred_fallthru
      _
    %p1279 = scmp.gt.s32.totalorder 4, 0
    // Predicated region
    $region222: #{custom-call.17} parent=1 // pred_check
      %p1280 = pneg %p1279
    $region223: #{custom-call.17} parent=1 // pred_check_branch
      %1282 = sbr.rel (%p1280) target = $region225
    $region224: #{custom-call.17} parent=1 // pred_region
      %s1283 = sshra.s32 4, 3
      %p1284 = scmp.gt.s32.totalorder %s1283, 0
      // Predicated region
      $region226: #{custom-call.17} parent=224 // pred_check
        %p1285 = pneg %p1284
      $region227: #{custom-call.17} parent=224 // pred_check_branch
        %1287 = sbr.rel (%p1285) target = $region229
      $region228: #{custom-call.17} parent=224 // pred_region
        %s1288 = ssub.s32 %s1283, 1
        %s1289 = smul.u32 %s1288, 128
        %s1290 = sshra.s32 %s1289, 4
        %s1291 = scalar_lea.vmem [#allocation19], %s1290
        %v1292 = vld [vmem:[#allocation19] sm:$0xff]
        // While loop
        $region230: #{custom-call.17} parent=228 // loop_pre_header
          _
        $region231: #{custom-call.17} parent=228 // loop_header
          %s1293 = sphi [#allocation19], %s1315
          %s1294 = sphi %s9, %s1316
          %v1295 = vphi %v1292, %v1317
          %s1296 = ssub.s32 %s1291, 64
          %p1297 = scmp.gt.s32.totalorder %s1293, %s1296
        $region232: #{custom-call.17} parent=228 // loop_header_branch
          %1299 = sbr.rel (%p1297) target = $region236
        $region233: #{custom-call.17} parent=228 // loop_body
          %1300 = vst [vmem:[%s1294] sm:$0xff] %v1295
          %v1301 = vld [vmem:[%s1293 + $0x8] sm:$0xff]
          %1302 = vst [vmem:[%s1294 + $0x8] sm:$0xff] %v1301
          %v1303 = vld [vmem:[%s1293 + $0x10] sm:$0xff]
          %1304 = vst [vmem:[%s1294 + $0x10] sm:$0xff] %v1303
          %v1305 = vld [vmem:[%s1293 + $0x18] sm:$0xff]
          %1306 = vst [vmem:[%s1294 + $0x18] sm:$0xff] %v1305
          %v1307 = vld [vmem:[%s1293 + $0x20] sm:$0xff]
          %1308 = vst [vmem:[%s1294 + $0x20] sm:$0xff] %v1307
          %v1309 = vld [vmem:[%s1293 + $0x28] sm:$0xff]
          %1310 = vst [vmem:[%s1294 + $0x28] sm:$0xff] %v1309
          %v1311 = vld [vmem:[%s1293 + $0x30] sm:$0xff]
          %1312 = vst [vmem:[%s1294 + $0x30] sm:$0xff] %v1311
          %v1313 = vld [vmem:[%s1293 + $0x38] sm:$0xff]
          %1314 = vst [vmem:[%s1294 + $0x38] sm:$0xff] %v1313
        $region234: #{custom-call.17} parent=228 // loop_footer
          %s1315 = scalar_lea.vmem %s1293, 64
          %s1316 = scalar_lea.vmem %s1294, 64
          %v1317 = vld [vmem:[%s1293 + $0x40] sm:$0xff]
        $region235: #{custom-call.17} parent=228 // loop_footer_branch
          %1318 = sbr.rel target = $region231
        $region236: #{custom-call.17} parent=228 // loop_exit
          _
        // While loop
        $region237: #{custom-call.17} parent=228 // loop_pre_header
          _
        $region238: #{custom-call.17} parent=228 // loop_header
          %s1319 = sphi %s1293, %s1327
          %s1320 = sphi %s1294, %s1328
          %v1321 = vphi %v1295, %v1321
          %p1322 = scmp.gt.s32.totalorder %s1319, %s1291
        $region239: #{custom-call.17} parent=228 // loop_header_branch
          %1324 = sbr.rel (%p1322) target = $region243
        $region240: #{custom-call.17} parent=228 // loop_body
          %v1325 = vld [vmem:[%s1319] sm:$0xff]
          %1326 = vst [vmem:[%s1320] sm:$0xff] %v1325
        $region241: #{custom-call.17} parent=228 // loop_footer
          %s1327 = scalar_lea.vmem %s1319, 8
          %s1328 = scalar_lea.vmem %s1320, 8
        $region242: #{custom-call.17} parent=228 // loop_footer_branch
          %1329 = sbr.rel target = $region238
        $region243: #{custom-call.17} parent=228 // loop_exit
          _
      $region229: #{custom-call.17} parent=224 // pred_fallthru
        _
      %s1330 = sand.u32 4, 7
      %s1331 = sshll.u32 1, %s1330
      %s1332 = ssub.s32 %s1331, 1
      %s1333 = smul.u32 %s1283, 128
      %s1334 = sshra.s32 %s1333, 4
      %s1335 = scalar_lea.vmem %s9, %s1334
      %s1336 = smul.u32 %s1283, 128
      %s1337 = sshra.s32 %s1336, 4
      %s1338 = scalar_lea.vmem [#allocation19], %s1337
      %v1339 = vld [vmem:[%s1338] sm:%s1332]
      %1340 = vst [vmem:[%s1335] sm:%s1332] %v1339
    $region225: #{custom-call.17} parent=1 // pred_fallthru
      _
    // Predicated region
    $region244: #{custom-call.17} parent=1 // pred_check
      _
    $region245: #{custom-call.17} parent=1 // pred_check_branch
      %1342 = sbr.rel (0) target = $region247
    $region246: #{custom-call.17} parent=1 // pred_region
      _
    $region247: #{custom-call.17} parent=1 // pred_fallthru
      _
    // Predicated region
    $region248: #{custom-call.17} parent=1 // pred_check
      _
    $region249: #{custom-call.17} parent=1 // pred_check_branch
      %1344 = sbr.rel (0) target = $region251
    $region250: #{custom-call.17} parent=1 // pred_region
      _
    $region251: #{custom-call.17} parent=1 // pred_fallthru
      _

// kernel: reverse
$region0: #{reverse}
  %s0 = inlined_call_operand.vmem [shape: f32[8], index: 0, kind: input, shape index: {}]
  %s1 = inlined_call_operand.vmem [shape: f32[8], index: 1, kind: output, shape index: {}]
  %v2 = vlaneseq
  %v3 = vsub.s32 7, %v2
  %4 = vset.pattern.permute.xlu0 %v3
  $region1: #{reverse} parent=0
    #allocation0 [shape = 'u8[8192]{0}', space=vmem, size = 0x2000, scoped, tag = 'operand span for operand 0']
    #allocation1 [shape = 'u8[1024]{0}', space=vmem, size = 0x400, scoped, tag = 'packed  for operand 0']
    #allocation2 [shape = 'u8[4096]{0}', space=vmem, size = 0x1000, scoped, tag = 'operand span for operand 1']
    #allocation3 [shape = 'u8[512]{0}', space=vmem, size = 0x400, scoped, tag = 'packed  for operand 1']
    %s5 = scalar_lea.vmem [#allocation1], 1
    // Predicated region
    $region2: #{reverse} parent=1 // pred_check
      _
    $region3: #{reverse} parent=1 // pred_check_branch
      %7 = sbr.rel (0) target = $region5
    $region4: #{reverse} parent=1 // pred_region
      // Predicated region
      $region6: #{reverse} parent=4 // pred_check
        _
      $region7: #{reverse} parent=4 // pred_check_branch
        %9 = sbr.rel target = $region9
      $region8: #{reverse} parent=4 // pred_region
        // Predicated region
        $region21: #{reverse} parent=8 // pred_check
          _
        $region22: #{reverse} parent=8 // pred_check_branch
          %25 = sbr.rel (0) target = $region24
        $region23: #{reverse} parent=8 // pred_region
          %s27 = ssub.s32 2, 1
          loop: start=0, step=1, limit=1
          $region25: #{reverse} parent=23 // loop_pre_header
            _
          $region26: #{reverse} parent=23 // loop_header
            %s29 = sphi 0, %s33
            %p30 = scmp.ge.s32.totalorder %s29, 1
            %s34 = sphi %s0, %s0
            %s35 = sphi %s5, %s5
          $region27: #{reverse} parent=23 // loop_header_branch
            %32 = sbr.rel (%p30) target = $region31
          $region28: #{reverse} parent=23 // loop_body
            %v36 = vld [vmem:[%s34] sm:%s27]
            %37 = vst [vmem:[%s35] sm:%s27] %v36
          $region29: #{reverse} parent=23 // loop_footer
            %s33 = sadd.s32 1, %s29
          $region30: #{reverse} parent=23 // loop_footer_branch
            %28 = sbr.rel target = $region26
          $region31: #{reverse} parent=23 // loop_exit
            _
        $region24: #{reverse} parent=8 // pred_fallthru
          _
      $region9: #{reverse} parent=4 // pred_fallthru
        _
      // Predicated region
      $region10: #{reverse} parent=4 // pred_check
        _
      $region11: #{reverse} parent=4 // pred_check_branch
        %11 = sbr.rel (0) target = $region13
      $region12: #{reverse} parent=4 // pred_region
        %s13 = ssub.s32 2, 1
        loop: start=0, step=1, limit=1
        $region14: #{reverse} parent=12 // loop_pre_header
          _
        $region15: #{reverse} parent=12 // loop_header
          %s15 = sphi 0, %s19
          %p16 = scmp.ge.s32.totalorder %s15, 1
          %s20 = sphi %s0, %s0
          %s21 = sphi %s5, %s5
        $region16: #{reverse} parent=12 // loop_header_branch
          %18 = sbr.rel (%p16) target = $region20
        $region17: #{reverse} parent=12 // loop_body
          %v22 = vld [vmem:[%s20] sm:%s13]
          %23 = vst [vmem:[%s21] sm:%s13] %v22
        $region18: #{reverse} parent=12 // loop_footer
          %s19 = sadd.s32 1, %s15
        $region19: #{reverse} parent=12 // loop_footer_branch
          %14 = sbr.rel target = $region15
        $region20: #{reverse} parent=12 // loop_exit
          _
      $region13: #{reverse} parent=4 // pred_fallthru
        _
    $region5: #{reverse} parent=1 // pred_fallthru
      _
    %38 = vnop
    %s40 = sshll.u32 1, 1
    %s41 = ssub.s32 %s40, 1
    %s42 = scalar_lea.vmem [#allocation1], 1
    %v43 = vld [vmem:[%s42] sm:%s41]
    %s44 = scalar_lea.vmem [#allocation0], 8
    %45 = vst [vmem:[%s44] sm:%s41] %v43
    %v46 = vld [vmem:[#allocation1] sm:%s41]
    %47 = vst [vmem:[#allocation0] sm:%s41] %v46
    %s48 = scalar_lea.vmem [#allocation0], 7
    %v49 = vld [vmem:[%s48] ss:$-1 sm:$0xff]
    %v50 = vrot.slane %v49, 7
    %51 = vperm.xlu0 %4, %v50
    %v52 = vpop.permute.xlu0 %51
    %53 = vst [vmem:[#allocation2] sm:$0xff] %v52
    %s54 = scalar_lea.vmem [#allocation0], 8
    %s55 = scalar_lea.vmem %s54, 7 [#allocation0]
    %v56 = vld [vmem:[%s55] ss:$-1 sm:$0xff]
    %v57 = vrot.slane %v56, 7
    %58 = vperm.xlu0 %4, %v57
    %v59 = vpop.permute.xlu0 %58
    %v60 = vlaneseq
    %v61 = vshrl.u32 %v60, 7
    %vm62 = vcmp.lt.s32.totalorder %v61, 1
    %63 = vst.msk [vmem:[#allocation2] sm:$0xff] %vm62, %v59
    %s65 = sshll.u32 1, 1
    %s66 = ssub.s32 %s65, 1
    %v68 = vld [vmem:[#allocation2] sm:%s66]
    %s69 = sshll.u32 1, 1
    %s70 = ssub.s32 %s69, 1
    %71 = vst [vmem:[#allocation3] sm:%s70] %v68
    // Predicated region
    $region32: #{reverse} parent=1 // pred_check
      _
    $region33: #{reverse} parent=1 // pred_check_branch
      %73 = sbr.rel (0) target = $region35
    $region34: #{reverse} parent=1 // pred_region
      // Predicated region
      $region36: #{reverse} parent=34 // pred_check
        _
      $region37: #{reverse} parent=34 // pred_check_branch
        %75 = sbr.rel target = $region39
      $region38: #{reverse} parent=34 // pred_region
        // Predicated region
        $region51: #{reverse} parent=38 // pred_check
          _
        $region52: #{reverse} parent=38 // pred_check_branch
          %91 = sbr.rel (0) target = $region54
        $region53: #{reverse} parent=38 // pred_region
          %s93 = ssub.s32 2, 1
          loop: start=0, step=1, limit=1
          $region55: #{reverse} parent=53 // loop_pre_header
            _
          $region56: #{reverse} parent=53 // loop_header
            %s95 = sphi 0, %s99
            %p96 = scmp.ge.s32.totalorder %s95, 1
            %s100 = sphi [#allocation3], [#allocation3]
            %s101 = sphi %s1, %s1
          $region57: #{reverse} parent=53 // loop_header_branch
            %98 = sbr.rel (%p96) target = $region61
          $region58: #{reverse} parent=53 // loop_body
            %v102 = vld [vmem:[%s100] sm:%s93]
            %103 = vst [vmem:[%s101] sm:%s93] %v102
          $region59: #{reverse} parent=53 // loop_footer
            %s99 = sadd.s32 1, %s95
          $region60: #{reverse} parent=53 // loop_footer_branch
            %94 = sbr.rel target = $region56
          $region61: #{reverse} parent=53 // loop_exit
            _
        $region54: #{reverse} parent=38 // pred_fallthru
          _
      $region39: #{reverse} parent=34 // pred_fallthru
        _
      // Predicated region
      $region40: #{reverse} parent=34 // pred_check
        _
      $region41: #{reverse} parent=34 // pred_check_branch
        %77 = sbr.rel (0) target = $region43
      $region42: #{reverse} parent=34 // pred_region
        %s79 = ssub.s32 2, 1
        loop: start=0, step=1, limit=1
        $region44: #{reverse} parent=42 // loop_pre_header
          _
        $region45: #{reverse} parent=42 // loop_header
          %s81 = sphi 0, %s85
          %p82 = scmp.ge.s32.totalorder %s81, 1
          %s86 = sphi [#allocation3], [#allocation3]
          %s87 = sphi %s1, %s1
        $region46: #{reverse} parent=42 // loop_header_branch
          %84 = sbr.rel (%p82) target = $region50
        $region47: #{reverse} parent=42 // loop_body
          %v88 = vld [vmem:[%s86] sm:%s79]
          %89 = vst [vmem:[%s87] sm:%s79] %v88
        $region48: #{reverse} parent=42 // loop_footer
          %s85 = sadd.s32 1, %s81
        $region49: #{reverse} parent=42 // loop_footer_branch
          %80 = sbr.rel target = $region45
        $region50: #{reverse} parent=42 // loop_exit
          _
      $region43: #{reverse} parent=34 // pred_fallthru
        _
    $region35: #{reverse} parent=1 // pred_fallthru
      _
    %104 = vnop

// kernel: custom-call.10
$region0: #{custom-call.10}
  %s0 = inlined_call_operand.vmem [shape: f32[8,8], index: 0, kind: input, shape index: {}]
  %s1 = inlined_call_operand.vmem [shape: f32[8,8], index: 1, kind: output, shape index: {0}]
  %s2 = inlined_call_operand.vmem [shape: f32[8], index: 2, kind: output, shape index: {1}]
  %3 = xla_tuple %s1, %s2
  $region1: #{custom-call.10} parent=0
    #allocation0 [shape = 'u8[4096]{0}', space=vmem, size = 0x1000, scoped, tag = 'operand span for operand 0']
    #allocation1 [shape = 'u8[4096]{0}', space=vmem, size = 0x1000, scoped, tag = 'operand span for operand 1']
    #allocation2 [shape = 'u8[4096]{0}', space=vmem, size = 0x1000, scoped, tag = 'operand span for operand 2']
    #allocation3 [shape = 'u8[512]{0}', space=vmem, size = 0x400, scoped, tag = 'packed  for operand 2']
    #allocation4 [shape = 'f32[8,128]{1,0}', space=vmem, size = 0x1000, scoped, tag = 'scratch for Householder reflectors']
    // Predicated region
    $region2: #{custom-call.10} parent=1 // pred_check
      _
    $region3: #{custom-call.10} parent=1 // pred_check_branch
      %5 = sbr.rel (0) target = $region5
    $region4: #{custom-call.10} parent=1 // pred_region
      // Predicated region
      $region6: #{custom-call.10} parent=4 // pred_check
        _
      $region7: #{custom-call.10} parent=4 // pred_check_branch
        %7 = sbr.rel (0) target = $region9
      $region8: #{custom-call.10} parent=4 // pred_region
        // Predicated region
        $region21: #{custom-call.10} parent=8 // pred_check
          _
        $region22: #{custom-call.10} parent=8 // pred_check_branch
          %23 = sbr.rel (0) target = $region24
        $region23: #{custom-call.10} parent=8 // pred_region
          loop: start=0, step=1, limit=1
          $region25: #{custom-call.10} parent=23 // loop_pre_header
            _
          $region26: #{custom-call.10} parent=23 // loop_header
            %s25 = sphi 0, %s29
            %p26 = scmp.ge.s32.totalorder %s25, 1
            %s30 = sphi %s0, %s0
            %s31 = sphi [#allocation0], [#allocation0]
          $region27: #{custom-call.10} parent=23 // loop_header_branch
            %28 = sbr.rel (%p26) target = $region31
          $region28: #{custom-call.10} parent=23 // loop_body
            %v32 = vld [vmem:[%s30] sm:$0xff]
            %33 = vst [vmem:[%s31] sm:$0xff] %v32
          $region29: #{custom-call.10} parent=23 // loop_footer
            %s29 = sadd.s32 1, %s25
          $region30: #{custom-call.10} parent=23 // loop_footer_branch
            %24 = sbr.rel target = $region26
          $region31: #{custom-call.10} parent=23 // loop_exit
            _
        $region24: #{custom-call.10} parent=8 // pred_fallthru
          _
        // Predicated region
        $region32: #{custom-call.10} parent=8 // pred_check
          _
        $region33: #{custom-call.10} parent=8 // pred_check_branch
          %35 = sbr.rel target = $region35
        $region34: #{custom-call.10} parent=8 // pred_region
          _
        $region35: #{custom-call.10} parent=8 // pred_fallthru
          _
      $region9: #{custom-call.10} parent=4 // pred_fallthru
        _
      // Predicated region
      $region10: #{custom-call.10} parent=4 // pred_check
        _
      $region11: #{custom-call.10} parent=4 // pred_check_branch
        %9 = sbr.rel target = $region13
      $region12: #{custom-call.10} parent=4 // pred_region
        %s11 = ssub.s32 256, 1
        loop: start=0, step=1, limit=1
        $region14: #{custom-call.10} parent=12 // loop_pre_header
          _
        $region15: #{custom-call.10} parent=12 // loop_header
          %s13 = sphi 0, %s17
          %p14 = scmp.ge.s32.totalorder %s13, 1
          %s18 = sphi %s0, %s0
          %s19 = sphi [#allocation0], [#allocation0]
        $region16: #{custom-call.10} parent=12 // loop_header_branch
          %16 = sbr.rel (%p14) target = $region20
        $region17: #{custom-call.10} parent=12 // loop_body
          %v20 = vld [vmem:[%s18] sm:%s11]
          %21 = vst [vmem:[%s19] sm:%s11] %v20
        $region18: #{custom-call.10} parent=12 // loop_footer
          %s17 = sadd.s32 1, %s13
        $region19: #{custom-call.10} parent=12 // loop_footer_branch
          %12 = sbr.rel target = $region15
        $region20: #{custom-call.10} parent=12 // loop_exit
          _
      $region13: #{custom-call.10} parent=4 // pred_fallthru
        _
    $region5: #{custom-call.10} parent=1 // pred_fallthru
      _
    %36 = vnop
    %v37 = vld [vmem:[#allocation0] sm:$0xff]
    %38 = vst [vmem:[#allocation1] sm:$0xff] %v37
    %39 = vst [vmem:[#allocation2] sm:$0x1] 0.0
    loop: start=0, step=1, limit=8
    $region36: #{custom-call.10} parent=1 // loop_pre_header
      _
    $region37: #{custom-call.10} parent=1 // loop_header
      %s41 = sphi 0, %s45
      %p42 = scmp.ge.s32.totalorder %s41, 8
    $region38: #{custom-call.10} parent=1 // loop_header_branch
      %44 = sbr.rel (%p42) target = $region42
    $region39: #{custom-call.10} parent=1 // loop_body
      %v46 = vld [vmem:[#allocation1] sm:$0xff]
      %v47 = vlaneseq
      %v48 = vshrl.u32 %v47, 7
      %v50 = vstv %s41
      %vm51 = vcmp.gt.s32.totalorder %v48, %v50
      %vm52 = vcmp.lt.s32.totalorder %v48, 8
      %vm53 = vmand %vm51, %vm52
      %v54 = vsel %vm53, %v46, 0.0
      %v55 = vmul.f32 %v54, %v54
      %v56 = vrot.slane %v55, 4
      %v57 = vadd.f32 %v55, %v56
      %v58 = vrot.slane %v57, 2
      %v59 = vadd.f32 %v57, %v58
      %v60 = vrot.slane %v59, 1
      %v61 = vadd.f32 %v59, %v60
      %v62 = vrsqrt.pop %v61
      %v63 = vmul.f32 %v61, %v62
      %vm64 = vcmp.eq.f32.partialorder %v61, inf
      %v65 = vsel %vm64, %v61, %v63
      %vm66 = vcmp.eq.f32.partialorder %v61, 0.0
      %v67 = vand.u32 %v61, 2147483648
      %v68 = vsel %vm66, %v67, %v65
      %vm69 = vcmp.eq.f32.partialorder %v61, 0.0
      %s70 = sshrl.u32 %s41, 3
      %s71 = sand.u32 %s41, 7
      %s72 = smul.addr %s70, 8
      %s73 = sadd.s32 %s71, %s72
      %s74 = scalar_lea.vmem [#allocation1], %s73
      %v75 = vld [vmem:[%s74] ss:$0 sm:$0xff]
      %v76 = vand.u32 2147483647, %v75
      %v77 = vmax.f32 %v76, 0.0
      %v78 = vand.u32 2147483647, %v68
      %v79 = vmax.f32 %v77, %v78
      %v80 = vrcp.pop %v79
      %v81 = vmul.f32 %v76, %v80
      %v82 = vmul.f32 %v81, %v81
      %v83 = vrcp.pop %v79
      %v84 = vmul.f32 0.0, %v83
      %v85 = vmul.f32 %v84, %v84
      %v86 = vadd.f32 %v82, %v85
      %v87 = vrcp.pop %v79
      %v88 = vmul.f32 %v78, %v87
      %v89 = vmul.f32 %v88, %v88
      %v90 = vadd.f32 %v86, %v89
      %vm91 = vcmp.eq.f32.partialorder %v79, 0.0
      %v92 = vrsqrt.pop %v90
      %v93 = vmul.f32 %v90, %v92
      %vm94 = vcmp.eq.f32.partialorder %v90, inf
      %v95 = vsel %vm94, %v90, %v93
      %vm96 = vcmp.eq.f32.partialorder %v90, 0.0
      %v97 = vand.u32 %v90, 2147483648
      %v98 = vsel %vm96, %v97, %v95
      %v99 = vmul.f32 %v79, %v98
      %v100 = vsel %vm91, 0.0, %v99
      %vm101 = vcmp.lt.f32.partialorder %v75, 0.0
      %v102 = vxor.u32 %v100, 2147483648
      %v103 = vsel %vm101, %v100, %v102
      %v104 = vsub.f32 %v103, %v75
      %v105 = vrcp.pop %v103
      %v106 = vmul.f32 %v104, %v105
      %v107 = vsel %vm69, %v75, %v103
      %v108 = vsel %vm69, 0.0, %v106
      %v109 = vsub.f32 %v75, %v107
      %s110 = smov [#allocation1]
      %v111 = vlaneseq
      %v112 = vshrl.u32 %v111, 7
      %v113 = vmov %v112
      %v114 = vld [vmem:[%s110] sm:$0xff]
      %v116 = vstv %s41
      %vm117 = vcmp.gt.s32.totalorder %v113, %v116
      %vm118 = vcmp.lt.s32.totalorder %v113, 8
      %vm119 = vmand %vm117, %vm118
      %v120 = vsel %vm119, %v114, 0.0
      %v121 = vrcp.pop %v109
      %v122 = vmul.f32 %v120, %v121
      %v123 = vsel %vm69, 0.0, %v122
      %v124 = vstv %s41
      %v125 = vlaneseq
      %v126 = vand.u32 %v125, 127
      %vm127 = vcmp.eq.s32.totalorder %v126, %v124
      %v128 = vsel %vm127, %v123, 0.0
      %129 = vadd.xlane.f32.xlu0 %v128
      %v130 = vpop.xlane.xlu0 %129
      %131 = vst [vmem:[#allocation4] sm:$0xff] %v130
      %s132 = scalar_lea.vmem [#allocation4], %s41
      %133 = vst [vmem:[%s132] sm:$0x1] 1.0
      %v134 = vstv %s41
      %v135 = vlaneseq
      %v136 = vand.u32 %v135, 127
      %vm137 = vcmp.eq.s32.totalorder %v136, %v134
      %v138 = vsel %vm137, %v108, 0.0
      %139 = vadd.xlane.f32.xlu0 %v138
      %v140 = vpop.xlane.xlu0 %139
      %v141 = vstv %s41
      %v142 = vlaneseq
      %v143 = vand.u32 %v142, 127
      %vm144 = vcmp.eq.s32.totalorder %v143, %v141
      %v145 = vld [vmem:[#allocation2] ss:$0 sm:$0xff]
      %v146 = vsel %vm144, %v140, %v145
      %147 = vst [vmem:[#allocation2] sm:$0x1] %v146
      %s148 = smov [#allocation1]
      %s149 = smov [#allocation4]
      %v150 = vlaneseq
      %v151 = vshrl.u32 %v150, 7
      %v152 = vmov %v151
      %v154 = vld [vmem:[%s149] sm:$0xff]
      %v155 = vld [vmem:[%s148] sm:$0xff]
      %v156 = vmul.f32 %v154, %v155
      %vm157 = vcmp.lt.s32.totalorder %v152, 8
      %v158 = vsel %vm157, %v156, 0.0
      %v159 = vrot.slane %v158, 4
      %v160 = vadd.f32 %v158, %v159
      %v161 = vrot.slane %v160, 2
      %v162 = vadd.f32 %v160, %v161
      %v163 = vrot.slane %v162, 1
      %v164 = vadd.f32 %v162, %v163
      %s165 = smov %s148
      %s166 = smov %s149
      %v167 = vlaneseq
      %v168 = vshrl.u32 %v167, 7
      %v169 = vmov %v168
      %v170 = vmul.f32 %v164, %v140
      %v172 = vlaneseq
      %v173 = vand.u32 %v172, 127
      %v174 = vld [vmem:[%s166] sm:$0xff]
      %v175 = vmul.f32 %v174, %v170
      %v176 = vld [vmem:[%s165] sm:$0xff]
      %v177 = vstv %s41
      %vm178 = vcmp.gt.s32.totalorder %v173, %v177
      %v179 = vsub.f32 %v176, %v175
      %v180 = vsel %vm178, %v179, %v176
      %v181 = vstv %s41
      %v182 = vlaneseq
      %v183 = vand.u32 %v182, 127
      %vm184 = vcmp.eq.s32.totalorder %v183, %v181
      %v185 = vstv %s41
      %vm186 = vcmp.ge.s32.totalorder %v169, %v185
      %vm187 = vmand %vm184, %vm186
      %v188 = vsel %vm187, %v174, %v180
      %189 = vst [vmem:[%s165] sm:$0xff] %v188
      %s190 = scalar_lea.vmem %s165, %s41
      %v191 = vld [vmem:[%s190] ss:$0 sm:$0xff]
      %v192 = vstv %s41
      %v193 = vlaneseq
      %v194 = vand.u32 %v193, 127
      %vm195 = vcmp.eq.s32.totalorder %v194, %v192
      %v196 = vsel %vm195, %v107, %v191
      %197 = vst [vmem:[%s190] sm:$0x1] %v196
    $region40: #{custom-call.10} parent=1 // loop_footer
      %s45 = sadd.s32 1, %s41
    $region41: #{custom-call.10} parent=1 // loop_footer_branch
      %40 = sbr.rel target = $region37
    $region42: #{custom-call.10} parent=1 // loop_exit
      _
    %s199 = sshll.u32 1, 1
    %s200 = ssub.s32 %s199, 1
    %v202 = vld [vmem:[#allocation2] sm:%s200]
    %s203 = sshll.u32 1, 1
    %s204 = ssub.s32 %s203, 1
    %205 = vst [vmem:[#allocation3] sm:%s204] %v202
    // Predicated region
    $region43: #{custom-call.10} parent=1 // pred_check
      _
    $region44: #{custom-call.10} parent=1 // pred_check_branch
      %207 = sbr.rel (0) target = $region46
    $region45: #{custom-call.10} parent=1 // pred_region
      // Predicated region
      $region47: #{custom-call.10} parent=45 // pred_check
        _
      $region48: #{custom-call.10} parent=45 // pred_check_branch
        %209 = sbr.rel (0) target = $region50
      $region49: #{custom-call.10} parent=45 // pred_region
        // Predicated region
        $region62: #{custom-call.10} parent=49 // pred_check
          _
        $region63: #{custom-call.10} parent=49 // pred_check_branch
          %225 = sbr.rel (0) target = $region65
        $region64: #{custom-call.10} parent=49 // pred_region
          loop: start=0, step=1, limit=1
          $region66: #{custom-call.10} parent=64 // loop_pre_header
            _
          $region67: #{custom-call.10} parent=64 // loop_header
            %s227 = sphi 0, %s231
            %p228 = scmp.ge.s32.totalorder %s227, 1
            %s232 = sphi [#allocation1], [#allocation1]
            %s233 = sphi %s1, %s1
          $region68: #{custom-call.10} parent=64 // loop_header_branch
            %230 = sbr.rel (%p228) target = $region72
          $region69: #{custom-call.10} parent=64 // loop_body
            %v234 = vld [vmem:[%s232] sm:$0xff]
            %235 = vst [vmem:[%s233] sm:$0xff] %v234
          $region70: #{custom-call.10} parent=64 // loop_footer
            %s231 = sadd.s32 1, %s227
          $region71: #{custom-call.10} parent=64 // loop_footer_branch
            %226 = sbr.rel target = $region67
          $region72: #{custom-call.10} parent=64 // loop_exit
            _
        $region65: #{custom-call.10} parent=49 // pred_fallthru
          _
        // Predicated region
        $region73: #{custom-call.10} parent=49 // pred_check
          _
        $region74: #{custom-call.10} parent=49 // pred_check_branch
          %237 = sbr.rel target = $region76
        $region75: #{custom-call.10} parent=49 // pred_region
          _
        $region76: #{custom-call.10} parent=49 // pred_fallthru
          _
      $region50: #{custom-call.10} parent=45 // pred_fallthru
        _
      // Predicated region
      $region51: #{custom-call.10} parent=45 // pred_check
        _
      $region52: #{custom-call.10} parent=45 // pred_check_branch
        %211 = sbr.rel target = $region54
      $region53: #{custom-call.10} parent=45 // pred_region
        %s213 = ssub.s32 256, 1
        loop: start=0, step=1, limit=1
        $region55: #{custom-call.10} parent=53 // loop_pre_header
          _
        $region56: #{custom-call.10} parent=53 // loop_header
          %s215 = sphi 0, %s219
          %p216 = scmp.ge.s32.totalorder %s215, 1
          %s220 = sphi [#allocation1], [#allocation1]
          %s221 = sphi %s1, %s1
        $region57: #{custom-call.10} parent=53 // loop_header_branch
          %218 = sbr.rel (%p216) target = $region61
        $region58: #{custom-call.10} parent=53 // loop_body
          %v222 = vld [vmem:[%s220] sm:%s213]
          %223 = vst [vmem:[%s221] sm:%s213] %v222
        $region59: #{custom-call.10} parent=53 // loop_footer
          %s219 = sadd.s32 1, %s215
        $region60: #{custom-call.10} parent=53 // loop_footer_branch
          %214 = sbr.rel target = $region56
        $region61: #{custom-call.10} parent=53 // loop_exit
          _
      $region54: #{custom-call.10} parent=45 // pred_fallthru
        _
    $region46: #{custom-call.10} parent=1 // pred_fallthru
      _
    %238 = vnop
    // Predicated region
    $region77: #{custom-call.10} parent=1 // pred_check
      _
    $region78: #{custom-call.10} parent=1 // pred_check_branch
      %240 = sbr.rel (0) target = $region80
    $region79: #{custom-call.10} parent=1 // pred_region
      // Predicated region
      $region81: #{custom-call.10} parent=79 // pred_check
        _
      $region82: #{custom-call.10} parent=79 // pred_check_branch
        %242 = sbr.rel (0) target = $region84
      $region83: #{custom-call.10} parent=79 // pred_region
        // Predicated region
        $region85: #{custom-call.10} parent=83 // pred_check
          _
        $region86: #{custom-call.10} parent=83 // pred_check_branch
          %244 = sbr.rel target = $region88
        $region87: #{custom-call.10} parent=83 // pred_region
          // Predicated region
          $region100: #{custom-call.10} parent=87 // pred_check
            _
          $region101: #{custom-call.10} parent=87 // pred_check_branch
            %260 = sbr.rel (0) target = $region103
          $region102: #{custom-call.10} parent=87 // pred_region
            %s262 = ssub.s32 2, 1
            loop: start=0, step=1, limit=1
            $region104: #{custom-call.10} parent=102 // loop_pre_header
              _
            $region105: #{custom-call.10} parent=102 // loop_header
              %s264 = sphi 0, %s268
              %p265 = scmp.ge.s32.totalorder %s264, 1
              %s269 = sphi [#allocation3], [#allocation3]
              %s270 = sphi %s2, %s2
            $region106: #{custom-call.10} parent=102 // loop_header_branch
              %267 = sbr.rel (%p265) target = $region110
            $region107: #{custom-call.10} parent=102 // loop_body
              %v271 = vld [vmem:[%s269] sm:%s262]
              %272 = vst [vmem:[%s270] sm:%s262] %v271
            $region108: #{custom-call.10} parent=102 // loop_footer
              %s268 = sadd.s32 1, %s264
            $region109: #{custom-call.10} parent=102 // loop_footer_branch
              %263 = sbr.rel target = $region105
            $region110: #{custom-call.10} parent=102 // loop_exit
              _
          $region103: #{custom-call.10} parent=87 // pred_fallthru
            _
        $region88: #{custom-call.10} parent=83 // pred_fallthru
          _
        // Predicated region
        $region89: #{custom-call.10} parent=83 // pred_check
          _
        $region90: #{custom-call.10} parent=83 // pred_check_branch
          %246 = sbr.rel (0) target = $region92
        $region91: #{custom-call.10} parent=83 // pred_region
          %s248 = ssub.s32 2, 1
          loop: start=0, step=1, limit=1
          $region93: #{custom-call.10} parent=91 // loop_pre_header
            _
          $region94: #{custom-call.10} parent=91 // loop_header
            %s250 = sphi 0, %s254
            %p251 = scmp.ge.s32.totalorder %s250, 1
            %s255 = sphi [#allocation3], [#allocation3]
            %s256 = sphi %s2, %s2
          $region95: #{custom-call.10} parent=91 // loop_header_branch
            %253 = sbr.rel (%p251) target = $region99
          $region96: #{custom-call.10} parent=91 // loop_body
            %v257 = vld [vmem:[%s255] sm:%s248]
            %258 = vst [vmem:[%s256] sm:%s248] %v257
          $region97: #{custom-call.10} parent=91 // loop_footer
            %s254 = sadd.s32 1, %s250
          $region98: #{custom-call.10} parent=91 // loop_footer_branch
            %249 = sbr.rel target = $region94
          $region99: #{custom-call.10} parent=91 // loop_exit
            _
        $region92: #{custom-call.10} parent=83 // pred_fallthru
          _
      $region84: #{custom-call.10} parent=79 // pred_fallthru
        _
      %273 = vnop
    $region80: #{custom-call.10} parent=1 // pred_fallthru
      _
    // Predicated region
    $region111: #{custom-call.10} parent=1 // pred_check
      _
    $region112: #{custom-call.10} parent=1 // pred_check_branch
      %275 = sbr.rel (0) target = $region114
    $region113: #{custom-call.10} parent=1 // pred_region
      _
    $region114: #{custom-call.10} parent=1 // pred_fallthru
      _

// kernel: cur_conv2d_forward.1
$region0: #{cur_conv2d_forward.1}
  #allocation0 [shape = 'u32[]', space=smem, size = 0x4, offset = 0x4, fixed_abs, tag = 'smem constant byte address 0x4 - core index']
  #allocation1 [shape = 'u32[144,128]{1,0:T(1,128)}', space=vmem, size = 0x12000, scoped, tag = 'internal scratch']
  %s0 = inlined_call_operand.vmem [shape: bf16[512,36], index: 0, kind: input, shape index: {}]
  %s1 = inlined_call_operand.vmem [shape: bf16[36,16], index: 1, kind: input, shape index: {}]
  %s2 = inlined_call_operand.vmem [shape: f32[16,128], index: 2, kind: input, shape index: {}]
  %s3 = inlined_call_operand.vmem [shape: f32[1,128], index: 3, kind: input, shape index: {}]
  %s4 = inlined_call_operand.hbm [shape: f32[512,128], index: 4, kind: output, shape index: {}]
  %s5 = sld [smem:[#allocation0]]
  $region26: #{cur_conv2d_forward.1} parent=0
    _
  %s7 = ssub.s32 1, %s5
  %s8 = scalar_select 0, %s7, %s5
  $region1: #{cur_conv2d_forward.1} parent=0
    #allocation2 [shape = 'u8[262144]{0}', space=vmem, size = 0x40000, scoped, tag = 'output window, operand 0, single buffered']
    #allocation3 [shape = 's32[1]{0}', space=sflag, size = 0x4, scoped, tag = 'scoped memory for cur_conv2d_forward.1']
    %9 = vsyncpa [#allocation3], 0
    // Predicated region
    $region2: #{cur_conv2d_forward.1} parent=1 // pred_check
      _
    $region3: #{cur_conv2d_forward.1} parent=1 // pred_check_branch
      %11 = sbr.rel (0) target = $region5
    $region4: #{cur_conv2d_forward.1} parent=1 // pred_region
      _
    $region5: #{cur_conv2d_forward.1} parent=1 // pred_fallthru
      _
    // Predicated region
    $region6: #{cur_conv2d_forward.1} parent=1 // pred_check
      _
    $region7: #{cur_conv2d_forward.1} parent=1 // pred_check_branch
      %13 = sbr.rel (0) target = $region9
    $region8: #{cur_conv2d_forward.1} parent=1 // pred_region
      _
    $region9: #{cur_conv2d_forward.1} parent=1 // pred_fallthru
      _
    // Predicated region
    $region10: #{cur_conv2d_forward.1} parent=1 // pred_check
      _
    $region11: #{cur_conv2d_forward.1} parent=1 // pred_check_branch
      %15 = sbr.rel (0) target = $region13
    $region12: #{cur_conv2d_forward.1} parent=1 // pred_region
      _
    $region13: #{cur_conv2d_forward.1} parent=1 // pred_fallthru
      _
    // Predicated region
    $region14: #{cur_conv2d_forward.1} parent=1 // pred_check
      _
    $region15: #{cur_conv2d_forward.1} parent=1 // pred_check_branch
      %17 = sbr.rel (0) target = $region17
    $region16: #{cur_conv2d_forward.1} parent=1 // pred_region
      _
    $region17: #{cur_conv2d_forward.1} parent=1 // pred_fallthru
      _
    %v19 = vld [vmem:[%s0] sm:$0xf]
    %v20 = vld [vmem:[%s0 + $0x4] sm:$0xf]
    %v21 = vld [vmem:[%s0 + $0x8] sm:$0xf]
    %v22 = vld [vmem:[%s0 + $0xc] sm:$0xf]
    %v23 = vld [vmem:[%s0 + $0x10] sm:$0xf]
    %v24 = vld [vmem:[%s0 + $0x14] sm:$0xf]
    %v25 = vld [vmem:[%s0 + $0x18] sm:$0xf]
    %v26 = vld [vmem:[%s0 + $0x1c] sm:$0xf]
    %v27 = vld [vmem:[%s0 + $0x20] sm:$0xf]
    %v28 = vld [vmem:[%s0 + $0x24] sm:$0xf]
    %v29 = vld [vmem:[%s0 + $0x28] sm:$0xf]
    %v30 = vld [vmem:[%s0 + $0x2c] sm:$0xf]
    %v31 = vld [vmem:[%s0 + $0x30] sm:$0xf]
    %v32 = vld [vmem:[%s0 + $0x34] sm:$0xf]
    %v33 = vld [vmem:[%s0 + $0x38] sm:$0xf]
    %v34 = vld [vmem:[%s0 + $0x3c] sm:$0xf]
    %v35 = vld [vmem:[%s0 + $0x40] sm:$0xf]
    %v36 = vld [vmem:[%s0 + $0x44] sm:$0xf]
    %v37 = vld [vmem:[%s0 + $0x48] sm:$0xf]
    %v38 = vld [vmem:[%s0 + $0x4c] sm:$0xf]
    %v39 = vld [vmem:[%s0 + $0x50] sm:$0xf]
    %v40 = vld [vmem:[%s0 + $0x54] sm:$0xf]
    %v41 = vld [vmem:[%s0 + $0x58] sm:$0xf]
    %v42 = vld [vmem:[%s0 + $0x5c] sm:$0xf]
    %v43 = vld [vmem:[%s0 + $0x60] sm:$0xf]
    %v44 = vld [vmem:[%s0 + $0x64] sm:$0xf]
    %v45 = vld [vmem:[%s0 + $0x68] sm:$0xf]
    %v46 = vld [vmem:[%s0 + $0x6c] sm:$0xf]
    %v47 = vld [vmem:[%s0 + $0x70] sm:$0xf]
    %v48 = vld [vmem:[%s0 + $0x74] sm:$0xf]
    %v49 = vld [vmem:[%s0 + $0x78] sm:$0xf]
    %v50 = vld [vmem:[%s0 + $0x7c] sm:$0xf]
    %v51 = vld [vmem:[%s0 + $0x80] sm:$0xf]
    %v52 = vld [vmem:[%s0 + $0x84] sm:$0xf]
    %v53 = vld [vmem:[%s0 + $0x88] sm:$0xf]
    %v54 = vld [vmem:[%s0 + $0x8c] sm:$0xf]
    %v55 = vld [vmem:[%s0 + $0x90] sm:$0xf]
    %v56 = vld [vmem:[%s0 + $0x94] sm:$0xf]
    %v57 = vld [vmem:[%s0 + $0x98] sm:$0xf]
    %v58 = vld [vmem:[%s0 + $0x9c] sm:$0xf]
    %v59 = vld [vmem:[%s0 + $0xa0] sm:$0xf]
    %v60 = vld [vmem:[%s0 + $0xa4] sm:$0xf]
    %v61 = vld [vmem:[%s0 + $0xa8] sm:$0xf]
    %v62 = vld [vmem:[%s0 + $0xac] sm:$0xf]
    %v63 = vld [vmem:[%s0 + $0xb0] sm:$0xf]
    %v64 = vld [vmem:[%s0 + $0xb4] sm:$0xf]
    %v65 = vld [vmem:[%s0 + $0xb8] sm:$0xf]
    %v66 = vld [vmem:[%s0 + $0xbc] sm:$0xf]
    %v67 = vld [vmem:[%s0 + $0xc0] sm:$0xf]
    %v68 = vld [vmem:[%s0 + $0xc4] sm:$0xf]
    %v69 = vld [vmem:[%s0 + $0xc8] sm:$0xf]
    %v70 = vld [vmem:[%s0 + $0xcc] sm:$0xf]
    %v71 = vld [vmem:[%s0 + $0xd0] sm:$0xf]
    %v72 = vld [vmem:[%s0 + $0xd4] sm:$0xf]
    %v73 = vld [vmem:[%s0 + $0xd8] sm:$0xf]
    %v74 = vld [vmem:[%s0 + $0xdc] sm:$0xf]
    %v75 = vld [vmem:[%s0 + $0xe0] sm:$0xf]
    %v76 = vld [vmem:[%s0 + $0xe4] sm:$0xf]
    %v77 = vld [vmem:[%s0 + $0xe8] sm:$0xf]
    %v78 = vld [vmem:[%s0 + $0xec] sm:$0xf]
    %v79 = vld [vmem:[%s0 + $0xf0] sm:$0xf]
    %v80 = vld [vmem:[%s0 + $0xf4] sm:$0xf]
    %v81 = vld [vmem:[%s0 + $0xf8] sm:$0xf]
    %v82 = vld [vmem:[%s0 + $0xfc] sm:$0xf]
    %v83 = vld [vmem:[%s1] sm:$0xf]
    %v84 = vld [vmem:[%s1 + $0x4] sm:$0xf]
    %v85 = vld [vmem:[%s1 + $0x8] sm:$0xf]
    %v86 = vld [vmem:[%s1 + $0xc] sm:$0xf]
    %v87 = vld [vmem:[%s1 + $0x10] sm:$0x3]
    %v152 = vunpack.c.l.b16 %v19
    %v153 = vunpack.c.l.b16 %v20
    %v154 = vunpack.c.l.b16 %v21
    %v155 = vunpack.c.l.b16 %v22
    %v156 = vunpack.c.l.b16 %v23
    %v157 = vunpack.c.l.b16 %v24
    %v158 = vunpack.c.l.b16 %v25
    %v159 = vunpack.c.l.b16 %v26
    %v160 = vunpack.c.l.b16 %v27
    %v161 = vunpack.c.l.b16 %v28
    %v162 = vunpack.c.l.b16 %v29
    %v163 = vunpack.c.l.b16 %v30
    %v164 = vunpack.c.l.b16 %v31
    %v165 = vunpack.c.l.b16 %v32
    %v166 = vunpack.c.l.b16 %v33
    %v167 = vunpack.c.l.b16 %v34
    %v168 = vunpack.c.l.b16 %v35
    %v169 = vunpack.c.l.b16 %v36
    %v170 = vunpack.c.l.b16 %v37
    %v171 = vunpack.c.l.b16 %v38
    %v172 = vunpack.c.l.b16 %v39
    %v173 = vunpack.c.l.b16 %v40
    %v174 = vunpack.c.l.b16 %v41
    %v175 = vunpack.c.l.b16 %v42
    %v176 = vunpack.c.l.b16 %v43
    %v177 = vunpack.c.l.b16 %v44
    %v178 = vunpack.c.l.b16 %v45
    %v179 = vunpack.c.l.b16 %v46
    %v180 = vunpack.c.l.b16 %v47
    %v181 = vunpack.c.l.b16 %v48
    %v182 = vunpack.c.l.b16 %v49
    %v183 = vunpack.c.l.b16 %v50
    %v184 = vunpack.c.l.b16 %v51
    %v185 = vunpack.c.l.b16 %v52
    %v186 = vunpack.c.l.b16 %v53
    %v187 = vunpack.c.l.b16 %v54
    %v188 = vunpack.c.l.b16 %v55
    %v189 = vunpack.c.l.b16 %v56
    %v190 = vunpack.c.l.b16 %v57
    %v191 = vunpack.c.l.b16 %v58
    %v192 = vunpack.c.l.b16 %v59
    %v193 = vunpack.c.l.b16 %v60
    %v194 = vunpack.c.l.b16 %v61
    %v195 = vunpack.c.l.b16 %v62
    %v196 = vunpack.c.l.b16 %v63
    %v197 = vunpack.c.l.b16 %v64
    %v198 = vunpack.c.l.b16 %v65
    %v199 = vunpack.c.l.b16 %v66
    %v200 = vunpack.c.l.b16 %v67
    %v201 = vunpack.c.l.b16 %v68
    %v202 = vunpack.c.l.b16 %v69
    %v203 = vunpack.c.l.b16 %v70
    %v204 = vunpack.c.l.b16 %v71
    %v205 = vunpack.c.l.b16 %v72
    %v206 = vunpack.c.l.b16 %v73
    %v207 = vunpack.c.l.b16 %v74
    %v208 = vunpack.c.l.b16 %v75
    %v209 = vunpack.c.l.b16 %v76
    %v210 = vunpack.c.l.b16 %v77
    %v211 = vunpack.c.l.b16 %v78
    %v212 = vunpack.c.l.b16 %v79
    %v213 = vunpack.c.l.b16 %v80
    %v214 = vunpack.c.l.b16 %v81
    %v215 = vunpack.c.l.b16 %v82
    %v216 = vpack.c.b16 %v153, %v152
    %v217 = vpack.c.b16 %v155, %v154
    %v218 = vpack.c.b16 %v157, %v156
    %v219 = vpack.c.b16 %v159, %v158
    %v220 = vpack.c.b16 %v161, %v160
    %v221 = vpack.c.b16 %v163, %v162
    %v222 = vpack.c.b16 %v165, %v164
    %v223 = vpack.c.b16 %v167, %v166
    %v224 = vpack.c.b16 %v169, %v168
    %v225 = vpack.c.b16 %v171, %v170
    %v226 = vpack.c.b16 %v173, %v172
    %v227 = vpack.c.b16 %v175, %v174
    %v228 = vpack.c.b16 %v177, %v176
    %v229 = vpack.c.b16 %v179, %v178
    %v230 = vpack.c.b16 %v181, %v180
    %v231 = vpack.c.b16 %v183, %v182
    %v232 = vpack.c.b16 %v185, %v184
    %v233 = vpack.c.b16 %v187, %v186
    %v234 = vpack.c.b16 %v189, %v188
    %v235 = vpack.c.b16 %v191, %v190
    %v236 = vpack.c.b16 %v193, %v192
    %v237 = vpack.c.b16 %v195, %v194
    %v238 = vpack.c.b16 %v197, %v196
    %v239 = vpack.c.b16 %v199, %v198
    %v240 = vpack.c.b16 %v201, %v200
    %v241 = vpack.c.b16 %v203, %v202
    %v242 = vpack.c.b16 %v205, %v204
    %v243 = vpack.c.b16 %v207, %v206
    %v244 = vpack.c.b16 %v209, %v208
    %v245 = vpack.c.b16 %v211, %v210
    %v246 = vpack.c.b16 %v213, %v212
    %v247 = vpack.c.b16 %v215, %v214
    %v253 = vunpack.c.l.b16 %v83
    %v254 = vunpack.c.l.b16 %v84
    %v255 = vunpack.c.l.b16 %v85
    %v256 = vunpack.c.l.b16 %v86
    %v257 = vunpack.c.l.b16 %v87
    %v258 = vpack.c.b16 %v254, %v253
    %v259 = vpack.c.b16 %v256, %v255
    %v260 = vpack.c.b16 %v257, %v257
    %vm263 = vcmask 293888
    %v265 = vsel %vm263, %v216, 0
    %v268 = vsel %vm263, %v217, 0
    %v271 = vsel %vm263, %v218, 0
    %v274 = vsel %vm263, %v219, 0
    %v277 = vsel %vm263, %v220, 0
    %v280 = vsel %vm263, %v221, 0
    %v283 = vsel %vm263, %v222, 0
    %v286 = vsel %vm263, %v223, 0
    %v289 = vsel %vm263, %v224, 0
    %v292 = vsel %vm263, %v225, 0
    %v295 = vsel %vm263, %v226, 0
    %v298 = vsel %vm263, %v227, 0
    %v301 = vsel %vm263, %v228, 0
    %v304 = vsel %vm263, %v229, 0
    %v307 = vsel %vm263, %v230, 0
    %v310 = vsel %vm263, %v231, 0
    %v313 = vsel %vm263, %v232, 0
    %v316 = vsel %vm263, %v233, 0
    %v319 = vsel %vm263, %v234, 0
    %v322 = vsel %vm263, %v235, 0
    %v325 = vsel %vm263, %v236, 0
    %v328 = vsel %vm263, %v237, 0
    %v331 = vsel %vm263, %v238, 0
    %v334 = vsel %vm263, %v239, 0
    %v337 = vsel %vm263, %v240, 0
    %v340 = vsel %vm263, %v241, 0
    %v343 = vsel %vm263, %v242, 0
    %v346 = vsel %vm263, %v243, 0
    %v349 = vsel %vm263, %v244, 0
    %v352 = vsel %vm263, %v245, 0
    %v355 = vsel %vm263, %v246, 0
    %v358 = vsel %vm263, %v247, 0
    %vm360 = vcmask 1041408
    %v362 = vsel %vm360, %v260, 0
    %364 = vmatprep.subr.bf16.mxu0 0
    %365 = vmatpush1.bf16.msra.mxu0 0
    %366 = vmatprep.subr.bf16.mxu0 0
    %367 = vmatpush1.bf16.msra.mxu0 0
    %368 = vmatprep.subr.bf16.mxu0 0
    %369 = vmatpush1.bf16.msra.mxu0 0
    %370 = vmatprep.subr.bf16.mxu0 0
    %371 = vmatpush1.bf16.msra.mxu0 0
    %372 = vmatprep.subr.bf16.mxu0 0
    %373 = vmatpush1.bf16.msra.mxu0 0
    %374 = vmatprep.subr.bf16.mxu0 0
    %375 = vmatpush1.bf16.msra.mxu0 %v362
    %376 = vmatprep.subr.bf16.mxu0 0
    %377 = vmatpush1.bf16.msra.mxu0 %v259
    %378 = vmatprep.subr.bf16.mxu0 0
    %379 = vmatpush1.bf16.msra.mxu0 %v258
    %380 = vmatprep.subr.bf16.mxu0 0
    %381 = vmatpush2.bf16.msra.mxu0 0
    %382 = vmatprep.subr.bf16.mxu0 0
    %383 = vmatpush2.bf16.msra.mxu0 0
    %384 = vmatprep.subr.bf16.mxu0 0
    %385 = vmatpush2.bf16.msra.mxu0 0
    %386 = vmatprep.subr.bf16.mxu0 0
    %387 = vmatpush2.bf16.msra.mxu0 0
    %388 = vmatprep.subr.bf16.mxu0 0
    %389 = vmatpush2.bf16.msra.mxu0 0
    %390 = vmatprep.subr.bf16.mxu0 0
    %391 = vmatpush2.bf16.msra.mxu0 0
    %392 = vmatprep.subr.bf16.mxu0 0
    %393 = vmatpush2.bf16.msra.mxu0 0
    %394 = vmatprep.subr.bf16.mxu0 0
    %395 = vmatpush2.bf16.msra.mxu0 0
    %396 = vmatprep.mubr.bf16.mxu0 0
    %397 = vmatmul.mubr.bf16.gmra.mxu0 %v265
    %v398 = vpop.f32.mrf.mxu0
    %v399 = vadd.f32 0.0, %v398
    %v400 = vpop.f32.mrf.mxu0
    %v401 = vpop.f32.mrf.mxu0
    %v402 = vadd.f32 0.0, %v401
    %v403 = vpop.f32.mrf.mxu0
    %404 = vmatprep.mubr.bf16.mxu0 0
    %405 = vmatmul.mubr.bf16.gmra.mxu0 %v268
    %v406 = vpop.f32.mrf.mxu0
    %v407 = vadd.f32 0.0, %v406
    %v408 = vpop.f32.mrf.mxu0
    %v409 = vpop.f32.mrf.mxu0
    %v410 = vadd.f32 0.0, %v409
    %v411 = vpop.f32.mrf.mxu0
    %412 = vmatprep.mubr.bf16.mxu0 0
    %413 = vmatmul.mubr.bf16.gmra.mxu0 %v271
    %v414 = vpop.f32.mrf.mxu0
    %v415 = vadd.f32 0.0, %v414
    %v416 = vpop.f32.mrf.mxu0
    %v417 = vpop.f32.mrf.mxu0
    %v418 = vadd.f32 0.0, %v417
    %v419 = vpop.f32.mrf.mxu0
    %420 = vmatprep.mubr.bf16.mxu0 0
    %421 = vmatmul.mubr.bf16.gmra.mxu0 %v274
    %v422 = vpop.f32.mrf.mxu0
    %v423 = vadd.f32 0.0, %v422
    %v424 = vpop.f32.mrf.mxu0
    %v425 = vpop.f32.mrf.mxu0
    %v426 = vadd.f32 0.0, %v425
    %v427 = vpop.f32.mrf.mxu0
    %428 = vmatprep.mubr.bf16.mxu0 0
    %429 = vmatmul.mubr.bf16.gmra.mxu0 %v277
    %v430 = vpop.f32.mrf.mxu0
    %v431 = vadd.f32 0.0, %v430
    %v432 = vpop.f32.mrf.mxu0
    %v433 = vpop.f32.mrf.mxu0
    %v434 = vadd.f32 0.0, %v433
    %v435 = vpop.f32.mrf.mxu0
    %436 = vmatprep.mubr.bf16.mxu0 0
    %437 = vmatmul.mubr.bf16.gmra.mxu0 %v280
    %v438 = vpop.f32.mrf.mxu0
    %v439 = vadd.f32 0.0, %v438
    %v440 = vpop.f32.mrf.mxu0
    %v441 = vpop.f32.mrf.mxu0
    %v442 = vadd.f32 0.0, %v441
    %v443 = vpop.f32.mrf.mxu0
    %444 = vmatprep.mubr.bf16.mxu0 0
    %445 = vmatmul.mubr.bf16.gmra.mxu0 %v283
    %v446 = vpop.f32.mrf.mxu0
    %v447 = vadd.f32 0.0, %v446
    %v448 = vpop.f32.mrf.mxu0
    %v449 = vpop.f32.mrf.mxu0
    %v450 = vadd.f32 0.0, %v449
    %v451 = vpop.f32.mrf.mxu0
    %452 = vmatprep.mubr.bf16.mxu0 0
    %453 = vmatmul.mubr.bf16.gmra.mxu0 %v286
    %v454 = vpop.f32.mrf.mxu0
    %v455 = vadd.f32 0.0, %v454
    %v456 = vpop.f32.mrf.mxu0
    %v457 = vpop.f32.mrf.mxu0
    %v458 = vadd.f32 0.0, %v457
    %v459 = vpop.f32.mrf.mxu0
    %460 = vmatprep.mubr.bf16.mxu0 0
    %461 = vmatmul.mubr.bf16.gmra.mxu0 %v289
    %v462 = vpop.f32.mrf.mxu0
    %v463 = vadd.f32 0.0, %v462
    %v464 = vpop.f32.mrf.mxu0
    %v465 = vpop.f32.mrf.mxu0
    %v466 = vadd.f32 0.0, %v465
    %v467 = vpop.f32.mrf.mxu0
    %468 = vmatprep.mubr.bf16.mxu0 0
    %469 = vmatmul.mubr.bf16.gmra.mxu0 %v292
    %v470 = vpop.f32.mrf.mxu0
    %v471 = vadd.f32 0.0, %v470
    %v472 = vpop.f32.mrf.mxu0
    %v473 = vpop.f32.mrf.mxu0
    %v474 = vadd.f32 0.0, %v473
    %v475 = vpop.f32.mrf.mxu0
    %476 = vmatprep.mubr.bf16.mxu0 0
    %477 = vmatmul.mubr.bf16.gmra.mxu0 %v295
    %v478 = vpop.f32.mrf.mxu0
    %v479 = vadd.f32 0.0, %v478
    %v480 = vpop.f32.mrf.mxu0
    %v481 = vpop.f32.mrf.mxu0
    %v482 = vadd.f32 0.0, %v481
    %v483 = vpop.f32.mrf.mxu0
    %484 = vmatprep.mubr.bf16.mxu0 0
    %485 = vmatmul.mubr.bf16.gmra.mxu0 %v298
    %v486 = vpop.f32.mrf.mxu0
    %v487 = vadd.f32 0.0, %v486
    %v488 = vpop.f32.mrf.mxu0
    %v489 = vpop.f32.mrf.mxu0
    %v490 = vadd.f32 0.0, %v489
    %v491 = vpop.f32.mrf.mxu0
    %492 = vmatprep.mubr.bf16.mxu0 0
    %493 = vmatmul.mubr.bf16.gmra.mxu0 %v301
    %v494 = vpop.f32.mrf.mxu0
    %v495 = vadd.f32 0.0, %v494
    %v496 = vpop.f32.mrf.mxu0
    %v497 = vpop.f32.mrf.mxu0
    %v498 = vadd.f32 0.0, %v497
    %v499 = vpop.f32.mrf.mxu0
    %500 = vmatprep.mubr.bf16.mxu0 0
    %501 = vmatmul.mubr.bf16.gmra.mxu0 %v304
    %v502 = vpop.f32.mrf.mxu0
    %v503 = vadd.f32 0.0, %v502
    %v504 = vpop.f32.mrf.mxu0
    %v505 = vpop.f32.mrf.mxu0
    %v506 = vadd.f32 0.0, %v505
    %v507 = vpop.f32.mrf.mxu0
    %508 = vmatprep.mubr.bf16.mxu0 0
    %509 = vmatmul.mubr.bf16.gmra.mxu0 %v307
    %v510 = vpop.f32.mrf.mxu0
    %v511 = vadd.f32 0.0, %v510
    %v512 = vpop.f32.mrf.mxu0
    %v513 = vpop.f32.mrf.mxu0
    %v514 = vadd.f32 0.0, %v513
    %v515 = vpop.f32.mrf.mxu0
    %516 = vmatprep.mubr.bf16.mxu0 0
    %517 = vmatmul.mubr.bf16.gmra.mxu0 %v310
    %v518 = vpop.f32.mrf.mxu0
    %v519 = vadd.f32 0.0, %v518
    %v520 = vpop.f32.mrf.mxu0
    %v521 = vpop.f32.mrf.mxu0
    %v522 = vadd.f32 0.0, %v521
    %v523 = vpop.f32.mrf.mxu0
    %524 = vmatprep.mubr.bf16.mxu0 0
    %525 = vmatmul.mubr.bf16.gmra.mxu0 %v313
    %v526 = vpop.f32.mrf.mxu0
    %v527 = vadd.f32 0.0, %v526
    %v528 = vpop.f32.mrf.mxu0
    %v529 = vpop.f32.mrf.mxu0
    %v530 = vadd.f32 0.0, %v529
    %v531 = vpop.f32.mrf.mxu0
    %532 = vmatprep.mubr.bf16.mxu0 0
    %533 = vmatmul.mubr.bf16.gmra.mxu0 %v316
    %v534 = vpop.f32.mrf.mxu0
    %v535 = vadd.f32 0.0, %v534
    %v536 = vpop.f32.mrf.mxu0
    %v537 = vpop.f32.mrf.mxu0
    %v538 = vadd.f32 0.0, %v537
    %v539 = vpop.f32.mrf.mxu0
    %540 = vmatprep.mubr.bf16.mxu0 0
    %541 = vmatmul.mubr.bf16.gmra.mxu0 %v319
    %v542 = vpop.f32.mrf.mxu0
    %v543 = vadd.f32 0.0, %v542
    %v544 = vpop.f32.mrf.mxu0
    %v545 = vpop.f32.mrf.mxu0
    %v546 = vadd.f32 0.0, %v545
    %v547 = vpop.f32.mrf.mxu0
    %548 = vmatprep.mubr.bf16.mxu0 0
    %549 = vmatmul.mubr.bf16.gmra.mxu0 %v322
    %v550 = vpop.f32.mrf.mxu0
    %v551 = vadd.f32 0.0, %v550
    %v552 = vpop.f32.mrf.mxu0
    %v553 = vpop.f32.mrf.mxu0
    %v554 = vadd.f32 0.0, %v553
    %v555 = vpop.f32.mrf.mxu0
    %556 = vmatprep.mubr.bf16.mxu0 0
    %557 = vmatmul.mubr.bf16.gmra.mxu0 %v325
    %v558 = vpop.f32.mrf.mxu0
    %v559 = vadd.f32 0.0, %v558
    %v560 = vpop.f32.mrf.mxu0
    %v561 = vpop.f32.mrf.mxu0
    %v562 = vadd.f32 0.0, %v561
    %v563 = vpop.f32.mrf.mxu0
    %564 = vmatprep.mubr.bf16.mxu0 0
    %565 = vmatmul.mubr.bf16.gmra.mxu0 %v328
    %v566 = vpop.f32.mrf.mxu0
    %v567 = vadd.f32 0.0, %v566
    %v568 = vpop.f32.mrf.mxu0
    %v569 = vpop.f32.mrf.mxu0
    %v570 = vadd.f32 0.0, %v569
    %v571 = vpop.f32.mrf.mxu0
    %572 = vmatprep.mubr.bf16.mxu0 0
    %573 = vmatmul.mubr.bf16.gmra.mxu0 %v331
    %v574 = vpop.f32.mrf.mxu0
    %v575 = vadd.f32 0.0, %v574
    %v576 = vpop.f32.mrf.mxu0
    %v577 = vpop.f32.mrf.mxu0
    %v578 = vadd.f32 0.0, %v577
    %v579 = vpop.f32.mrf.mxu0
    %580 = vmatprep.mubr.bf16.mxu0 0
    %581 = vmatmul.mubr.bf16.gmra.mxu0 %v334
    %v582 = vpop.f32.mrf.mxu0
    %v583 = vadd.f32 0.0, %v582
    %v584 = vpop.f32.mrf.mxu0
    %v585 = vpop.f32.mrf.mxu0
    %v586 = vadd.f32 0.0, %v585
    %v587 = vpop.f32.mrf.mxu0
    %588 = vmatprep.mubr.bf16.mxu0 0
    %589 = vmatmul.mubr.bf16.gmra.mxu0 %v337
    %v590 = vpop.f32.mrf.mxu0
    %v591 = vadd.f32 0.0, %v590
    %v592 = vpop.f32.mrf.mxu0
    %v593 = vpop.f32.mrf.mxu0
    %v594 = vadd.f32 0.0, %v593
    %v595 = vpop.f32.mrf.mxu0
    %596 = vmatprep.mubr.bf16.mxu0 0
    %597 = vmatmul.mubr.bf16.gmra.mxu0 %v340
    %v598 = vpop.f32.mrf.mxu0
    %v599 = vadd.f32 0.0, %v598
    %v600 = vpop.f32.mrf.mxu0
    %v601 = vpop.f32.mrf.mxu0
    %v602 = vadd.f32 0.0, %v601
    %v603 = vpop.f32.mrf.mxu0
    %604 = vmatprep.mubr.bf16.mxu0 0
    %605 = vmatmul.mubr.bf16.gmra.mxu0 %v343
    %v606 = vpop.f32.mrf.mxu0
    %v607 = vadd.f32 0.0, %v606
    %v608 = vpop.f32.mrf.mxu0
    %v609 = vpop.f32.mrf.mxu0
    %v610 = vadd.f32 0.0, %v609
    %v611 = vpop.f32.mrf.mxu0
    %612 = vmatprep.mubr.bf16.mxu0 0
    %613 = vmatmul.mubr.bf16.gmra.mxu0 %v346
    %v614 = vpop.f32.mrf.mxu0
    %v615 = vadd.f32 0.0, %v614
    %v616 = vpop.f32.mrf.mxu0
    %v617 = vpop.f32.mrf.mxu0
    %v618 = vadd.f32 0.0, %v617
    %v619 = vpop.f32.mrf.mxu0
    %620 = vmatprep.mubr.bf16.mxu0 0
    %621 = vmatmul.mubr.bf16.gmra.mxu0 %v349
    %v622 = vpop.f32.mrf.mxu0
    %v623 = vadd.f32 0.0, %v622
    %v624 = vpop.f32.mrf.mxu0
    %v625 = vpop.f32.mrf.mxu0
    %v626 = vadd.f32 0.0, %v625
    %v627 = vpop.f32.mrf.mxu0
    %628 = vmatprep.mubr.bf16.mxu0 0
    %629 = vmatmul.mubr.bf16.gmra.mxu0 %v352
    %v630 = vpop.f32.mrf.mxu0
    %v631 = vadd.f32 0.0, %v630
    %v632 = vpop.f32.mrf.mxu0
    %v633 = vpop.f32.mrf.mxu0
    %v634 = vadd.f32 0.0, %v633
    %v635 = vpop.f32.mrf.mxu0
    %636 = vmatprep.mubr.bf16.mxu0 0
    %637 = vmatmul.mubr.bf16.gmra.mxu0 %v355
    %v638 = vpop.f32.mrf.mxu0
    %v639 = vadd.f32 0.0, %v638
    %v640 = vpop.f32.mrf.mxu0
    %v641 = vpop.f32.mrf.mxu0
    %v642 = vadd.f32 0.0, %v641
    %v643 = vpop.f32.mrf.mxu0
    %644 = vmatprep.mubr.bf16.mxu0 0
    %645 = vmatmul.mubr.bf16.gmra.mxu0 %v358
    %v646 = vpop.f32.mrf.mxu0
    %v647 = vadd.f32 0.0, %v646
    %v648 = vpop.f32.mrf.mxu0
    %v649 = vpop.f32.mrf.mxu0
    %v650 = vadd.f32 0.0, %v649
    %v651 = vpop.f32.mrf.mxu0
    %652 = vdwg.mxu0
    %v653 = vld [vmem:[%s2] sm:$0xff]
    %v654 = vld [vmem:[%s2 + $0x8] sm:$0xff]
    %v655 = vld [vmem:[%s3] sm:$0x1]
    %v657 = vlaneseq
    %v658 = vshrl.u32 %v657, 7
    %v659 = vsub.s32 0, %v658
    %v660 = vrot.slane %v655, %v659
    %vm662 = vcmask 130048
    %v664 = vsel %vm662, %v399, 0
    %v667 = vsel %vm662, %v402, 0
    %v670 = vsel %vm662, %v407, 0
    %v673 = vsel %vm662, %v410, 0
    %v676 = vsel %vm662, %v415, 0
    %v679 = vsel %vm662, %v418, 0
    %v682 = vsel %vm662, %v423, 0
    %v685 = vsel %vm662, %v426, 0
    %v688 = vsel %vm662, %v431, 0
    %v691 = vsel %vm662, %v434, 0
    %v694 = vsel %vm662, %v439, 0
    %v697 = vsel %vm662, %v442, 0
    %v700 = vsel %vm662, %v447, 0
    %v703 = vsel %vm662, %v450, 0
    %v706 = vsel %vm662, %v455, 0
    %v709 = vsel %vm662, %v458, 0
    %v712 = vsel %vm662, %v463, 0
    %v715 = vsel %vm662, %v466, 0
    %v718 = vsel %vm662, %v471, 0
    %v721 = vsel %vm662, %v474, 0
    %v724 = vsel %vm662, %v479, 0
    %v727 = vsel %vm662, %v482, 0
    %v730 = vsel %vm662, %v487, 0
    %v733 = vsel %vm662, %v490, 0
    %v736 = vsel %vm662, %v495, 0
    %v739 = vsel %vm662, %v498, 0
    %v742 = vsel %vm662, %v503, 0
    %v745 = vsel %vm662, %v506, 0
    %v748 = vsel %vm662, %v511, 0
    %v751 = vsel %vm662, %v514, 0
    %v754 = vsel %vm662, %v519, 0
    %v757 = vsel %vm662, %v522, 0
    %v760 = vsel %vm662, %v527, 0
    %v763 = vsel %vm662, %v530, 0
    %v766 = vsel %vm662, %v535, 0
    %v769 = vsel %vm662, %v538, 0
    %v772 = vsel %vm662, %v543, 0
    %v775 = vsel %vm662, %v546, 0
    %v778 = vsel %vm662, %v551, 0
    %v781 = vsel %vm662, %v554, 0
    %v784 = vsel %vm662, %v559, 0
    %v787 = vsel %vm662, %v562, 0
    %v790 = vsel %vm662, %v567, 0
    %v793 = vsel %vm662, %v570, 0
    %v796 = vsel %vm662, %v575, 0
    %v799 = vsel %vm662, %v578, 0
    %v802 = vsel %vm662, %v583, 0
    %v805 = vsel %vm662, %v586, 0
    %v808 = vsel %vm662, %v591, 0
    %v811 = vsel %vm662, %v594, 0
    %v814 = vsel %vm662, %v599, 0
    %v817 = vsel %vm662, %v602, 0
    %v820 = vsel %vm662, %v607, 0
    %v823 = vsel %vm662, %v610, 0
    %v826 = vsel %vm662, %v615, 0
    %v829 = vsel %vm662, %v618, 0
    %v832 = vsel %vm662, %v623, 0
    %v835 = vsel %vm662, %v626, 0
    %v838 = vsel %vm662, %v631, 0
    %v841 = vsel %vm662, %v634, 0
    %v844 = vsel %vm662, %v639, 0
    %v847 = vsel %vm662, %v642, 0
    %v850 = vsel %vm662, %v647, 0
    %v853 = vsel %vm662, %v650, 0
    %855 = vmatprep.subr.mxu0 0.0
    %856 = vmatpush1.msra.mxu0 0.0
    %857 = vmatprep.subr.mxu0 0.0
    %858 = vmatpush1.msra.mxu0 0.0
    %859 = vmatprep.subr.mxu0 0.0
    %860 = vmatpush1.msra.mxu0 0.0
    %861 = vmatprep.subr.mxu0 0.0
    %862 = vmatpush1.msra.mxu0 0.0
    %863 = vmatprep.subr.mxu0 0.0
    %864 = vmatpush1.msra.mxu0 0.0
    %865 = vmatprep.subr.mxu0 0.0
    %866 = vmatpush1.msra.mxu0 0.0
    %867 = vmatprep.subr.mxu0 0.0
    %868 = vmatpush1.msra.mxu0 0.0
    %869 = vmatprep.subr.mxu0 0.0
    %870 = vmatpush1.msra.mxu0 0.0
    %871 = vmatprep.subr.mxu0 0.0
    %872 = vmatpush1.msra.mxu0 0.0
    %873 = vmatprep.subr.mxu0 0.0
    %874 = vmatpush1.msra.mxu0 0.0
    %875 = vmatprep.subr.mxu0 0.0
    %876 = vmatpush1.msra.mxu0 0.0
    %877 = vmatprep.subr.mxu0 0.0
    %878 = vmatpush1.msra.mxu0 0.0
    %879 = vmatprep.subr.mxu0 0.0
    %880 = vmatpush1.msra.mxu0 0.0
    %881 = vmatprep.subr.mxu0 0.0
    %882 = vmatpush1.msra.mxu0 0.0
    %883 = vmatprep.subr.mxu0 0.0
    %884 = vmatpush1.msra.mxu0 %v654
    %885 = vmatprep.subr.mxu0 0.0
    %886 = vmatpush1.msra.mxu0 %v653
    %887 = vmatprep.subr.mxu0 0.0
    %888 = vmatpush2.msra.mxu0 0.0
    %889 = vmatprep.subr.mxu0 0.0
    %890 = vmatpush2.msra.mxu0 0.0
    %891 = vmatprep.subr.mxu0 0.0
    %892 = vmatpush2.msra.mxu0 0.0
    %893 = vmatprep.subr.mxu0 0.0
    %894 = vmatpush2.msra.mxu0 0.0
    %895 = vmatprep.subr.mxu0 0.0
    %896 = vmatpush2.msra.mxu0 0.0
    %897 = vmatprep.subr.mxu0 0.0
    %898 = vmatpush2.msra.mxu0 0.0
    %899 = vmatprep.subr.mxu0 0.0
    %900 = vmatpush2.msra.mxu0 0.0
    %901 = vmatprep.subr.mxu0 0.0
    %902 = vmatpush2.msra.mxu0 0.0
    %903 = vmatprep.subr.mxu0 0.0
    %904 = vmatpush2.msra.mxu0 0.0
    %905 = vmatprep.subr.mxu0 0.0
    %906 = vmatpush2.msra.mxu0 0.0
    %907 = vmatprep.subr.mxu0 0.0
    %908 = vmatpush2.msra.mxu0 0.0
    %909 = vmatprep.subr.mxu0 0.0
    %910 = vmatpush2.msra.mxu0 0.0
    %911 = vmatprep.subr.mxu0 0.0
    %912 = vmatpush2.msra.mxu0 0.0
    %913 = vmatprep.subr.mxu0 0.0
    %914 = vmatpush2.msra.mxu0 0.0
    %915 = vmatprep.subr.mxu0 0.0
    %916 = vmatpush2.msra.mxu0 0.0
    %917 = vmatprep.subr.mxu0 0.0
    %918 = vmatpush2.msra.mxu0 0.0
    %919 = vmatprep.mubr.f32.mxu0 0.0
    %920 = vmatmul.mubr.f32.gmra.mxu0 %v664
    %v921 = vpop.f32.mrf.mxu0
    %v922 = vadd.f32 %v660, %v921
    %v923 = vpop.f32.mrf.mxu0
    %924 = vmatprep.mubr.f32.mxu0 0.0
    %925 = vmatmul.mubr.f32.gmra.mxu0 %v667
    %v926 = vpop.f32.mrf.mxu0
    %v927 = vadd.f32 %v660, %v926
    %v928 = vpop.f32.mrf.mxu0
    %929 = vmatprep.mubr.f32.mxu0 0.0
    %930 = vmatmul.mubr.f32.gmra.mxu0 %v670
    %v931 = vpop.f32.mrf.mxu0
    %v932 = vadd.f32 %v660, %v931
    %v933 = vpop.f32.mrf.mxu0
    %934 = vmatprep.mubr.f32.mxu0 0.0
    %935 = vmatmul.mubr.f32.gmra.mxu0 %v673
    %v936 = vpop.f32.mrf.mxu0
    %v937 = vadd.f32 %v660, %v936
    %v938 = vpop.f32.mrf.mxu0
    %939 = vmatprep.mubr.f32.mxu0 0.0
    %940 = vmatmul.mubr.f32.gmra.mxu0 %v676
    %v941 = vpop.f32.mrf.mxu0
    %v942 = vadd.f32 %v660, %v941
    %v943 = vpop.f32.mrf.mxu0
    %944 = vmatprep.mubr.f32.mxu0 0.0
    %945 = vmatmul.mubr.f32.gmra.mxu0 %v679
    %v946 = vpop.f32.mrf.mxu0
    %v947 = vadd.f32 %v660, %v946
    %v948 = vpop.f32.mrf.mxu0
    %949 = vmatprep.mubr.f32.mxu0 0.0
    %950 = vmatmul.mubr.f32.gmra.mxu0 %v682
    %v951 = vpop.f32.mrf.mxu0
    %v952 = vadd.f32 %v660, %v951
    %v953 = vpop.f32.mrf.mxu0
    %954 = vmatprep.mubr.f32.mxu0 0.0
    %955 = vmatmul.mubr.f32.gmra.mxu0 %v685
    %v956 = vpop.f32.mrf.mxu0
    %v957 = vadd.f32 %v660, %v956
    %v958 = vpop.f32.mrf.mxu0
    %959 = vmatprep.mubr.f32.mxu0 0.0
    %960 = vmatmul.mubr.f32.gmra.mxu0 %v688
    %v961 = vpop.f32.mrf.mxu0
    %v962 = vadd.f32 %v660, %v961
    %v963 = vpop.f32.mrf.mxu0
    %964 = vmatprep.mubr.f32.mxu0 0.0
    %965 = vmatmul.mubr.f32.gmra.mxu0 %v691
    %v966 = vpop.f32.mrf.mxu0
    %v967 = vadd.f32 %v660, %v966
    %v968 = vpop.f32.mrf.mxu0
    %969 = vmatprep.mubr.f32.mxu0 0.0
    %970 = vmatmul.mubr.f32.gmra.mxu0 %v694
    %v971 = vpop.f32.mrf.mxu0
    %v972 = vadd.f32 %v660, %v971
    %v973 = vpop.f32.mrf.mxu0
    %974 = vmatprep.mubr.f32.mxu0 0.0
    %975 = vmatmul.mubr.f32.gmra.mxu0 %v697
    %v976 = vpop.f32.mrf.mxu0
    %v977 = vadd.f32 %v660, %v976
    %v978 = vpop.f32.mrf.mxu0
    %979 = vmatprep.mubr.f32.mxu0 0.0
    %980 = vmatmul.mubr.f32.gmra.mxu0 %v700
    %v981 = vpop.f32.mrf.mxu0
    %v982 = vadd.f32 %v660, %v981
    %v983 = vpop.f32.mrf.mxu0
    %984 = vmatprep.mubr.f32.mxu0 0.0
    %985 = vmatmul.mubr.f32.gmra.mxu0 %v703
    %v986 = vpop.f32.mrf.mxu0
    %v987 = vadd.f32 %v660, %v986
    %v988 = vpop.f32.mrf.mxu0
    %989 = vmatprep.mubr.f32.mxu0 0.0
    %990 = vmatmul.mubr.f32.gmra.mxu0 %v706
    %v991 = vpop.f32.mrf.mxu0
    %v992 = vadd.f32 %v660, %v991
    %v993 = vpop.f32.mrf.mxu0
    %994 = vmatprep.mubr.f32.mxu0 0.0
    %995 = vmatmul.mubr.f32.gmra.mxu0 %v709
    %v996 = vpop.f32.mrf.mxu0
    %v997 = vadd.f32 %v660, %v996
    %v998 = vpop.f32.mrf.mxu0
    %999 = vmatprep.mubr.f32.mxu0 0.0
    %1000 = vmatmul.mubr.f32.gmra.mxu0 %v712
    %v1001 = vpop.f32.mrf.mxu0
    %v1002 = vadd.f32 %v660, %v1001
    %v1003 = vpop.f32.mrf.mxu0
    %1004 = vmatprep.mubr.f32.mxu0 0.0
    %1005 = vmatmul.mubr.f32.gmra.mxu0 %v715
    %v1006 = vpop.f32.mrf.mxu0
    %v1007 = vadd.f32 %v660, %v1006
    %v1008 = vpop.f32.mrf.mxu0
    %1009 = vmatprep.mubr.f32.mxu0 0.0
    %1010 = vmatmul.mubr.f32.gmra.mxu0 %v718
    %v1011 = vpop.f32.mrf.mxu0
    %v1012 = vadd.f32 %v660, %v1011
    %v1013 = vpop.f32.mrf.mxu0
    %1014 = vmatprep.mubr.f32.mxu0 0.0
    %1015 = vmatmul.mubr.f32.gmra.mxu0 %v721
    %v1016 = vpop.f32.mrf.mxu0
    %v1017 = vadd.f32 %v660, %v1016
    %v1018 = vpop.f32.mrf.mxu0
    %1019 = vmatprep.mubr.f32.mxu0 0.0
    %1020 = vmatmul.mubr.f32.gmra.mxu0 %v724
    %v1021 = vpop.f32.mrf.mxu0
    %v1022 = vadd.f32 %v660, %v1021
    %v1023 = vpop.f32.mrf.mxu0
    %1024 = vmatprep.mubr.f32.mxu0 0.0
    %1025 = vmatmul.mubr.f32.gmra.mxu0 %v727
    %v1026 = vpop.f32.mrf.mxu0
    %v1027 = vadd.f32 %v660, %v1026
    %v1028 = vpop.f32.mrf.mxu0
    %1029 = vmatprep.mubr.f32.mxu0 0.0
    %1030 = vmatmul.mubr.f32.gmra.mxu0 %v730
    %v1031 = vpop.f32.mrf.mxu0
    %v1032 = vadd.f32 %v660, %v1031
    %v1033 = vpop.f32.mrf.mxu0
    %1034 = vmatprep.mubr.f32.mxu0 0.0
    %1035 = vmatmul.mubr.f32.gmra.mxu0 %v733
    %v1036 = vpop.f32.mrf.mxu0
    %v1037 = vadd.f32 %v660, %v1036
    %v1038 = vpop.f32.mrf.mxu0
    %1039 = vmatprep.mubr.f32.mxu0 0.0
    %1040 = vmatmul.mubr.f32.gmra.mxu0 %v736
    %v1041 = vpop.f32.mrf.mxu0
    %v1042 = vadd.f32 %v660, %v1041
    %v1043 = vpop.f32.mrf.mxu0
    %1044 = vmatprep.mubr.f32.mxu0 0.0
    %1045 = vmatmul.mubr.f32.gmra.mxu0 %v739
    %v1046 = vpop.f32.mrf.mxu0
    %v1047 = vadd.f32 %v660, %v1046
    %v1048 = vpop.f32.mrf.mxu0
    %1049 = vmatprep.mubr.f32.mxu0 0.0
    %1050 = vmatmul.mubr.f32.gmra.mxu0 %v742
    %v1051 = vpop.f32.mrf.mxu0
    %v1052 = vadd.f32 %v660, %v1051
    %v1053 = vpop.f32.mrf.mxu0
    %1054 = vmatprep.mubr.f32.mxu0 0.0
    %1055 = vmatmul.mubr.f32.gmra.mxu0 %v745
    %v1056 = vpop.f32.mrf.mxu0
    %v1057 = vadd.f32 %v660, %v1056
    %v1058 = vpop.f32.mrf.mxu0
    %1059 = vmatprep.mubr.f32.mxu0 0.0
    %1060 = vmatmul.mubr.f32.gmra.mxu0 %v748
    %v1061 = vpop.f32.mrf.mxu0
    %v1062 = vadd.f32 %v660, %v1061
    %v1063 = vpop.f32.mrf.mxu0
    %1064 = vmatprep.mubr.f32.mxu0 0.0
    %1065 = vmatmul.mubr.f32.gmra.mxu0 %v751
    %v1066 = vpop.f32.mrf.mxu0
    %v1067 = vadd.f32 %v660, %v1066
    %v1068 = vpop.f32.mrf.mxu0
    %1069 = vmatprep.mubr.f32.mxu0 0.0
    %1070 = vmatmul.mubr.f32.gmra.mxu0 %v754
    %v1071 = vpop.f32.mrf.mxu0
    %v1072 = vadd.f32 %v660, %v1071
    %v1073 = vpop.f32.mrf.mxu0
    %1074 = vmatprep.mubr.f32.mxu0 0.0
    %1075 = vmatmul.mubr.f32.gmra.mxu0 %v757
    %v1076 = vpop.f32.mrf.mxu0
    %v1077 = vadd.f32 %v660, %v1076
    %v1078 = vpop.f32.mrf.mxu0
    %1079 = vmatprep.mubr.f32.mxu0 0.0
    %1080 = vmatmul.mubr.f32.gmra.mxu0 %v760
    %v1081 = vpop.f32.mrf.mxu0
    %v1082 = vadd.f32 %v660, %v1081
    %v1083 = vpop.f32.mrf.mxu0
    %1084 = vmatprep.mubr.f32.mxu0 0.0
    %1085 = vmatmul.mubr.f32.gmra.mxu0 %v763
    %v1086 = vpop.f32.mrf.mxu0
    %v1087 = vadd.f32 %v660, %v1086
    %v1088 = vpop.f32.mrf.mxu0
    %1089 = vmatprep.mubr.f32.mxu0 0.0
    %1090 = vmatmul.mubr.f32.gmra.mxu0 %v766
    %v1091 = vpop.f32.mrf.mxu0
    %v1092 = vadd.f32 %v660, %v1091
    %v1093 = vpop.f32.mrf.mxu0
    %1094 = vmatprep.mubr.f32.mxu0 0.0
    %1095 = vmatmul.mubr.f32.gmra.mxu0 %v769
    %v1096 = vpop.f32.mrf.mxu0
    %v1097 = vadd.f32 %v660, %v1096
    %v1098 = vpop.f32.mrf.mxu0
    %1099 = vmatprep.mubr.f32.mxu0 0.0
    %1100 = vmatmul.mubr.f32.gmra.mxu0 %v772
    %v1101 = vpop.f32.mrf.mxu0
    %v1102 = vadd.f32 %v660, %v1101
    %v1103 = vpop.f32.mrf.mxu0
    %1104 = vmatprep.mubr.f32.mxu0 0.0
    %1105 = vmatmul.mubr.f32.gmra.mxu0 %v775
    %v1106 = vpop.f32.mrf.mxu0
    %v1107 = vadd.f32 %v660, %v1106
    %v1108 = vpop.f32.mrf.mxu0
    %1109 = vmatprep.mubr.f32.mxu0 0.0
    %1110 = vmatmul.mubr.f32.gmra.mxu0 %v778
    %v1111 = vpop.f32.mrf.mxu0
    %v1112 = vadd.f32 %v660, %v1111
    %v1113 = vpop.f32.mrf.mxu0
    %1114 = vmatprep.mubr.f32.mxu0 0.0
    %1115 = vmatmul.mubr.f32.gmra.mxu0 %v781
    %v1116 = vpop.f32.mrf.mxu0
    %v1117 = vadd.f32 %v660, %v1116
    %v1118 = vpop.f32.mrf.mxu0
    %1119 = vmatprep.mubr.f32.mxu0 0.0
    %1120 = vmatmul.mubr.f32.gmra.mxu0 %v784
    %v1121 = vpop.f32.mrf.mxu0
    %v1122 = vadd.f32 %v660, %v1121
    %v1123 = vpop.f32.mrf.mxu0
    %1124 = vmatprep.mubr.f32.mxu0 0.0
    %1125 = vmatmul.mubr.f32.gmra.mxu0 %v787
    %v1126 = vpop.f32.mrf.mxu0
    %v1127 = vadd.f32 %v660, %v1126
    %v1128 = vpop.f32.mrf.mxu0
    %1129 = vmatprep.mubr.f32.mxu0 0.0
    %1130 = vmatmul.mubr.f32.gmra.mxu0 %v790
    %v1131 = vpop.f32.mrf.mxu0
    %v1132 = vadd.f32 %v660, %v1131
    %v1133 = vpop.f32.mrf.mxu0
    %1134 = vmatprep.mubr.f32.mxu0 0.0
    %1135 = vmatmul.mubr.f32.gmra.mxu0 %v793
    %v1136 = vpop.f32.mrf.mxu0
    %v1137 = vadd.f32 %v660, %v1136
    %v1138 = vpop.f32.mrf.mxu0
    %1139 = vmatprep.mubr.f32.mxu0 0.0
    %1140 = vmatmul.mubr.f32.gmra.mxu0 %v796
    %v1141 = vpop.f32.mrf.mxu0
    %v1142 = vadd.f32 %v660, %v1141
    %v1143 = vpop.f32.mrf.mxu0
    %1144 = vmatprep.mubr.f32.mxu0 0.0
    %1145 = vmatmul.mubr.f32.gmra.mxu0 %v799
    %v1146 = vpop.f32.mrf.mxu0
    %v1147 = vadd.f32 %v660, %v1146
    %v1148 = vpop.f32.mrf.mxu0
    %1149 = vmatprep.mubr.f32.mxu0 0.0
    %1150 = vmatmul.mubr.f32.gmra.mxu0 %v802
    %v1151 = vpop.f32.mrf.mxu0
    %v1152 = vadd.f32 %v660, %v1151
    %v1153 = vpop.f32.mrf.mxu0
    %1154 = vmatprep.mubr.f32.mxu0 0.0
    %1155 = vmatmul.mubr.f32.gmra.mxu0 %v805
    %v1156 = vpop.f32.mrf.mxu0
    %v1157 = vadd.f32 %v660, %v1156
    %v1158 = vpop.f32.mrf.mxu0
    %1159 = vmatprep.mubr.f32.mxu0 0.0
    %1160 = vmatmul.mubr.f32.gmra.mxu0 %v808
    %v1161 = vpop.f32.mrf.mxu0
    %v1162 = vadd.f32 %v660, %v1161
    %v1163 = vpop.f32.mrf.mxu0
    %1164 = vmatprep.mubr.f32.mxu0 0.0
    %1165 = vmatmul.mubr.f32.gmra.mxu0 %v811
    %v1166 = vpop.f32.mrf.mxu0
    %v1167 = vadd.f32 %v660, %v1166
    %v1168 = vpop.f32.mrf.mxu0
    %1169 = vmatprep.mubr.f32.mxu0 0.0
    %1170 = vmatmul.mubr.f32.gmra.mxu0 %v814
    %v1171 = vpop.f32.mrf.mxu0
    %v1172 = vadd.f32 %v660, %v1171
    %v1173 = vpop.f32.mrf.mxu0
    %1174 = vmatprep.mubr.f32.mxu0 0.0
    %1175 = vmatmul.mubr.f32.gmra.mxu0 %v817
    %v1176 = vpop.f32.mrf.mxu0
    %v1177 = vadd.f32 %v660, %v1176
    %v1178 = vpop.f32.mrf.mxu0
    %1179 = vmatprep.mubr.f32.mxu0 0.0
    %1180 = vmatmul.mubr.f32.gmra.mxu0 %v820
    %v1181 = vpop.f32.mrf.mxu0
    %v1182 = vadd.f32 %v660, %v1181
    %v1183 = vpop.f32.mrf.mxu0
    %1184 = vmatprep.mubr.f32.mxu0 0.0
    %1185 = vmatmul.mubr.f32.gmra.mxu0 %v823
    %v1186 = vpop.f32.mrf.mxu0
    %v1187 = vadd.f32 %v660, %v1186
    %v1188 = vpop.f32.mrf.mxu0
    %1189 = vmatprep.mubr.f32.mxu0 0.0
    %1190 = vmatmul.mubr.f32.gmra.mxu0 %v826
    %v1191 = vpop.f32.mrf.mxu0
    %v1192 = vadd.f32 %v660, %v1191
    %v1193 = vpop.f32.mrf.mxu0
    %1194 = vmatprep.mubr.f32.mxu0 0.0
    %1195 = vmatmul.mubr.f32.gmra.mxu0 %v829
    %v1196 = vpop.f32.mrf.mxu0
    %v1197 = vadd.f32 %v660, %v1196
    %v1198 = vpop.f32.mrf.mxu0
    %1199 = vmatprep.mubr.f32.mxu0 0.0
    %1200 = vmatmul.mubr.f32.gmra.mxu0 %v832
    %v1201 = vpop.f32.mrf.mxu0
    %v1202 = vadd.f32 %v660, %v1201
    %v1203 = vpop.f32.mrf.mxu0
    %1204 = vmatprep.mubr.f32.mxu0 0.0
    %1205 = vmatmul.mubr.f32.gmra.mxu0 %v835
    %v1206 = vpop.f32.mrf.mxu0
    %v1207 = vadd.f32 %v660, %v1206
    %v1208 = vpop.f32.mrf.mxu0
    %1209 = vmatprep.mubr.f32.mxu0 0.0
    %1210 = vmatmul.mubr.f32.gmra.mxu0 %v838
    %v1211 = vpop.f32.mrf.mxu0
    %v1212 = vadd.f32 %v660, %v1211
    %v1213 = vpop.f32.mrf.mxu0
    %1214 = vmatprep.mubr.f32.mxu0 0.0
    %1215 = vmatmul.mubr.f32.gmra.mxu0 %v841
    %v1216 = vpop.f32.mrf.mxu0
    %v1217 = vadd.f32 %v660, %v1216
    %v1218 = vpop.f32.mrf.mxu0
    %1219 = vmatprep.mubr.f32.mxu0 0.0
    %1220 = vmatmul.mubr.f32.gmra.mxu0 %v844
    %v1221 = vpop.f32.mrf.mxu0
    %v1222 = vadd.f32 %v660, %v1221
    %v1223 = vpop.f32.mrf.mxu0
    %1224 = vmatprep.mubr.f32.mxu0 0.0
    %1225 = vmatmul.mubr.f32.gmra.mxu0 %v847
    %v1226 = vpop.f32.mrf.mxu0
    %v1227 = vadd.f32 %v660, %v1226
    %v1228 = vpop.f32.mrf.mxu0
    %1229 = vmatprep.mubr.f32.mxu0 0.0
    %1230 = vmatmul.mubr.f32.gmra.mxu0 %v850
    %v1231 = vpop.f32.mrf.mxu0
    %v1232 = vadd.f32 %v660, %v1231
    %v1233 = vpop.f32.mrf.mxu0
    %1234 = vmatprep.mubr.f32.mxu0 0.0
    %1235 = vmatmul.mubr.f32.gmra.mxu0 %v853
    %v1236 = vpop.f32.mrf.mxu0
    %v1237 = vadd.f32 %v660, %v1236
    %v1238 = vpop.f32.mrf.mxu0
    %1239 = vdwg.mxu0
    %1240 = vst [vmem:[#allocation2] sm:$0xff] %v922
    %1241 = vst [vmem:[#allocation2 + $0x8] sm:$0xff] %v927
    %1242 = vst [vmem:[#allocation2 + $0x10] sm:$0xff] %v932
    %1243 = vst [vmem:[#allocation2 + $0x18] sm:$0xff] %v937
    %1244 = vst [vmem:[#allocation2 + $0x20] sm:$0xff] %v942
    %1245 = vst [vmem:[#allocation2 + $0x28] sm:$0xff] %v947
    %1246 = vst [vmem:[#allocation2 + $0x30] sm:$0xff] %v952
    %1247 = vst [vmem:[#allocation2 + $0x38] sm:$0xff] %v957
    %1248 = vst [vmem:[#allocation2 + $0x40] sm:$0xff] %v962
    %1249 = vst [vmem:[#allocation2 + $0x48] sm:$0xff] %v967
    %1250 = vst [vmem:[#allocation2 + $0x50] sm:$0xff] %v972
    %1251 = vst [vmem:[#allocation2 + $0x58] sm:$0xff] %v977
    %1252 = vst [vmem:[#allocation2 + $0x60] sm:$0xff] %v982
    %1253 = vst [vmem:[#allocation2 + $0x68] sm:$0xff] %v987
    %1254 = vst [vmem:[#allocation2 + $0x70] sm:$0xff] %v992
    %1255 = vst [vmem:[#allocation2 + $0x78] sm:$0xff] %v997
    %1256 = vst [vmem:[#allocation2 + $0x80] sm:$0xff] %v1002
    %1257 = vst [vmem:[#allocation2 + $0x88] sm:$0xff] %v1007
    %1258 = vst [vmem:[#allocation2 + $0x90] sm:$0xff] %v1012
    %1259 = vst [vmem:[#allocation2 + $0x98] sm:$0xff] %v1017
    %1260 = vst [vmem:[#allocation2 + $0xa0] sm:$0xff] %v1022
    %1261 = vst [vmem:[#allocation2 + $0xa8] sm:$0xff] %v1027
    %1262 = vst [vmem:[#allocation2 + $0xb0] sm:$0xff] %v1032
    %1263 = vst [vmem:[#allocation2 + $0xb8] sm:$0xff] %v1037
    %1264 = vst [vmem:[#allocation2 + $0xc0] sm:$0xff] %v1042
    %1265 = vst [vmem:[#allocation2 + $0xc8] sm:$0xff] %v1047
    %1266 = vst [vmem:[#allocation2 + $0xd0] sm:$0xff] %v1052
    %1267 = vst [vmem:[#allocation2 + $0xd8] sm:$0xff] %v1057
    %1268 = vst [vmem:[#allocation2 + $0xe0] sm:$0xff] %v1062
    %1269 = vst [vmem:[#allocation2 + $0xe8] sm:$0xff] %v1067
    %1270 = vst [vmem:[#allocation2 + $0xf0] sm:$0xff] %v1072
    %1271 = vst [vmem:[#allocation2 + $0xf8] sm:$0xff] %v1077
    %1272 = vst [vmem:[#allocation2 + $0x100] sm:$0xff] %v1082
    %1273 = vst [vmem:[#allocation2 + $0x108] sm:$0xff] %v1087
    %1274 = vst [vmem:[#allocation2 + $0x110] sm:$0xff] %v1092
    %1275 = vst [vmem:[#allocation2 + $0x118] sm:$0xff] %v1097
    %1276 = vst [vmem:[#allocation2 + $0x120] sm:$0xff] %v1102
    %1277 = vst [vmem:[#allocation2 + $0x128] sm:$0xff] %v1107
    %1278 = vst [vmem:[#allocation2 + $0x130] sm:$0xff] %v1112
    %1279 = vst [vmem:[#allocation2 + $0x138] sm:$0xff] %v1117
    %1280 = vst [vmem:[#allocation2 + $0x140] sm:$0xff] %v1122
    %1281 = vst [vmem:[#allocation2 + $0x148] sm:$0xff] %v1127
    %1282 = vst [vmem:[#allocation2 + $0x150] sm:$0xff] %v1132
    %1283 = vst [vmem:[#allocation2 + $0x158] sm:$0xff] %v1137
    %1284 = vst [vmem:[#allocation2 + $0x160] sm:$0xff] %v1142
    %1285 = vst [vmem:[#allocation2 + $0x168] sm:$0xff] %v1147
    %1286 = vst [vmem:[#allocation2 + $0x170] sm:$0xff] %v1152
    %1287 = vst [vmem:[#allocation2 + $0x178] sm:$0xff] %v1157
    %1288 = vst [vmem:[#allocation2 + $0x180] sm:$0xff] %v1162
    %1289 = vst [vmem:[#allocation2 + $0x188] sm:$0xff] %v1167
    %1290 = vst [vmem:[#allocation2 + $0x190] sm:$0xff] %v1172
    %1291 = vst [vmem:[#allocation2 + $0x198] sm:$0xff] %v1177
    %1292 = vst [vmem:[#allocation2 + $0x1a0] sm:$0xff] %v1182
    %1293 = vst [vmem:[#allocation2 + $0x1a8] sm:$0xff] %v1187
    %1294 = vst [vmem:[#allocation2 + $0x1b0] sm:$0xff] %v1192
    %1295 = vst [vmem:[#allocation2 + $0x1b8] sm:$0xff] %v1197
    %1296 = vst [vmem:[#allocation2 + $0x1c0] sm:$0xff] %v1202
    %1297 = vst [vmem:[#allocation2 + $0x1c8] sm:$0xff] %v1207
    %1298 = vst [vmem:[#allocation2 + $0x1d0] sm:$0xff] %v1212
    %1299 = vst [vmem:[#allocation2 + $0x1d8] sm:$0xff] %v1217
    %1300 = vst [vmem:[#allocation2 + $0x1e0] sm:$0xff] %v1222
    %1301 = vst [vmem:[#allocation2 + $0x1e8] sm:$0xff] %v1227
    %1302 = vst [vmem:[#allocation2 + $0x1f0] sm:$0xff] %v1232
    %1303 = vst [vmem:[#allocation2 + $0x1f8] sm:$0xff] %v1237
    // Predicated region
    $region18: #{cur_conv2d_forward.1} parent=1 // pred_check
      _
    $region19: #{cur_conv2d_forward.1} parent=1 // pred_check_branch
      %1305 = sbr.rel (0) target = $region21
    $region20: #{cur_conv2d_forward.1} parent=1 // pred_region
      %s1307 = ssub.s32 8192, 8192
      %1308 = vsyncadd [#allocation3], %s1307
      %s1309 = sshll.u32 [#allocation2], 4
      %s1310 = int_to_ptr.vmem [resolvable:$true] %s1309
      %1315 = dma.vmem_to_hbm [thread:$0]  %s1310, 8192, %s4, [#allocation3], 128, 128, 8
    $region21: #{cur_conv2d_forward.1} parent=1 // pred_fallthru
      _
    // Predicated region
    $region22: #{cur_conv2d_forward.1} parent=1 // pred_check
      _
    $region23: #{cur_conv2d_forward.1} parent=1 // pred_check_branch
      %1317 = sbr.rel (0) target = $region25
    $region24: #{cur_conv2d_forward.1} parent=1 // pred_region
      %1318 = dma.done [#allocation3], 8192
    $region25: #{cur_conv2d_forward.1} parent=1 // pred_fallthru
      _
    %1319 = vsyncpa [#allocation3], 1

</llo_original>
